<compile_context>
chip_gen: v6e
topology: v6e:2x2x1
jax: 0.10.0
libtpu: 0.0.40
codegen_flags: <defaults>
</compile_context>

<pallas_src>
import functools

import jax
import jax.numpy as jnp
from jax.experimental import pallas as pl
from jax.experimental.pallas import tpu as pltpu


# ----------------------------------------------------------------------------
# Pallas kernel: fused conv1d + ReLU + mean-pool + MLP head + sigmoid
# ----------------------------------------------------------------------------
def _fused_cnn_kernel(x_ref, wc_ref, bc_ref, w1_ref, b1_ref, w2_ref, b2_ref,
                      out_ref):
    # x_ref  : (TB*Cin, L)           input tile, batch folded into sublanes
    # wc_ref : (K, TB*Cout, TB*Cin)  block-diagonal conv taps, one per k
    # bc_ref : (TB*Cout, 1)          conv bias (tiled per batch element)
    # w1_ref : (TB*Cout, TB*Cout)    block-diagonal fc1 weight
    # b1_ref : (TB*Cout, 1)
    # w2_ref : (TB*2, TB*Cout)       block-diagonal fc2 weight
    # b2_ref : (TB*2, 1)
    # out_ref: (TB*2, 1)
    k_len = wc_ref.shape[0]
    lout = x_ref.shape[1] - k_len + 1

    x = x_ref[...]
    # Valid cross-correlation as K lane-shifted slices; f32 MXU accumulation.
    acc = jnp.dot(wc_ref[0], x[:, 0:lout], preferred_element_type=jnp.float32)
    for k in range(1, k_len):
        acc = acc + jnp.dot(wc_ref[k], x[:, k:k + lout],
                            preferred_element_type=jnp.float32)
    conv = jnp.maximum(acc + bc_ref[...], 0.0)                  # bias + ReLU

    # AdaptiveAvgPool1d(1): lane (XLU) reduction, no extra MXU pass.
    pooled = jnp.sum(conv, axis=-1, keepdims=True) * (1.0 / lout)   # (TB*Cout, 1)

    h = jnp.dot(w1_ref[...], pooled, preferred_element_type=jnp.float32) + b1_ref[...]
    h = jnp.maximum(h, 0.0)
    logits = jnp.dot(w2_ref[...], h, preferred_element_type=jnp.float32) + b2_ref[...]

    # Exact sigmoid (review correctness note: no approximate reciprocal).
    out_ref[...] = (1.0 / (1.0 + jnp.exp(-logits))).astype(out_ref.dtype)


# ----------------------------------------------------------------------------
# Chip introspection: MXU tile size, VMEM limit, minimum grid steps.
# ----------------------------------------------------------------------------
def _chip_info():
    """Returns (mxu_dim, vmem_limit_bytes, min_grid_blocks)."""
    kind = ""
    try:
        kind = jax.devices()[0].device_kind.lower()
    except Exception:
        pass
    old_gen = any(t in kind for t in ("v2", "v3", "v4", "v5"))   # 128-wide MXU
    v7 = ("v7" in kind) or ("7x" in kind)
    mxu_dim = 128 if old_gen else 256

    vmem_phys = (64 if v7 else 128) * 1024 * 1024
    try:
        cap = getattr(pltpu.get_tpu_info(), "vmem_capacity_bytes", None)
        if cap:
            vmem_phys = int(cap)
    except Exception:
        pass
    # Explicit scoped-VMEM limit: well above the 16/32 MiB defaults, with
    # headroom below physical capacity for Mosaic's internal scratch.
    vmem_limit = max(16 * 1024 * 1024,
                     min(int(0.75 * vmem_phys), 100 * 1024 * 1024))
    min_blocks = 2 if v7 else 1        # keep both v7x TensorCores busy
    return mxu_dim, vmem_limit, min_blocks


def _round_up(x, m):
    return ((x + m - 1) // m) * m


def _pick_batch_tile(batch, cin, cout, seq_len, k_len, itemsize,
                     mxu_dim, vmem_budget, min_blocks):
    """Largest legal batch tile: divides the batch, satisfies TPU block-shape
    divisibility, keeps TB*Cin / TB*Cout within one MXU tile (beyond that the
    block-diagonal matmul cost grows ~TB^2) and fits the VMEM budget."""
    lout = seq_len - k_len + 1
    sub = 8 if itemsize >= 4 else 16          # sublane tile: 8 (f32) / 16 (bf16)

    def shapes_ok(tb):
        if tb == batch:                       # full-dim blocks are always legal
            return True
        return (tb * cin) % sub == 0 and (tb * 2) % 8 == 0

    def footprint(tb):
        fp = 2 * tb * cin * seq_len * itemsize                       # input x2 (dbl buf)
        fp += 2 * k_len * (tb * cout) * (tb * cin) * itemsize        # conv taps
        fp += 2 * ((tb * cout) ** 2 + (tb * 2) * (tb * cout)) * 4    # head weights
        fp += 3 * _round_up(tb * cout, 8) * _round_up(lout, 128) * 4   # f32 acc/tmp
        fp += 2 * _round_up(tb * cin, sub) * _round_up(lout, 128) * itemsize
        return fp

    mxu_cap = max(1, min(mxu_dim // max(cout, 1), mxu_dim // max(cin, 1)))
    cands = [t for t in range(1, batch + 1) if batch % t == 0 and shapes_ok(t)]
    if not cands:
        cands = [batch]

    pool = [t for t in cands if t <= mxu_cap and footprint(t) <= vmem_budget]
    if min_blocks > 1:
        split = [t for t in pool if batch // t >= min_blocks]
        if split:
            pool = split
    if pool:
        return max(pool)
    fit = [t for t in cands if footprint(t) <= vmem_budget]
    if fit:
        return min(fit)
    # TODO(synk): for pathologically long windows even the smallest tile can
    # exceed VMEM; a second "arbitrary" time-grid axis with a running-sum
    # accumulator would be needed.  EEG windows comfortably fit.
    return min(cands)


# ----------------------------------------------------------------------------
# pallas_call wrapper
# ----------------------------------------------------------------------------
def _const_spec(shape, single_buffer):
    """Full-array block whose index never changes across the grid (weights)."""
    zeros = (0,) * len(shape)

    def index_map(i, _z=zeros):
        return _z

    if single_buffer:
        # Constant operands need no double buffer; this buys back VMEM
        # (matters most on v7x's 64 MiB as TB grows).
        return pl.BlockSpec(shape, index_map, pipeline_mode=pl.Buffered(1))
    return pl.BlockSpec(shape, index_map)


def _run_kernel(x2, wk, bc, w1, b1, w2, b2, *, batch, tb, cin, seq_len,
                vmem_limit_bytes, single_buffer_weights):
    n_blocks = batch // tb
    consts = (wk, bc, w1, b1, w2, b2)
    in_specs = [pl.BlockSpec((tb * cin, seq_len), lambda i: (i, 0))]   # batch-tiled
    in_specs += [_const_spec(c.shape, single_buffer_weights) for c in consts]
    return pl.pallas_call(
        _fused_cnn_kernel,
        out_shape=jax.ShapeDtypeStruct((batch * 2, 1), jnp.float32),
        grid_spec=pltpu.PrefetchScalarGridSpec(
            num_scalar_prefetch=0,
            grid=(n_blocks,),
            in_specs=in_specs,
            out_specs=pl.BlockSpec((tb * 2, 1), lambda i: (i, 0)),
        ),
        compiler_params=pltpu.CompilerParams(
            dimension_semantics=("parallel",),
            vmem_limit_bytes=int(vmem_limit_bytes)),
    )(x2, wk, bc, w1, b1, w2, b2)


# ----------------------------------------------------------------------------
# Model wrapper (parameter setup + cached per-tile weight layout)
# ----------------------------------------------------------------------------
class Args:
    def __init__(self, window_length, eeg_channel):
        self.window_length = window_length
        self.eeg_channel = eeg_channel


def _block_diag(eye, mat):
    """kron(eye(TB), mat) built with one broadcasted multiply."""
    t = eye.shape[0]
    o, i = mat.shape
    return (eye[:, None, :, None] * mat[None, :, None, :]).reshape(t * o, t * i)


class Model:
    def __init__(self, args, key):
        self.args = args
        self.conv_output_channel = 5
        self.conv_eeg_audio_number = 1
        self.output_fc_number = self.conv_eeg_audio_number * self.conv_output_channel
        self.kernel_len = min(args.window_length, 17)

        keys = jax.random.split(key, 8)
        cin, cout, k = args.eeg_channel, self.conv_output_channel, self.kernel_len
        f = self.output_fc_number
        wl = args.window_length

        # deterministic synthetic parameter init (PyTorch shape conventions)
        self.conv_w = 0.1 * jax.random.normal(keys[0], (cout, cin, k), jnp.float32)
        self.conv_b = 0.1 * jax.random.normal(keys[1], (cout,), jnp.float32)
        self.fc1_w = 0.1 * jax.random.normal(keys[2], (f, f), jnp.float32)   # (out, in)
        self.fc1_b = 0.1 * jax.random.normal(keys[3], (f,), jnp.float32)
        self.fc2_w = 0.1 * jax.random.normal(keys[4], (2, f), jnp.float32)   # (out, in)
        self.fc2_b = 0.1 * jax.random.normal(keys[5], (2,), jnp.float32)
        # input_linear is defined by the PyTorch module but never used in forward.
        self.input_linear_w = 0.1 * jax.random.normal(keys[6], (wl, wl), jnp.float32)
        self.input_linear_b = 0.1 * jax.random.normal(keys[7], (wl,), jnp.float32)

        self._chip = _chip_info()
        self._weight_cache = {}
        self._single_buffer_weights = None   # resolved on first kernel build

    # -- per-(TB, dtype) tiled weights, cached so forward() does no re-prep --
    def _tiled_weights(self, tb, dtype):
        key = (int(tb), jnp.dtype(dtype).name)
        if key in self._weight_cache:
            return self._weight_cache[key]
        cout, cin, k = self.conv_w.shape
        eye = jnp.eye(tb, dtype=jnp.float32)
        w_k = jnp.moveaxis(self.conv_w, 2, 0)                       # (K, Cout, Cin)
        wk = (eye[None, :, None, :, None] * w_k[:, None, :, None, :]) \
            .reshape(k, tb * cout, tb * cin).astype(dtype)          # (K, TB*Cout, TB*Cin)
        bc = jnp.tile(self.conv_b, tb).reshape(tb * cout, 1)
        w1 = _block_diag(eye, self.fc1_w)                           # (TB*Cout, TB*Cout)
        b1 = jnp.tile(self.fc1_b, tb).reshape(tb * cout, 1)
        w2 = _block_diag(eye, self.fc2_w)                           # (TB*2, TB*Cout)
        b2 = jnp.tile(self.fc2_b, tb).reshape(tb * 2, 1)
        packed = (wk, bc, w1, b1, w2, b2)
        self._weight_cache[key] = packed
        return packed

    def forward(self, bs1, bs2, beeg, targets):
        # TODO(synk): SPower / sutil.ann_energy energy accounting has no Pallas
        # equivalent; returning a 0.0 placeholder for `energy`.
        energy = jnp.float32(0.0)

        B, cin, L = beeg.shape
        k_len = self.kernel_len
        cout = self.conv_output_channel
        cd = beeg.dtype                      # compute in the input's own dtype:
        itemsize = jnp.dtype(cd).itemsize    # no wrapper-side cast pass over x

        mxu_dim, vmem_limit, min_blocks = self._chip
        tb = _pick_batch_tile(B, cin, cout, L, k_len, itemsize,
                              mxu_dim, int(0.7 * vmem_limit), min_blocks)

        # (B, Cin, L) -> (B*Cin, L): free view of contiguous memory; beeg is
        # read from HBM exactly once (no im2col inflation, no dtype pass).
        x2 = beeg.reshape(B * cin, L)
        wk, bc, w1, b1, w2, b2 = self._tiled_weights(tb, cd)

        run = functools.partial(_run_kernel, x2, wk, bc, w1, b1, w2, b2,
                                batch=B, tb=tb, cin=cin, seq_len=L,
                                vmem_limit_bytes=vmem_limit)
        if self._single_buffer_weights is None:
            try:
                out_flat = jax.block_until_ready(run(single_buffer_weights=True))
                self._single_buffer_weights = True
            except Exception:
                # pipeline_mode=pl.Buffered(1) unsupported on this JAX build:
                # fall back to default double-buffered constants.
                self._single_buffer_weights = False
                out_flat = run(single_buffer_weights=False)
        else:
            out_flat = run(single_buffer_weights=self._single_buffer_weights)

        output = out_flat.reshape(B, 2)                  # rows are (batch, class)
        return output, targets, energy


# ----------------------------------------------------------------------------
# Pure-JAX reference (sanity check for the kernel)
# ----------------------------------------------------------------------------
def reference_forward(model, beeg):
    conv = jax.lax.conv_general_dilated(
        beeg.astype(jnp.float32), model.conv_w, window_strides=(1,),
        padding="VALID", dimension_numbers=("NCH", "OIH", "NCH"))
    conv = jnp.maximum(conv + model.conv_b[None, :, None], 0.0)
    pooled = jnp.mean(conv, axis=-1)
    h = jnp.maximum(pooled @ model.fc1_w.T + model.fc1_b, 0.0)
    return jax.nn.sigmoid(h @ model.fc2_w.T + model.fc2_b)


if __name__ == "__main__":
    key = jax.random.PRNGKey(0)
    k_param, k_eeg, k_bs1, k_bs2, k_eeg2 = jax.random.split(key, 5)

    # ---- check 1: tiny shapes, f32 (batch=2, eeg_channel=4, window=32) ----
    args = Args(window_length=32, eeg_channel=4)
    model = Model(args, k_param)
    beeg = jax.random.normal(k_eeg, (2, args.eeg_channel, args.window_length), jnp.float32)
    bs1 = jax.random.normal(k_bs1, (2, args.window_length), jnp.float32)   # unused by forward
    bs2 = jax.random.normal(k_bs2, (2, args.window_length), jnp.float32)   # unused by forward
    targets = jnp.array([0, 1], dtype=jnp.int32)

    output, tgt_out, energy = model.forward(bs1, bs2, beeg, targets)
    output = jax.block_until_ready(output)
    ref = reference_forward(model, beeg)
    assert output.shape == (2, 2)
    assert jnp.allclose(output, ref, atol=5e-3), (output, ref)

    # ---- check 2: input already stored in bf16 (no wrapper-side cast pass) ----
    out_bf16, _, _ = model.forward(bs1, bs2, beeg.astype(jnp.bfloat16), targets)
    out_bf16 = jax.block_until_ready(out_bf16)
    assert jnp.allclose(out_bf16.astype(jnp.float32), ref, atol=3e-2), (out_bf16, ref)

    # ---- check 3: larger batch -> large batch tile + multi-step parallel grid ----
    args2 = Args(window_length=64, eeg_channel=4)
    model2 = Model(args2, k_param)
    beeg2 = jax.random.normal(k_eeg2, (128, args2.eeg_channel, args2.window_length),
                              jnp.float32)
    targets2 = jnp.zeros((128,), jnp.int32)
    out2, _, _ = model2.forward(None, None, beeg2, targets2)
    out2 = jax.block_until_ready(out2)
    ref2 = reference_forward(model2, beeg2)
    assert out2.shape == (128, 2)
    assert jnp.allclose(out2, ref2, atol=5e-3), float(jnp.max(jnp.abs(out2 - ref2)))

    print("KERNEL_OK")
</pallas_src>

<mosaic_0001>
module attributes {stable_mosaic.version = 11 : i64} {
  func.func @_fused_cnn_kernel(%arg0: i32, %arg1: memref<8x32xf32, #tpu.memory_space<vmem>>, %arg2: memref<17x10x8xf32, #tpu.memory_space<vmem>>, %arg3: memref<10x1xf32, #tpu.memory_space<vmem>>, %arg4: memref<10x10xf32, #tpu.memory_space<vmem>>, %arg5: memref<10x1xf32, #tpu.memory_space<vmem>>, %arg6: memref<4x10xf32, #tpu.memory_space<vmem>>, %arg7: memref<4x1xf32, #tpu.memory_space<vmem>>, %arg8: memref<4x1xf32, #tpu.memory_space<vmem>>) attributes {dimension_semantics = [#tpu.dimension_semantics<parallel>], iteration_bounds = array<i64: 1>, scalar_prefetch = 0 : i64, scratch_operands = 0 : i64, tpu.core_type = #tpu.core_type<tc>, window_params = [{transform_indices = @transform_0, window_bounds = array<i64: 8, 32>}, {pipeline_mode = #tpu.pipeline_mode<synchronous>, transform_indices = @transform_1, window_bounds = array<i64: 17, 10, 8>}, {pipeline_mode = #tpu.pipeline_mode<synchronous>, transform_indices = @transform_2, window_bounds = array<i64: 10, 1>}, {pipeline_mode = #tpu.pipeline_mode<synchronous>, transform_indices = @transform_3, window_bounds = array<i64: 10, 10>}, {pipeline_mode = #tpu.pipeline_mode<synchronous>, transform_indices = @transform_4, window_bounds = array<i64: 10, 1>}, {pipeline_mode = #tpu.pipeline_mode<synchronous>, transform_indices = @transform_5, window_bounds = array<i64: 4, 10>}, {pipeline_mode = #tpu.pipeline_mode<synchronous>, transform_indices = @transform_6, window_bounds = array<i64: 4, 1>}, {transform_indices = @transform_7, window_bounds = array<i64: 4, 1>}]} {
    %c0 = arith.constant 0 : index
    %c0_0 = arith.constant 0 : index
    %0 = vector.load %arg1[%c0, %c0_0] : memref<8x32xf32, #tpu.memory_space<vmem>>, vector<8x32xf32>
    %c0_1 = arith.constant 0 : index
    %c0_2 = arith.constant 0 : index
    %c0_3 = arith.constant 0 : index
    %1 = vector.load %arg2[%c0_1, %c0_2, %c0_3] : memref<17x10x8xf32, #tpu.memory_space<vmem>>, vector<1x10x8xf32>
    %2 = vector.shape_cast %1 : vector<1x10x8xf32> to vector<10x8xf32>
    %3 = vector.extract_strided_slice %0 {offsets = [0, 0], sizes = [8, 16], strides = [1, 1]} : vector<8x32xf32> to vector<8x16xf32>
    %cst = arith.constant dense<0.000000e+00> : vector<10x16xf32>
    %4 = tpu.matmul %2, %3, %cst {dimension_numbers = #tpu.dot_dimension_numbers<[1], [0], [0], [1], [0, 0, 1, 1], [], []>} : vector<10x8xf32>, vector<8x16xf32>, vector<10x16xf32> -> vector<10x16xf32>
    %c1 = arith.constant 1 : index
    %c0_4 = arith.constant 0 : index
    %c0_5 = arith.constant 0 : index
    %5 = vector.load %arg2[%c1, %c0_4, %c0_5] : memref<17x10x8xf32, #tpu.memory_space<vmem>>, vector<1x10x8xf32>
    %6 = vector.shape_cast %5 : vector<1x10x8xf32> to vector<10x8xf32>
    %7 = vector.extract_strided_slice %0 {offsets = [0, 1], sizes = [8, 16], strides = [1, 1]} : vector<8x32xf32> to vector<8x16xf32>
    %cst_6 = arith.constant dense<0.000000e+00> : vector<10x16xf32>
    %8 = tpu.matmul %6, %7, %cst_6 {dimension_numbers = #tpu.dot_dimension_numbers<[1], [0], [0], [1], [0, 0, 1, 1], [], []>} : vector<10x8xf32>, vector<8x16xf32>, vector<10x16xf32> -> vector<10x16xf32>
    %9 = arith.addf %4, %8 : vector<10x16xf32>
    %c2 = arith.constant 2 : index
    %c0_7 = arith.constant 0 : index
    %c0_8 = arith.constant 0 : index
    %10 = vector.load %arg2[%c2, %c0_7, %c0_8] : memref<17x10x8xf32, #tpu.memory_space<vmem>>, vector<1x10x8xf32>
    %11 = vector.shape_cast %10 : vector<1x10x8xf32> to vector<10x8xf32>
    %12 = vector.extract_strided_slice %0 {offsets = [0, 2], sizes = [8, 16], strides = [1, 1]} : vector<8x32xf32> to vector<8x16xf32>
    %cst_9 = arith.constant dense<0.000000e+00> : vector<10x16xf32>
    %13 = tpu.matmul %11, %12, %cst_9 {dimension_numbers = #tpu.dot_dimension_numbers<[1], [0], [0], [1], [0, 0, 1, 1], [], []>} : vector<10x8xf32>, vector<8x16xf32>, vector<10x16xf32> -> vector<10x16xf32>
    %14 = arith.addf %9, %13 : vector<10x16xf32>
    %c3 = arith.constant 3 : index
    %c0_10 = arith.constant 0 : index
    %c0_11 = arith.constant 0 : index
    %15 = vector.load %arg2[%c3, %c0_10, %c0_11] : memref<17x10x8xf32, #tpu.memory_space<vmem>>, vector<1x10x8xf32>
    %16 = vector.shape_cast %15 : vector<1x10x8xf32> to vector<10x8xf32>
    %17 = vector.extract_strided_slice %0 {offsets = [0, 3], sizes = [8, 16], strides = [1, 1]} : vector<8x32xf32> to vector<8x16xf32>
    %cst_12 = arith.constant dense<0.000000e+00> : vector<10x16xf32>
    %18 = tpu.matmul %16, %17, %cst_12 {dimension_numbers = #tpu.dot_dimension_numbers<[1], [0], [0], [1], [0, 0, 1, 1], [], []>} : vector<10x8xf32>, vector<8x16xf32>, vector<10x16xf32> -> vector<10x16xf32>
    %19 = arith.addf %14, %18 : vector<10x16xf32>
    %c4 = arith.constant 4 : index
    %c0_13 = arith.constant 0 : index
    %c0_14 = arith.constant 0 : index
    %20 = vector.load %arg2[%c4, %c0_13, %c0_14] : memref<17x10x8xf32, #tpu.memory_space<vmem>>, vector<1x10x8xf32>
    %21 = vector.shape_cast %20 : vector<1x10x8xf32> to vector<10x8xf32>
    %22 = vector.extract_strided_slice %0 {offsets = [0, 4], sizes = [8, 16], strides = [1, 1]} : vector<8x32xf32> to vector<8x16xf32>
    %cst_15 = arith.constant dense<0.000000e+00> : vector<10x16xf32>
    %23 = tpu.matmul %21, %22, %cst_15 {dimension_numbers = #tpu.dot_dimension_numbers<[1], [0], [0], [1], [0, 0, 1, 1], [], []>} : vector<10x8xf32>, vector<8x16xf32>, vector<10x16xf32> -> vector<10x16xf32>
    %24 = arith.addf %19, %23 : vector<10x16xf32>
    %c5 = arith.constant 5 : index
    %c0_16 = arith.constant 0 : index
    %c0_17 = arith.constant 0 : index
    %25 = vector.load %arg2[%c5, %c0_16, %c0_17] : memref<17x10x8xf32, #tpu.memory_space<vmem>>, vector<1x10x8xf32>
    %26 = vector.shape_cast %25 : vector<1x10x8xf32> to vector<10x8xf32>
    %27 = vector.extract_strided_slice %0 {offsets = [0, 5], sizes = [8, 16], strides = [1, 1]} : vector<8x32xf32> to vector<8x16xf32>
    %cst_18 = arith.constant dense<0.000000e+00> : vector<10x16xf32>
    %28 = tpu.matmul %26, %27, %cst_18 {dimension_numbers = #tpu.dot_dimension_numbers<[1], [0], [0], [1], [0, 0, 1, 1], [], []>} : vector<10x8xf32>, vector<8x16xf32>, vector<10x16xf32> -> vector<10x16xf32>
    %29 = arith.addf %24, %28 : vector<10x16xf32>
    %c6 = arith.constant 6 : index
    %c0_19 = arith.constant 0 : index
    %c0_20 = arith.constant 0 : index
    %30 = vector.load %arg2[%c6, %c0_19, %c0_20] : memref<17x10x8xf32, #tpu.memory_space<vmem>>, vector<1x10x8xf32>
    %31 = vector.shape_cast %30 : vector<1x10x8xf32> to vector<10x8xf32>
    %32 = vector.extract_strided_slice %0 {offsets = [0, 6], sizes = [8, 16], strides = [1, 1]} : vector<8x32xf32> to vector<8x16xf32>
    %cst_21 = arith.constant dense<0.000000e+00> : vector<10x16xf32>
    %33 = tpu.matmul %31, %32, %cst_21 {dimension_numbers = #tpu.dot_dimension_numbers<[1], [0], [0], [1], [0, 0, 1, 1], [], []>} : vector<10x8xf32>, vector<8x16xf32>, vector<10x16xf32> -> vector<10x16xf32>
    %34 = arith.addf %29, %33 : vector<10x16xf32>
    %c7 = arith.constant 7 : index
    %c0_22 = arith.constant 0 : index
    %c0_23 = arith.constant 0 : index
    %35 = vector.load %arg2[%c7, %c0_22, %c0_23] : memref<17x10x8xf32, #tpu.memory_space<vmem>>, vector<1x10x8xf32>
    %36 = vector.shape_cast %35 : vector<1x10x8xf32> to vector<10x8xf32>
    %37 = vector.extract_strided_slice %0 {offsets = [0, 7], sizes = [8, 16], strides = [1, 1]} : vector<8x32xf32> to vector<8x16xf32>
    %cst_24 = arith.constant dense<0.000000e+00> : vector<10x16xf32>
    %38 = tpu.matmul %36, %37, %cst_24 {dimension_numbers = #tpu.dot_dimension_numbers<[1], [0], [0], [1], [0, 0, 1, 1], [], []>} : vector<10x8xf32>, vector<8x16xf32>, vector<10x16xf32> -> vector<10x16xf32>
    %39 = arith.addf %34, %38 : vector<10x16xf32>
    %c8 = arith.constant 8 : index
    %c0_25 = arith.constant 0 : index
    %c0_26 = arith.constant 0 : index
    %40 = vector.load %arg2[%c8, %c0_25, %c0_26] : memref<17x10x8xf32, #tpu.memory_space<vmem>>, vector<1x10x8xf32>
    %41 = vector.shape_cast %40 : vector<1x10x8xf32> to vector<10x8xf32>
    %42 = vector.extract_strided_slice %0 {offsets = [0, 8], sizes = [8, 16], strides = [1, 1]} : vector<8x32xf32> to vector<8x16xf32>
    %cst_27 = arith.constant dense<0.000000e+00> : vector<10x16xf32>
    %43 = tpu.matmul %41, %42, %cst_27 {dimension_numbers = #tpu.dot_dimension_numbers<[1], [0], [0], [1], [0, 0, 1, 1], [], []>} : vector<10x8xf32>, vector<8x16xf32>, vector<10x16xf32> -> vector<10x16xf32>
    %44 = arith.addf %39, %43 : vector<10x16xf32>
    %c9 = arith.constant 9 : index
    %c0_28 = arith.constant 0 : index
    %c0_29 = arith.constant 0 : index
    %45 = vector.load %arg2[%c9, %c0_28, %c0_29] : memref<17x10x8xf32, #tpu.memory_space<vmem>>, vector<1x10x8xf32>
    %46 = vector.shape_cast %45 : vector<1x10x8xf32> to vector<10x8xf32>
    %47 = vector.extract_strided_slice %0 {offsets = [0, 9], sizes = [8, 16], strides = [1, 1]} : vector<8x32xf32> to vector<8x16xf32>
    %cst_30 = arith.constant dense<0.000000e+00> : vector<10x16xf32>
    %48 = tpu.matmul %46, %47, %cst_30 {dimension_numbers = #tpu.dot_dimension_numbers<[1], [0], [0], [1], [0, 0, 1, 1], [], []>} : vector<10x8xf32>, vector<8x16xf32>, vector<10x16xf32> -> vector<10x16xf32>
    %49 = arith.addf %44, %48 : vector<10x16xf32>
    %c10 = arith.constant 10 : index
    %c0_31 = arith.constant 0 : index
    %c0_32 = arith.constant 0 : index
    %50 = vector.load %arg2[%c10, %c0_31, %c0_32] : memref<17x10x8xf32, #tpu.memory_space<vmem>>, vector<1x10x8xf32>
    %51 = vector.shape_cast %50 : vector<1x10x8xf32> to vector<10x8xf32>
    %52 = vector.extract_strided_slice %0 {offsets = [0, 10], sizes = [8, 16], strides = [1, 1]} : vector<8x32xf32> to vector<8x16xf32>
    %cst_33 = arith.constant dense<0.000000e+00> : vector<10x16xf32>
    %53 = tpu.matmul %51, %52, %cst_33 {dimension_numbers = #tpu.dot_dimension_numbers<[1], [0], [0], [1], [0, 0, 1, 1], [], []>} : vector<10x8xf32>, vector<8x16xf32>, vector<10x16xf32> -> vector<10x16xf32>
    %54 = arith.addf %49, %53 : vector<10x16xf32>
    %c11 = arith.constant 11 : index
    %c0_34 = arith.constant 0 : index
    %c0_35 = arith.constant 0 : index
    %55 = vector.load %arg2[%c11, %c0_34, %c0_35] : memref<17x10x8xf32, #tpu.memory_space<vmem>>, vector<1x10x8xf32>
    %56 = vector.shape_cast %55 : vector<1x10x8xf32> to vector<10x8xf32>
    %57 = vector.extract_strided_slice %0 {offsets = [0, 11], sizes = [8, 16], strides = [1, 1]} : vector<8x32xf32> to vector<8x16xf32>
    %cst_36 = arith.constant dense<0.000000e+00> : vector<10x16xf32>
    %58 = tpu.matmul %56, %57, %cst_36 {dimension_numbers = #tpu.dot_dimension_numbers<[1], [0], [0], [1], [0, 0, 1, 1], [], []>} : vector<10x8xf32>, vector<8x16xf32>, vector<10x16xf32> -> vector<10x16xf32>
    %59 = arith.addf %54, %58 : vector<10x16xf32>
    %c12 = arith.constant 12 : index
    %c0_37 = arith.constant 0 : index
    %c0_38 = arith.constant 0 : index
    %60 = vector.load %arg2[%c12, %c0_37, %c0_38] : memref<17x10x8xf32, #tpu.memory_space<vmem>>, vector<1x10x8xf32>
    %61 = vector.shape_cast %60 : vector<1x10x8xf32> to vector<10x8xf32>
    %62 = vector.extract_strided_slice %0 {offsets = [0, 12], sizes = [8, 16], strides = [1, 1]} : vector<8x32xf32> to vector<8x16xf32>
    %cst_39 = arith.constant dense<0.000000e+00> : vector<10x16xf32>
    %63 = tpu.matmul %61, %62, %cst_39 {dimension_numbers = #tpu.dot_dimension_numbers<[1], [0], [0], [1], [0, 0, 1, 1], [], []>} : vector<10x8xf32>, vector<8x16xf32>, vector<10x16xf32> -> vector<10x16xf32>
    %64 = arith.addf %59, %63 : vector<10x16xf32>
    %c13 = arith.constant 13 : index
    %c0_40 = arith.constant 0 : index
    %c0_41 = arith.constant 0 : index
    %65 = vector.load %arg2[%c13, %c0_40, %c0_41] : memref<17x10x8xf32, #tpu.memory_space<vmem>>, vector<1x10x8xf32>
    %66 = vector.shape_cast %65 : vector<1x10x8xf32> to vector<10x8xf32>
    %67 = vector.extract_strided_slice %0 {offsets = [0, 13], sizes = [8, 16], strides = [1, 1]} : vector<8x32xf32> to vector<8x16xf32>
    %cst_42 = arith.constant dense<0.000000e+00> : vector<10x16xf32>
    %68 = tpu.matmul %66, %67, %cst_42 {dimension_numbers = #tpu.dot_dimension_numbers<[1], [0], [0], [1], [0, 0, 1, 1], [], []>} : vector<10x8xf32>, vector<8x16xf32>, vector<10x16xf32> -> vector<10x16xf32>
    %69 = arith.addf %64, %68 : vector<10x16xf32>
    %c14 = arith.constant 14 : index
    %c0_43 = arith.constant 0 : index
    %c0_44 = arith.constant 0 : index
    %70 = vector.load %arg2[%c14, %c0_43, %c0_44] : memref<17x10x8xf32, #tpu.memory_space<vmem>>, vector<1x10x8xf32>
    %71 = vector.shape_cast %70 : vector<1x10x8xf32> to vector<10x8xf32>
    %72 = vector.extract_strided_slice %0 {offsets = [0, 14], sizes = [8, 16], strides = [1, 1]} : vector<8x32xf32> to vector<8x16xf32>
    %cst_45 = arith.constant dense<0.000000e+00> : vector<10x16xf32>
    %73 = tpu.matmul %71, %72, %cst_45 {dimension_numbers = #tpu.dot_dimension_numbers<[1], [0], [0], [1], [0, 0, 1, 1], [], []>} : vector<10x8xf32>, vector<8x16xf32>, vector<10x16xf32> -> vector<10x16xf32>
    %74 = arith.addf %69, %73 : vector<10x16xf32>
    %c15 = arith.constant 15 : index
    %c0_46 = arith.constant 0 : index
    %c0_47 = arith.constant 0 : index
    %75 = vector.load %arg2[%c15, %c0_46, %c0_47] : memref<17x10x8xf32, #tpu.memory_space<vmem>>, vector<1x10x8xf32>
    %76 = vector.shape_cast %75 : vector<1x10x8xf32> to vector<10x8xf32>
    %77 = vector.extract_strided_slice %0 {offsets = [0, 15], sizes = [8, 16], strides = [1, 1]} : vector<8x32xf32> to vector<8x16xf32>
    %cst_48 = arith.constant dense<0.000000e+00> : vector<10x16xf32>
    %78 = tpu.matmul %76, %77, %cst_48 {dimension_numbers = #tpu.dot_dimension_numbers<[1], [0], [0], [1], [0, 0, 1, 1], [], []>} : vector<10x8xf32>, vector<8x16xf32>, vector<10x16xf32> -> vector<10x16xf32>
    %79 = arith.addf %74, %78 : vector<10x16xf32>
    %c16 = arith.constant 16 : index
    %c0_49 = arith.constant 0 : index
    %c0_50 = arith.constant 0 : index
    %80 = vector.load %arg2[%c16, %c0_49, %c0_50] : memref<17x10x8xf32, #tpu.memory_space<vmem>>, vector<1x10x8xf32>
    %81 = vector.shape_cast %80 : vector<1x10x8xf32> to vector<10x8xf32>
    %82 = vector.extract_strided_slice %0 {offsets = [0, 16], sizes = [8, 16], strides = [1, 1]} : vector<8x32xf32> to vector<8x16xf32>
    %cst_51 = arith.constant dense<0.000000e+00> : vector<10x16xf32>
    %83 = tpu.matmul %81, %82, %cst_51 {dimension_numbers = #tpu.dot_dimension_numbers<[1], [0], [0], [1], [0, 0, 1, 1], [], []>} : vector<10x8xf32>, vector<8x16xf32>, vector<10x16xf32> -> vector<10x16xf32>
    %84 = arith.addf %79, %83 : vector<10x16xf32>
    %c0_52 = arith.constant 0 : index
    %c0_53 = arith.constant 0 : index
    %85 = vector.load %arg3[%c0_52, %c0_53] : memref<10x1xf32, #tpu.memory_space<vmem>>, vector<10x1xf32>
    %86 = vector.broadcast %85 : vector<10x1xf32> to vector<10x16xf32>
    %87 = arith.addf %84, %86 : vector<10x16xf32>
    %cst_54 = arith.constant 0.000000e+00 : f32
    %88 = vector.broadcast %cst_54 : f32 to vector<10x16xf32>
    %89 = arith.maximumf %87, %88 : vector<10x16xf32>
    %cst_55 = arith.constant dense<0.000000e+00> : vector<10xf32>
    %90 = vector.multi_reduction <add>, %89, %cst_55 [1] : vector<10x16xf32> to vector<10xf32>
    %91 = vector.shape_cast %90 : vector<10xf32> to vector<10x1xf32>
    %cst_56 = arith.constant 6.250000e-02 : f32
    %92 = vector.broadcast %cst_56 : f32 to vector<10x1xf32>
    %93 = arith.mulf %91, %92 : vector<10x1xf32>
    %c0_57 = arith.constant 0 : index
    %c0_58 = arith.constant 0 : index
    %94 = vector.load %arg4[%c0_57, %c0_58] : memref<10x10xf32, #tpu.memory_space<vmem>>, vector<10x10xf32>
    %cst_59 = arith.constant dense<0.000000e+00> : vector<10x1xf32>
    %95 = tpu.matmul %94, %93, %cst_59 {dimension_numbers = #tpu.dot_dimension_numbers<[1], [0], [0], [1], [0, 0, 1, 1], [], []>} : vector<10x10xf32>, vector<10x1xf32>, vector<10x1xf32> -> vector<10x1xf32>
    %c0_60 = arith.constant 0 : index
    %c0_61 = arith.constant 0 : index
    %96 = vector.load %arg5[%c0_60, %c0_61] : memref<10x1xf32, #tpu.memory_space<vmem>>, vector<10x1xf32>
    %97 = arith.addf %95, %96 : vector<10x1xf32>
    %cst_62 = arith.constant 0.000000e+00 : f32
    %98 = vector.broadcast %cst_62 : f32 to vector<10x1xf32>
    %99 = arith.maximumf %97, %98 : vector<10x1xf32>
    %c0_63 = arith.constant 0 : index
    %c0_64 = arith.constant 0 : index
    %100 = vector.load %arg6[%c0_63, %c0_64] : memref<4x10xf32, #tpu.memory_space<vmem>>, vector<4x10xf32>
    %cst_65 = arith.constant dense<0.000000e+00> : vector<4x1xf32>
    %101 = tpu.matmul %100, %99, %cst_65 {dimension_numbers = #tpu.dot_dimension_numbers<[1], [0], [0], [1], [0, 0, 1, 1], [], []>} : vector<4x10xf32>, vector<10x1xf32>, vector<4x1xf32> -> vector<4x1xf32>
    %c0_66 = arith.constant 0 : index
    %c0_67 = arith.constant 0 : index
    %102 = vector.load %arg7[%c0_66, %c0_67] : memref<4x1xf32, #tpu.memory_space<vmem>>, vector<4x1xf32>
    %103 = arith.addf %101, %102 : vector<4x1xf32>
    %cst_68 = arith.constant 0.000000e+00 : f32
    %104 = vector.broadcast %cst_68 : f32 to vector<4x1xf32>
    %105 = arith.subf %104, %103 : vector<4x1xf32>
    %106 = math.exp %105 : vector<4x1xf32>
    %cst_69 = arith.constant 1.000000e+00 : f32
    %107 = vector.broadcast %cst_69 : f32 to vector<4x1xf32>
    %108 = arith.addf %107, %106 : vector<4x1xf32>
    %cst_70 = arith.constant 1.000000e+00 : f32
    %109 = vector.broadcast %cst_70 : f32 to vector<4x1xf32>
    %110 = arith.divf %109, %108 : vector<4x1xf32>
    %c0_71 = arith.constant 0 : index
    %c0_72 = arith.constant 0 : index
    %111 = vector.load %arg8[%c0_71, %c0_72] : memref<4x1xf32, #tpu.memory_space<vmem>>, vector<4x1xf32>
    tpu.vector_store %arg8[%c0_71, %c0_72], %110 {strides = array<i32>} : memref<4x1xf32, #tpu.memory_space<vmem>>, vector<4x1xf32>,
    return
  }
  func.func @transform_0(%arg0: i32) -> (i32, i32) {
    %c0_i32 = arith.constant 0 : i32
    %c0_i32_0 = arith.constant 0 : i32
    return %arg0, %c0_i32 : i32, i32
  }
  func.func @transform_1(%arg0: i32) -> (i32, i32, i32) {
    %c0_i32 = arith.constant 0 : i32
    %c0_i32_0 = arith.constant 0 : i32
    %c0_i32_1 = arith.constant 0 : i32
    %c0_i32_2 = arith.constant 0 : i32
    return %c0_i32, %c0_i32_0, %c0_i32_1 : i32, i32, i32
  }
  func.func @transform_2(%arg0: i32) -> (i32, i32) {
    %c0_i32 = arith.constant 0 : i32
    %c0_i32_0 = arith.constant 0 : i32
    %c0_i32_1 = arith.constant 0 : i32
    return %c0_i32, %c0_i32_0 : i32, i32
  }
  func.func @transform_3(%arg0: i32) -> (i32, i32) {
    %c0_i32 = arith.constant 0 : i32
    %c0_i32_0 = arith.constant 0 : i32
    %c0_i32_1 = arith.constant 0 : i32
    return %c0_i32, %c0_i32_0 : i32, i32
  }
  func.func @transform_4(%arg0: i32) -> (i32, i32) {
    %c0_i32 = arith.constant 0 : i32
    %c0_i32_0 = arith.constant 0 : i32
    %c0_i32_1 = arith.constant 0 : i32
    return %c0_i32, %c0_i32_0 : i32, i32
  }
  func.func @transform_5(%arg0: i32) -> (i32, i32) {
    %c0_i32 = arith.constant 0 : i32
    %c0_i32_0 = arith.constant 0 : i32
    %c0_i32_1 = arith.constant 0 : i32
    return %c0_i32, %c0_i32_0 : i32, i32
  }
  func.func @transform_6(%arg0: i32) -> (i32, i32) {
    %c0_i32 = arith.constant 0 : i32
    %c0_i32_0 = arith.constant 0 : i32
    %c0_i32_1 = arith.constant 0 : i32
    return %c0_i32, %c0_i32_0 : i32, i32
  }
  func.func @transform_7(%arg0: i32) -> (i32, i32) {
    %c0_i32 = arith.constant 0 : i32
    %c0_i32_0 = arith.constant 0 : i32
    return %arg0, %c0_i32 : i32, i32
  }
}

module attributes {stable_mosaic.version = 11 : i64} {
  func.func @_fused_cnn_kernel(%arg0: i32, %arg1: memref<8x32xf32, #tpu.memory_space<vmem>>, %arg2: memref<17x10x8xf32, #tpu.memory_space<vmem>>, %arg3: memref<10x1xf32, #tpu.memory_space<vmem>>, %arg4: memref<10x10xf32, #tpu.memory_space<vmem>>, %arg5: memref<10x1xf32, #tpu.memory_space<vmem>>, %arg6: memref<4x10xf32, #tpu.memory_space<vmem>>, %arg7: memref<4x1xf32, #tpu.memory_space<vmem>>, %arg8: memref<4x1xf32, #tpu.memory_space<vmem>>) attributes {dimension_semantics = [#tpu.dimension_semantics<parallel>], iteration_bounds = array<i64: 1>, scalar_prefetch = 0 : i64, scratch_operands = 0 : i64, tpu.core_type = #tpu.core_type<tc>, window_params = [{transform_indices = @transform_0, window_bounds = array<i64: 8, 32>}, {pipeline_mode = #tpu.pipeline_mode<synchronous>, transform_indices = @transform_1, window_bounds = array<i64: 17, 10, 8>}, {pipeline_mode = #tpu.pipeline_mode<synchronous>, transform_indices = @transform_2, window_bounds = array<i64: 10, 1>}, {pipeline_mode = #tpu.pipeline_mode<synchronous>, transform_indices = @transform_3, window_bounds = array<i64: 10, 10>}, {pipeline_mode = #tpu.pipeline_mode<synchronous>, transform_indices = @transform_4, window_bounds = array<i64: 10, 1>}, {pipeline_mode = #tpu.pipeline_mode<synchronous>, transform_indices = @transform_5, window_bounds = array<i64: 4, 10>}, {pipeline_mode = #tpu.pipeline_mode<synchronous>, transform_indices = @transform_6, window_bounds = array<i64: 4, 1>}, {transform_indices = @transform_7, window_bounds = array<i64: 4, 1>}]} {
    %c0 = arith.constant 0 : index
    %c0_0 = arith.constant 0 : index
    %0 = vector.load %arg1[%c0, %c0_0] : memref<8x32xf32, #tpu.memory_space<vmem>>, vector<8x32xf32>
    %c0_1 = arith.constant 0 : index
    %c0_2 = arith.constant 0 : index
    %c0_3 = arith.constant 0 : index
    %1 = vector.load %arg2[%c0_1, %c0_2, %c0_3] : memref<17x10x8xf32, #tpu.memory_space<vmem>>, vector<1x10x8xf32>
    %2 = vector.shape_cast %1 : vector<1x10x8xf32> to vector<10x8xf32>
    %3 = vector.extract_strided_slice %0 {offsets = [0, 0], sizes = [8, 16], strides = [1, 1]} : vector<8x32xf32> to vector<8x16xf32>
    %cst = arith.constant dense<0.000000e+00> : vector<10x16xf32>
    %4 = tpu.matmul %2, %3, %cst {dimension_numbers = #tpu.dot_dimension_numbers<[1], [0], [0], [1], [0, 0, 1, 1], [], []>} : vector<10x8xf32>, vector<8x16xf32>, vector<10x16xf32> -> vector<10x16xf32>
    %c1 = arith.constant 1 : index
    %c0_4 = arith.constant 0 : index
    %c0_5 = arith.constant 0 : index
    %5 = vector.load %arg2[%c1, %c0_4, %c0_5] : memref<17x10x8xf32, #tpu.memory_space<vmem>>, vector<1x10x8xf32>
    %6 = vector.shape_cast %5 : vector<1x10x8xf32> to vector<10x8xf32>
    %7 = vector.extract_strided_slice %0 {offsets = [0, 1], sizes = [8, 16], strides = [1, 1]} : vector<8x32xf32> to vector<8x16xf32>
    %cst_6 = arith.constant dense<0.000000e+00> : vector<10x16xf32>
    %8 = tpu.matmul %6, %7, %cst_6 {dimension_numbers = #tpu.dot_dimension_numbers<[1], [0], [0], [1], [0, 0, 1, 1], [], []>} : vector<10x8xf32>, vector<8x16xf32>, vector<10x16xf32> -> vector<10x16xf32>
    %9 = arith.addf %4, %8 : vector<10x16xf32>
    %c2 = arith.constant 2 : index
    %c0_7 = arith.constant 0 : index
    %c0_8 = arith.constant 0 : index
    %10 = vector.load %arg2[%c2, %c0_7, %c0_8] : memref<17x10x8xf32, #tpu.memory_space<vmem>>, vector<1x10x8xf32>
    %11 = vector.shape_cast %10 : vector<1x10x8xf32> to vector<10x8xf32>
    %12 = vector.extract_strided_slice %0 {offsets = [0, 2], sizes = [8, 16], strides = [1, 1]} : vector<8x32xf32> to vector<8x16xf32>
    %cst_9 = arith.constant dense<0.000000e+00> : vector<10x16xf32>
    %13 = tpu.matmul %11, %12, %cst_9 {dimension_numbers = #tpu.dot_dimension_numbers<[1], [0], [0], [1], [0, 0, 1, 1], [], []>} : vector<10x8xf32>, vector<8x16xf32>, vector<10x16xf32> -> vector<10x16xf32>
    %14 = arith.addf %9, %13 : vector<10x16xf32>
    %c3 = arith.constant 3 : index
    %c0_10 = arith.constant 0 : index
    %c0_11 = arith.constant 0 : index
    %15 = vector.load %arg2[%c3, %c0_10, %c0_11] : memref<17x10x8xf32, #tpu.memory_space<vmem>>, vector<1x10x8xf32>
    %16 = vector.shape_cast %15 : vector<1x10x8xf32> to vector<10x8xf32>
    %17 = vector.extract_strided_slice %0 {offsets = [0, 3], sizes = [8, 16], strides = [1, 1]} : vector<8x32xf32> to vector<8x16xf32>
    %cst_12 = arith.constant dense<0.000000e+00> : vector<10x16xf32>
    %18 = tpu.matmul %16, %17, %cst_12 {dimension_numbers = #tpu.dot_dimension_numbers<[1], [0], [0], [1], [0, 0, 1, 1], [], []>} : vector<10x8xf32>, vector<8x16xf32>, vector<10x16xf32> -> vector<10x16xf32>
    %19 = arith.addf %14, %18 : vector<10x16xf32>
    %c4 = arith.constant 4 : index
    %c0_13 = arith.constant 0 : index
    %c0_14 = arith.constant 0 : index
    %20 = vector.load %arg2[%c4, %c0_13, %c0_14] : memref<17x10x8xf32, #tpu.memory_space<vmem>>, vector<1x10x8xf32>
    %21 = vector.shape_cast %20 : vector<1x10x8xf32> to vector<10x8xf32>
    %22 = vector.extract_strided_slice %0 {offsets = [0, 4], sizes = [8, 16], strides = [1, 1]} : vector<8x32xf32> to vector<8x16xf32>
    %cst_15 = arith.constant dense<0.000000e+00> : vector<10x16xf32>
    %23 = tpu.matmul %21, %22, %cst_15 {dimension_numbers = #tpu.dot_dimension_numbers<[1], [0], [0], [1], [0, 0, 1, 1], [], []>} : vector<10x8xf32>, vector<8x16xf32>, vector<10x16xf32> -> vector<10x16xf32>
    %24 = arith.addf %19, %23 : vector<10x16xf32>
    %c5 = arith.constant 5 : index
    %c0_16 = arith.constant 0 : index
    %c0_17 = arith.constant 0 : index
    %25 = vector.load %arg2[%c5, %c0_16, %c0_17] : memref<17x10x8xf32, #tpu.memory_space<vmem>>, vector<1x10x8xf32>
    %26 = vector.shape_cast %25 : vector<1x10x8xf32> to vector<10x8xf32>
    %27 = vector.extract_strided_slice %0 {offsets = [0, 5], sizes = [8, 16], strides = [1, 1]} : vector<8x32xf32> to vector<8x16xf32>
    %cst_18 = arith.constant dense<0.000000e+00> : vector<10x16xf32>
    %28 = tpu.matmul %26, %27, %cst_18 {dimension_numbers = #tpu.dot_dimension_numbers<[1], [0], [0], [1], [0, 0, 1, 1], [], []>} : vector<10x8xf32>, vector<8x16xf32>, vector<10x16xf32> -> vector<10x16xf32>
    %29 = arith.addf %24, %28 : vector<10x16xf32>
    %c6 = arith.constant 6 : index
    %c0_19 = arith.constant 0 : index
    %c0_20 = arith.constant 0 : index
    %30 = vector.load %arg2[%c6, %c0_19, %c0_20] : memref<17x10x8xf32, #tpu.memory_space<vmem>>, vector<1x10x8xf32>
    %31 = vector.shape_cast %30 : vector<1x10x8xf32> to vector<10x8xf32>
    %32 = vector.extract_strided_slice %0 {offsets = [0, 6], sizes = [8, 16], strides = [1, 1]} : vector<8x32xf32> to vector<8x16xf32>
    %cst_21 = arith.constant dense<0.000000e+00> : vector<10x16xf32>
    %33 = tpu.matmul %31, %32, %cst_21 {dimension_numbers = #tpu.dot_dimension_numbers<[1], [0], [0], [1], [0, 0, 1, 1], [], []>} : vector<10x8xf32>, vector<8x16xf32>, vector<10x16xf32> -> vector<10x16xf32>
    %34 = arith.addf %29, %33 : vector<10x16xf32>
    %c7 = arith.constant 7 : index
    %c0_22 = arith.constant 0 : index
    %c0_23 = arith.constant 0 : index
    %35 = vector.load %arg2[%c7, %c0_22, %c0_23] : memref<17x10x8xf32, #tpu.memory_space<vmem>>, vector<1x10x8xf32>
    %36 = vector.shape_cast %35 : vector<1x10x8xf32> to vector<10x8xf32>
    %37 = vector.extract_strided_slice %0 {offsets = [0, 7], sizes = [8, 16], strides = [1, 1]} : vector<8x32xf32> to vector<8x16xf32>
    %cst_24 = arith.constant dense<0.000000e+00> : vector<10x16xf32>
    %38 = tpu.matmul %36, %37, %cst_24 {dimension_numbers = #tpu.dot_dimension_numbers<[1], [0], [0], [1], [0, 0, 1, 1], [], []>} : vector<10x8xf32>, vector<8x16xf32>, vector<10x16xf32> -> vector<10x16xf32>
    %39 = arith.addf %34, %38 : vector<10x16xf32>
    %c8 = arith.constant 8 : index
    %c0_25 = arith.constant 0 : index
    %c0_26 = arith.constant 0 : index
    %40 = vector.load %arg2[%c8, %c0_25, %c0_26] : memref<17x10x8xf32, #tpu.memory_space<vmem>>, vector<1x10x8xf32>
    %41 = vector.shape_cast %40 : vector<1x10x8xf32> to vector<10x8xf32>
    %42 = vector.extract_strided_slice %0 {offsets = [0, 8], sizes = [8, 16], strides = [1, 1]} : vector<8x32xf32> to vector<8x16xf32>
    %cst_27 = arith.constant dense<0.000000e+00> : vector<10x16xf32>
    %43 = tpu.matmul %41, %42, %cst_27 {dimension_numbers = #tpu.dot_dimension_numbers<[1], [0], [0], [1], [0, 0, 1, 1], [], []>} : vector<10x8xf32>, vector<8x16xf32>, vector<10x16xf32> -> vector<10x16xf32>
    %44 = arith.addf %39, %43 : vector<10x16xf32>
    %c9 = arith.constant 9 : index
    %c0_28 = arith.constant 0 : index
    %c0_29 = arith.constant 0 : index
    %45 = vector.load %arg2[%c9, %c0_28, %c0_29] : memref<17x10x8xf32, #tpu.memory_space<vmem>>, vector<1x10x8xf32>
    %46 = vector.shape_cast %45 : vector<1x10x8xf32> to vector<10x8xf32>
    %47 = vector.extract_strided_slice %0 {offsets = [0, 9], sizes = [8, 16], strides = [1, 1]} : vector<8x32xf32> to vector<8x16xf32>
    %cst_30 = arith.constant dense<0.000000e+00> : vector<10x16xf32>
    %48 = tpu.matmul %46, %47, %cst_30 {dimension_numbers = #tpu.dot_dimension_numbers<[1], [0], [0], [1], [0, 0, 1, 1], [], []>} : vector<10x8xf32>, vector<8x16xf32>, vector<10x16xf32> -> vector<10x16xf32>
    %49 = arith.addf %44, %48 : vector<10x16xf32>
    %c10 = arith.constant 10 : index
    %c0_31 = arith.constant 0 : index
    %c0_32 = arith.constant 0 : index
    %50 = vector.load %arg2[%c10, %c0_31, %c0_32] : memref<17x10x8xf32, #tpu.memory_space<vmem>>, vector<1x10x8xf32>
    %51 = vector.shape_cast %50 : vector<1x10x8xf32> to vector<10x8xf32>
    %52 = vector.extract_strided_slice %0 {offsets = [0, 10], sizes = [8, 16], strides = [1, 1]} : vector<8x32xf32> to vector<8x16xf32>
    %cst_33 = arith.constant dense<0.000000e+00> : vector<10x16xf32>
    %53 = tpu.matmul %51, %52, %cst_33 {dimension_numbers = #tpu.dot_dimension_numbers<[1], [0], [0], [1], [0, 0, 1, 1], [], []>} : vector<10x8xf32>, vector<8x16xf32>, vector<10x16xf32> -> vector<10x16xf32>
    %54 = arith.addf %49, %53 : vector<10x16xf32>
    %c11 = arith.constant 11 : index
    %c0_34 = arith.constant 0 : index
    %c0_35 = arith.constant 0 : index
    %55 = vector.load %arg2[%c11, %c0_34, %c0_35] : memref<17x10x8xf32, #tpu.memory_space<vmem>>, vector<1x10x8xf32>
    %56 = vector.shape_cast %55 : vector<1x10x8xf32> to vector<10x8xf32>
    %57 = vector.extract_strided_slice %0 {offsets = [0, 11], sizes = [8, 16], strides = [1, 1]} : vector<8x32xf32> to vector<8x16xf32>
    %cst_36 = arith.constant dense<0.000000e+00> : vector<10x16xf32>
    %58 = tpu.matmul %56, %57, %cst_36 {dimension_numbers = #tpu.dot_dimension_numbers<[1], [0], [0], [1], [0, 0, 1, 1], [], []>} : vector<10x8xf32>, vector<8x16xf32>, vector<10x16xf32> -> vector<10x16xf32>
    %59 = arith.addf %54, %58 : vector<10x16xf32>
    %c12 = arith.constant 12 : index
    %c0_37 = arith.constant 0 : index
    %c0_38 = arith.constant 0 : index
    %60 = vector.load %arg2[%c12, %c0_37, %c0_38] : memref<17x10x8xf32, #tpu.memory_space<vmem>>, vector<1x10x8xf32>
    %61 = vector.shape_cast %60 : vector<1x10x8xf32> to vector<10x8xf32>
    %62 = vector.extract_strided_slice %0 {offsets = [0, 12], sizes = [8, 16], strides = [1, 1]} : vector<8x32xf32> to vector<8x16xf32>
    %cst_39 = arith.constant dense<0.000000e+00> : vector<10x16xf32>
    %63 = tpu.matmul %61, %62, %cst_39 {dimension_numbers = #tpu.dot_dimension_numbers<[1], [0], [0], [1], [0, 0, 1, 1], [], []>} : vector<10x8xf32>, vector<8x16xf32>, vector<10x16xf32> -> vector<10x16xf32>
    %64 = arith.addf %59, %63 : vector<10x16xf32>
    %c13 = arith.constant 13 : index
    %c0_40 = arith.constant 0 : index
    %c0_41 = arith.constant 0 : index
    %65 = vector.load %arg2[%c13, %c0_40, %c0_41] : memref<17x10x8xf32, #tpu.memory_space<vmem>>, vector<1x10x8xf32>
    %66 = vector.shape_cast %65 : vector<1x10x8xf32> to vector<10x8xf32>
    %67 = vector.extract_strided_slice %0 {offsets = [0, 13], sizes = [8, 16], strides = [1, 1]} : vector<8x32xf32> to vector<8x16xf32>
    %cst_42 = arith.constant dense<0.000000e+00> : vector<10x16xf32>
    %68 = tpu.matmul %66, %67, %cst_42 {dimension_numbers = #tpu.dot_dimension_numbers<[1], [0], [0], [1], [0, 0, 1, 1], [], []>} : vector<10x8xf32>, vector<8x16xf32>, vector<10x16xf32> -> vector<10x16xf32>
    %69 = arith.addf %64, %68 : vector<10x16xf32>
    %c14 = arith.constant 14 : index
    %c0_43 = arith.constant 0 : index
    %c0_44 = arith.constant 0 : index
    %70 = vector.load %arg2[%c14, %c0_43, %c0_44] : memref<17x10x8xf32, #tpu.memory_space<vmem>>, vector<1x10x8xf32>
    %71 = vector.shape_cast %70 : vector<1x10x8xf32> to vector<10x8xf32>
    %72 = vector.extract_strided_slice %0 {offsets = [0, 14], sizes = [8, 16], strides = [1, 1]} : vector<8x32xf32> to vector<8x16xf32>
    %cst_45 = arith.constant dense<0.000000e+00> : vector<10x16xf32>
    %73 = tpu.matmul %71, %72, %cst_45 {dimension_numbers = #tpu.dot_dimension_numbers<[1], [0], [0], [1], [0, 0, 1, 1], [], []>} : vector<10x8xf32>, vector<8x16xf32>, vector<10x16xf32> -> vector<10x16xf32>
    %74 = arith.addf %69, %73 : vector<10x16xf32>
    %c15 = arith.constant 15 : index
    %c0_46 = arith.constant 0 : index
    %c0_47 = arith.constant 0 : index
    %75 = vector.load %arg2[%c15, %c0_46, %c0_47] : memref<17x10x8xf32, #tpu.memory_space<vmem>>, vector<1x10x8xf32>
    %76 = vector.shape_cast %75 : vector<1x10x8xf32> to vector<10x8xf32>
    %77 = vector.extract_strided_slice %0 {offsets = [0, 15], sizes = [8, 16], strides = [1, 1]} : vector<8x32xf32> to vector<8x16xf32>
    %cst_48 = arith.constant dense<0.000000e+00> : vector<10x16xf32>
    %78 = tpu.matmul %76, %77, %cst_48 {dimension_numbers = #tpu.dot_dimension_numbers<[1], [0], [0], [1], [0, 0, 1, 1], [], []>} : vector<10x8xf32>, vector<8x16xf32>, vector<10x16xf32> -> vector<10x16xf32>
    %79 = arith.addf %74, %78 : vector<10x16xf32>
    %c16 = arith.constant 16 : index
    %c0_49 = arith.constant 0 : index
    %c0_50 = arith.constant 0 : index
    %80 = vector.load %arg2[%c16, %c0_49, %c0_50] : memref<17x10x8xf32, #tpu.memory_space<vmem>>, vector<1x10x8xf32>
    %81 = vector.shape_cast %80 : vector<1x10x8xf32> to vector<10x8xf32>
    %82 = vector.extract_strided_slice %0 {offsets = [0, 16], sizes = [8, 16], strides = [1, 1]} : vector<8x32xf32> to vector<8x16xf32>
    %cst_51 = arith.constant dense<0.000000e+00> : vector<10x16xf32>
    %83 = tpu.matmul %81, %82, %cst_51 {dimension_numbers = #tpu.dot_dimension_numbers<[1], [0], [0], [1], [0, 0, 1, 1], [], []>} : vector<10x8xf32>, vector<8x16xf32>, vector<10x16xf32> -> vector<10x16xf32>
    %84 = arith.addf %79, %83 : vector<10x16xf32>
    %c0_52 = arith.constant 0 : index
    %c0_53 = arith.constant 0 : index
    %85 = vector.load %arg3[%c0_52, %c0_53] : memref<10x1xf32, #tpu.memory_space<vmem>>, vector<10x1xf32>
    %86 = vector.broadcast %85 : vector<10x1xf32> to vector<10x16xf32>
    %87 = arith.addf %84, %86 : vector<10x16xf32>
    %cst_54 = arith.constant 0.000000e+00 : f32
    %88 = vector.broadcast %cst_54 : f32 to vector<10x16xf32>
    %89 = arith.maximumf %87, %88 : vector<10x16xf32>
    %cst_55 = arith.constant dense<0.000000e+00> : vector<10xf32>
    %90 = vector.multi_reduction <add>, %89, %cst_55 [1] : vector<10x16xf32> to vector<10xf32>
    %91 = vector.shape_cast %90 : vector<10xf32> to vector<10x1xf32>
    %cst_56 = arith.constant 6.250000e-02 : f32
    %92 = vector.broadcast %cst_56 : f32 to vector<10x1xf32>
    %93 = arith.mulf %91, %92 : vector<10x1xf32>
    %c0_57 = arith.constant 0 : index
    %c0_58 = arith.constant 0 : index
    %94 = vector.load %arg4[%c0_57, %c0_58] : memref<10x10xf32, #tpu.memory_space<vmem>>, vector<10x10xf32>
    %cst_59 = arith.constant dense<0.000000e+00> : vector<10x1xf32>
    %95 = tpu.matmul %94, %93, %cst_59 {dimension_numbers = #tpu.dot_dimension_numbers<[1], [0], [0], [1], [0, 0, 1, 1], [], []>} : vector<10x10xf32>, vector<10x1xf32>, vector<10x1xf32> -> vector<10x1xf32>
    %c0_60 = arith.constant 0 : index
    %c0_61 = arith.constant 0 : index
    %96 = vector.load %arg5[%c0_60, %c0_61] : memref<10x1xf32, #tpu.memory_space<vmem>>, vector<10x1xf32>
    %97 = arith.addf %95, %96 : vector<10x1xf32>
    %cst_62 = arith.constant 0.000000e+00 : f32
    %98 = vector.broadcast %cst_62 : f32 to vector<10x1xf32>
    %99 = arith.maximumf %97, %98 : vector<10x1xf32>
    %c0_63 = arith.constant 0 : index
    %c0_64 = arith.constant 0 : index
    %100 = vector.load %arg6[%c0_63, %c0_64] : memref<4x10xf32, #tpu.memory_space<vmem>>, vector<4x10xf32>
    %cst_65 = arith.constant dense<0.000000e+00> : vector<4x1xf32>
    %101 = tpu.matmul %100, %99, %cst_65 {dimension_numbers = #tpu.dot_dimension_numbers<[1], [0], [0], [1], [0, 0, 1, 1], [], []>} : vector<4x10xf32>, vector<10x1xf32>, vector<4x1xf32> -> vector<4x1xf32>
    %c0_66 = arith.constant 0 : index
    %c0_67 = arith.constant 0 : index
    %102 = vector.load %arg7[%c0_66, %c0_67] : memref<4x1xf32, #tpu.memory_space<vmem>>, vector<4x1xf32>
    %103 = arith.addf %101, %102 : vector<4x1xf32>
    %cst_68 = arith.constant 0.000000e+00 : f32
    %104 = vector.broadcast %cst_68 : f32 to vector<4x1xf32>
    %105 = arith.subf %104, %103 : vector<4x1xf32>
    %106 = math.exp %105 : vector<4x1xf32>
    %cst_69 = arith.constant 1.000000e+00 : f32
    %107 = vector.broadcast %cst_69 : f32 to vector<4x1xf32>
    %108 = arith.addf %107, %106 : vector<4x1xf32>
    %cst_70 = arith.constant 1.000000e+00 : f32
    %109 = vector.broadcast %cst_70 : f32 to vector<4x1xf32>
    %110 = arith.divf %109, %108 : vector<4x1xf32>
    %c0_71 = arith.constant 0 : index
    %c0_72 = arith.constant 0 : index
    %111 = vector.load %arg8[%c0_71, %c0_72] : memref<4x1xf32, #tpu.memory_space<vmem>>, vector<4x1xf32>
    tpu.vector_store %arg8[%c0_71, %c0_72], %110 {strides = array<i32>} : memref<4x1xf32, #tpu.memory_space<vmem>>, vector<4x1xf32>,
    return
  }
  func.func @transform_0(%arg0: i32) -> (i32, i32) {
    %c0_i32 = arith.constant 0 : i32
    %c0_i32_0 = arith.constant 0 : i32
    return %arg0, %c0_i32 : i32, i32
  }
  func.func @transform_1(%arg0: i32) -> (i32, i32, i32) {
    %c0_i32 = arith.constant 0 : i32
    %c0_i32_0 = arith.constant 0 : i32
    %c0_i32_1 = arith.constant 0 : i32
    %c0_i32_2 = arith.constant 0 : i32
    return %c0_i32, %c0_i32_0, %c0_i32_1 : i32, i32, i32
  }
  func.func @transform_2(%arg0: i32) -> (i32, i32) {
    %c0_i32 = arith.constant 0 : i32
    %c0_i32_0 = arith.constant 0 : i32
    %c0_i32_1 = arith.constant 0 : i32
    return %c0_i32, %c0_i32_0 : i32, i32
  }
  func.func @transform_3(%arg0: i32) -> (i32, i32) {
    %c0_i32 = arith.constant 0 : i32
    %c0_i32_0 = arith.constant 0 : i32
    %c0_i32_1 = arith.constant 0 : i32
    return %c0_i32, %c0_i32_0 : i32, i32
  }
  func.func @transform_4(%arg0: i32) -> (i32, i32) {
    %c0_i32 = arith.constant 0 : i32
    %c0_i32_0 = arith.constant 0 : i32
    %c0_i32_1 = arith.constant 0 : i32
    return %c0_i32, %c0_i32_0 : i32, i32
  }
  func.func @transform_5(%arg0: i32) -> (i32, i32) {
    %c0_i32 = arith.constant 0 : i32
    %c0_i32_0 = arith.constant 0 : i32
    %c0_i32_1 = arith.constant 0 : i32
    return %c0_i32, %c0_i32_0 : i32, i32
  }
  func.func @transform_6(%arg0: i32) -> (i32, i32) {
    %c0_i32 = arith.constant 0 : i32
    %c0_i32_0 = arith.constant 0 : i32
    %c0_i32_1 = arith.constant 0 : i32
    return %c0_i32, %c0_i32_0 : i32, i32
  }
  func.func @transform_7(%arg0: i32) -> (i32, i32) {
    %c0_i32 = arith.constant 0 : i32
    %c0_i32_0 = arith.constant 0 : i32
    return %arg0, %c0_i32 : i32, i32
  }
}

</mosaic_0001>

<llo_original>
// kernel: tpu_custom_call.1
$region0: #{tpu_custom_call.1}
  #allocation0 [shape = 'u32[]', space=smem, size = 0x4, offset = 0x4, fixed_abs, tag = 'smem constant byte address 0x4 - core index']
  #allocation1 [shape = 'u32[144,128]{1,0:T(1,128)}', space=vmem, size = 0x12000, scoped, tag = 'internal scratch']
  %s0 = inlined_call_operand.vmem [shape: f32[8,32], index: 0, kind: input, shape index: {}]
  %s1 = inlined_call_operand.vmem [shape: f32[17,10,8], index: 1, kind: input, shape index: {}]
  %s2 = inlined_call_operand.vmem [shape: f32[10,1], index: 2, kind: input, shape index: {}]
  %s3 = inlined_call_operand.vmem [shape: f32[10,10], index: 3, kind: input, shape index: {}]
  %s4 = inlined_call_operand.vmem [shape: f32[10,1], index: 4, kind: input, shape index: {}]
  %s5 = inlined_call_operand.vmem [shape: f32[4,10], index: 5, kind: input, shape index: {}]
  %s6 = inlined_call_operand.vmem [shape: f32[4,1], index: 6, kind: input, shape index: {}]
  %s7 = inlined_call_operand.vmem [shape: f32[4,1], index: 7, kind: output, shape index: {}]
  %s8 = sld [smem:[#allocation0]]
  $region38: #{tpu_custom_call.1} parent=0
    _
  %s10 = ssub.s32 1, %s8
  %s11 = scalar_select 0, %s10, %s8
  // Predicated region
  $region2: #{tpu_custom_call.1} parent=0 // pred_check
    _
  $region3: #{tpu_custom_call.1} parent=0 // pred_check_branch
    %13 = sbr.rel (0) target = $region5
  $region4: #{tpu_custom_call.1} parent=0 // pred_region
    _
  $region5: #{tpu_custom_call.1} parent=0 // pred_fallthru
    _
  // Predicated region
  $region6: #{tpu_custom_call.1} parent=0 // pred_check
    _
  $region7: #{tpu_custom_call.1} parent=0 // pred_check_branch
    %15 = sbr.rel (0) target = $region9
  $region8: #{tpu_custom_call.1} parent=0 // pred_region
    _
  $region9: #{tpu_custom_call.1} parent=0 // pred_fallthru
    _
  // Predicated region
  $region10: #{tpu_custom_call.1} parent=0 // pred_check
    _
  $region11: #{tpu_custom_call.1} parent=0 // pred_check_branch
    %17 = sbr.rel (0) target = $region13
  $region12: #{tpu_custom_call.1} parent=0 // pred_region
    _
  $region13: #{tpu_custom_call.1} parent=0 // pred_fallthru
    _
  // Predicated region
  $region14: #{tpu_custom_call.1} parent=0 // pred_check
    _
  $region15: #{tpu_custom_call.1} parent=0 // pred_check_branch
    %19 = sbr.rel (0) target = $region17
  $region16: #{tpu_custom_call.1} parent=0 // pred_region
    _
  $region17: #{tpu_custom_call.1} parent=0 // pred_fallthru
    _
  // Predicated region
  $region18: #{tpu_custom_call.1} parent=0 // pred_check
    _
  $region19: #{tpu_custom_call.1} parent=0 // pred_check_branch
    %21 = sbr.rel (0) target = $region21
  $region20: #{tpu_custom_call.1} parent=0 // pred_region
    _
  $region21: #{tpu_custom_call.1} parent=0 // pred_fallthru
    _
  // Predicated region
  $region22: #{tpu_custom_call.1} parent=0 // pred_check
    _
  $region23: #{tpu_custom_call.1} parent=0 // pred_check_branch
    %23 = sbr.rel (0) target = $region25
  $region24: #{tpu_custom_call.1} parent=0 // pred_region
    _
  $region25: #{tpu_custom_call.1} parent=0 // pred_fallthru
    _
  // Predicated region
  $region26: #{tpu_custom_call.1} parent=0 // pred_check
    _
  $region27: #{tpu_custom_call.1} parent=0 // pred_check_branch
    %25 = sbr.rel (0) target = $region29
  $region28: #{tpu_custom_call.1} parent=0 // pred_region
    _
  $region29: #{tpu_custom_call.1} parent=0 // pred_fallthru
    _
  %v26 = vld [vmem:[%s0] sm:$0xff]
  %v27 = vld [vmem:[%s1] sm:$0xff]
  %v28 = vld [vmem:[%s1 + $0x8] sm:$0x3]
  %s29 = scalar_lea.vmem %s1, 16
  %v30 = vld [vmem:[%s29] sm:$0xff]
  %v31 = vld [vmem:[%s29 + $0x8] sm:$0x3]
  %33 = vrot.lane.b32.xlu0 %v26, 127
  %v34 = vpop.permute.xlu0 %33
  %vm36 = vcmask 64512
  %v38 = vsel %vm36, %v30, 0
  %v41 = vsel %vm36, %v31, 0
  %43 = vmatprep.subr.mxu0 0.0
  %44 = vmatpush1.msra.mxu0 0.0
  %45 = vmatprep.subr.mxu0 0.0
  %46 = vmatpush1.msra.mxu0 0.0
  %47 = vmatprep.subr.mxu0 0.0
  %48 = vmatpush1.msra.mxu0 0.0
  %49 = vmatprep.subr.mxu0 0.0
  %50 = vmatpush1.msra.mxu0 0.0
  %51 = vmatprep.subr.mxu0 0.0
  %52 = vmatpush1.msra.mxu0 0.0
  %53 = vmatprep.subr.mxu0 0.0
  %54 = vmatpush1.msra.mxu0 0.0
  %55 = vmatprep.subr.mxu0 0.0
  %56 = vmatpush1.msra.mxu0 0.0
  %57 = vmatprep.subr.mxu0 0.0
  %58 = vmatpush1.msra.mxu0 0.0
  %59 = vmatprep.subr.mxu0 0.0
  %60 = vmatpush1.msra.mxu0 0.0
  %61 = vmatprep.subr.mxu0 0.0
  %62 = vmatpush1.msra.mxu0 0.0
  %63 = vmatprep.subr.mxu0 0.0
  %64 = vmatpush1.msra.mxu0 0.0
  %65 = vmatprep.subr.mxu0 0.0
  %66 = vmatpush1.msra.mxu0 0.0
  %67 = vmatprep.subr.mxu0 0.0
  %68 = vmatpush1.msra.mxu0 0.0
  %69 = vmatprep.subr.mxu0 0.0
  %70 = vmatpush1.msra.mxu0 0.0
  %71 = vmatprep.subr.mxu0 0.0
  %72 = vmatpush1.msra.mxu0 0.0
  %73 = vmatprep.subr.mxu0 0.0
  %74 = vmatpush1.msra.mxu0 %v34
  %75 = vmatprep.subr.mxu0 0.0
  %76 = vmatpush2.msra.mxu0 0.0
  %77 = vmatprep.subr.mxu0 0.0
  %78 = vmatpush2.msra.mxu0 0.0
  %79 = vmatprep.subr.mxu0 0.0
  %80 = vmatpush2.msra.mxu0 0.0
  %81 = vmatprep.subr.mxu0 0.0
  %82 = vmatpush2.msra.mxu0 0.0
  %83 = vmatprep.subr.mxu0 0.0
  %84 = vmatpush2.msra.mxu0 0.0
  %85 = vmatprep.subr.mxu0 0.0
  %86 = vmatpush2.msra.mxu0 0.0
  %87 = vmatprep.subr.mxu0 0.0
  %88 = vmatpush2.msra.mxu0 0.0
  %89 = vmatprep.subr.mxu0 0.0
  %90 = vmatpush2.msra.mxu0 0.0
  %91 = vmatprep.subr.mxu0 0.0
  %92 = vmatpush2.msra.mxu0 0.0
  %93 = vmatprep.subr.mxu0 0.0
  %94 = vmatpush2.msra.mxu0 0.0
  %95 = vmatprep.subr.mxu0 0.0
  %96 = vmatpush2.msra.mxu0 0.0
  %97 = vmatprep.subr.mxu0 0.0
  %98 = vmatpush2.msra.mxu0 0.0
  %99 = vmatprep.subr.mxu0 0.0
  %100 = vmatpush2.msra.mxu0 0.0
  %101 = vmatprep.subr.mxu0 0.0
  %102 = vmatpush2.msra.mxu0 0.0
  %103 = vmatprep.subr.mxu0 0.0
  %104 = vmatpush2.msra.mxu0 0.0
  %105 = vmatprep.subr.mxu0 0.0
  %106 = vmatpush2.msra.mxu0 0.0
  %107 = vmatprep.mubr.f32.mxu0 0.0
  %108 = vmatmul.mubr.f32.gmra.mxu0 %v38
  %v109 = vpop.f32.mrf.mxu0
  %v110 = vadd.f32 0.0, %v109
  %v111 = vpop.f32.mrf.mxu0
  %112 = vmatprep.mubr.f32.mxu0 0.0
  %113 = vmatmul.mubr.f32.gmra.mxu0 %v41
  %v114 = vpop.f32.mrf.mxu0
  %v115 = vadd.f32 0.0, %v114
  %v116 = vpop.f32.mrf.mxu0
  %117 = vdwg.mxu0
  %v119 = vsel %vm36, %v27, 0
  %v122 = vsel %vm36, %v28, 0
  %124 = vmatprep.subr.mxu0 0.0
  %125 = vmatpush1.msra.mxu0 0.0
  %126 = vmatprep.subr.mxu0 0.0
  %127 = vmatpush1.msra.mxu0 0.0
  %128 = vmatprep.subr.mxu0 0.0
  %129 = vmatpush1.msra.mxu0 0.0
  %130 = vmatprep.subr.mxu0 0.0
  %131 = vmatpush1.msra.mxu0 0.0
  %132 = vmatprep.subr.mxu0 0.0
  %133 = vmatpush1.msra.mxu0 0.0
  %134 = vmatprep.subr.mxu0 0.0
  %135 = vmatpush1.msra.mxu0 0.0
  %136 = vmatprep.subr.mxu0 0.0
  %137 = vmatpush1.msra.mxu0 0.0
  %138 = vmatprep.subr.mxu0 0.0
  %139 = vmatpush1.msra.mxu0 0.0
  %140 = vmatprep.subr.mxu0 0.0
  %141 = vmatpush1.msra.mxu0 0.0
  %142 = vmatprep.subr.mxu0 0.0
  %143 = vmatpush1.msra.mxu0 0.0
  %144 = vmatprep.subr.mxu0 0.0
  %145 = vmatpush1.msra.mxu0 0.0
  %146 = vmatprep.subr.mxu0 0.0
  %147 = vmatpush1.msra.mxu0 0.0
  %148 = vmatprep.subr.mxu0 0.0
  %149 = vmatpush1.msra.mxu0 0.0
  %150 = vmatprep.subr.mxu0 0.0
  %151 = vmatpush1.msra.mxu0 0.0
  %152 = vmatprep.subr.mxu0 0.0
  %153 = vmatpush1.msra.mxu0 0.0
  %154 = vmatprep.subr.mxu0 0.0
  %155 = vmatpush1.msra.mxu0 %v26
  %156 = vmatprep.subr.mxu0 0.0
  %157 = vmatpush2.msra.mxu0 0.0
  %158 = vmatprep.subr.mxu0 0.0
  %159 = vmatpush2.msra.mxu0 0.0
  %160 = vmatprep.subr.mxu0 0.0
  %161 = vmatpush2.msra.mxu0 0.0
  %162 = vmatprep.subr.mxu0 0.0
  %163 = vmatpush2.msra.mxu0 0.0
  %164 = vmatprep.subr.mxu0 0.0
  %165 = vmatpush2.msra.mxu0 0.0
  %166 = vmatprep.subr.mxu0 0.0
  %167 = vmatpush2.msra.mxu0 0.0
  %168 = vmatprep.subr.mxu0 0.0
  %169 = vmatpush2.msra.mxu0 0.0
  %170 = vmatprep.subr.mxu0 0.0
  %171 = vmatpush2.msra.mxu0 0.0
  %172 = vmatprep.subr.mxu0 0.0
  %173 = vmatpush2.msra.mxu0 0.0
  %174 = vmatprep.subr.mxu0 0.0
  %175 = vmatpush2.msra.mxu0 0.0
  %176 = vmatprep.subr.mxu0 0.0
  %177 = vmatpush2.msra.mxu0 0.0
  %178 = vmatprep.subr.mxu0 0.0
  %179 = vmatpush2.msra.mxu0 0.0
  %180 = vmatprep.subr.mxu0 0.0
  %181 = vmatpush2.msra.mxu0 0.0
  %182 = vmatprep.subr.mxu0 0.0
  %183 = vmatpush2.msra.mxu0 0.0
  %184 = vmatprep.subr.mxu0 0.0
  %185 = vmatpush2.msra.mxu0 0.0
  %186 = vmatprep.subr.mxu0 0.0
  %187 = vmatpush2.msra.mxu0 0.0
  %188 = vmatprep.mubr.f32.mxu0 0.0
  %189 = vmatmul.mubr.f32.gmra.mxu0 %v119
  %v190 = vpop.f32.mrf.mxu0
  %v191 = vadd.f32 %v110, %v190
  %v192 = vpop.f32.mrf.mxu0
  %193 = vmatprep.mubr.f32.mxu0 0.0
  %194 = vmatmul.mubr.f32.gmra.mxu0 %v122
  %v195 = vpop.f32.mrf.mxu0
  %v196 = vadd.f32 %v115, %v195
  %v197 = vpop.f32.mrf.mxu0
  %198 = vdwg.mxu0
  %s199 = scalar_lea.vmem %s1, 32
  %v200 = vld [vmem:[%s199] sm:$0xff]
  %v201 = vld [vmem:[%s199 + $0x8] sm:$0x3]
  %202 = vrot.lane.b32.xlu0 %v26, 126
  %v203 = vpop.permute.xlu0 %202
  %v206 = vsel %vm36, %v200, 0
  %v209 = vsel %vm36, %v201, 0
  %211 = vmatprep.subr.mxu0 0.0
  %212 = vmatpush1.msra.mxu0 0.0
  %213 = vmatprep.subr.mxu0 0.0
  %214 = vmatpush1.msra.mxu0 0.0
  %215 = vmatprep.subr.mxu0 0.0
  %216 = vmatpush1.msra.mxu0 0.0
  %217 = vmatprep.subr.mxu0 0.0
  %218 = vmatpush1.msra.mxu0 0.0
  %219 = vmatprep.subr.mxu0 0.0
  %220 = vmatpush1.msra.mxu0 0.0
  %221 = vmatprep.subr.mxu0 0.0
  %222 = vmatpush1.msra.mxu0 0.0
  %223 = vmatprep.subr.mxu0 0.0
  %224 = vmatpush1.msra.mxu0 0.0
  %225 = vmatprep.subr.mxu0 0.0
  %226 = vmatpush1.msra.mxu0 0.0
  %227 = vmatprep.subr.mxu0 0.0
  %228 = vmatpush1.msra.mxu0 0.0
  %229 = vmatprep.subr.mxu0 0.0
  %230 = vmatpush1.msra.mxu0 0.0
  %231 = vmatprep.subr.mxu0 0.0
  %232 = vmatpush1.msra.mxu0 0.0
  %233 = vmatprep.subr.mxu0 0.0
  %234 = vmatpush1.msra.mxu0 0.0
  %235 = vmatprep.subr.mxu0 0.0
  %236 = vmatpush1.msra.mxu0 0.0
  %237 = vmatprep.subr.mxu0 0.0
  %238 = vmatpush1.msra.mxu0 0.0
  %239 = vmatprep.subr.mxu0 0.0
  %240 = vmatpush1.msra.mxu0 0.0
  %241 = vmatprep.subr.mxu0 0.0
  %242 = vmatpush1.msra.mxu0 %v203
  %243 = vmatprep.subr.mxu0 0.0
  %244 = vmatpush2.msra.mxu0 0.0
  %245 = vmatprep.subr.mxu0 0.0
  %246 = vmatpush2.msra.mxu0 0.0
  %247 = vmatprep.subr.mxu0 0.0
  %248 = vmatpush2.msra.mxu0 0.0
  %249 = vmatprep.subr.mxu0 0.0
  %250 = vmatpush2.msra.mxu0 0.0
  %251 = vmatprep.subr.mxu0 0.0
  %252 = vmatpush2.msra.mxu0 0.0
  %253 = vmatprep.subr.mxu0 0.0
  %254 = vmatpush2.msra.mxu0 0.0
  %255 = vmatprep.subr.mxu0 0.0
  %256 = vmatpush2.msra.mxu0 0.0
  %257 = vmatprep.subr.mxu0 0.0
  %258 = vmatpush2.msra.mxu0 0.0
  %259 = vmatprep.subr.mxu0 0.0
  %260 = vmatpush2.msra.mxu0 0.0
  %261 = vmatprep.subr.mxu0 0.0
  %262 = vmatpush2.msra.mxu0 0.0
  %263 = vmatprep.subr.mxu0 0.0
  %264 = vmatpush2.msra.mxu0 0.0
  %265 = vmatprep.subr.mxu0 0.0
  %266 = vmatpush2.msra.mxu0 0.0
  %267 = vmatprep.subr.mxu0 0.0
  %268 = vmatpush2.msra.mxu0 0.0
  %269 = vmatprep.subr.mxu0 0.0
  %270 = vmatpush2.msra.mxu0 0.0
  %271 = vmatprep.subr.mxu0 0.0
  %272 = vmatpush2.msra.mxu0 0.0
  %273 = vmatprep.subr.mxu0 0.0
  %274 = vmatpush2.msra.mxu0 0.0
  %275 = vmatprep.mubr.f32.mxu0 0.0
  %276 = vmatmul.mubr.f32.gmra.mxu0 %v206
  %v277 = vpop.f32.mrf.mxu0
  %v278 = vadd.f32 0.0, %v277
  %v279 = vpop.f32.mrf.mxu0
  %280 = vmatprep.mubr.f32.mxu0 0.0
  %281 = vmatmul.mubr.f32.gmra.mxu0 %v209
  %v282 = vpop.f32.mrf.mxu0
  %v283 = vadd.f32 0.0, %v282
  %v284 = vpop.f32.mrf.mxu0
  %285 = vdwg.mxu0
  %v286 = vadd.f32 %v191, %v278
  %v287 = vadd.f32 %v196, %v283
  %s288 = scalar_lea.vmem %s1, 48
  %v289 = vld [vmem:[%s288] sm:$0xff]
  %v290 = vld [vmem:[%s288 + $0x8] sm:$0x3]
  %291 = vrot.lane.b32.xlu0 %v26, 125
  %v292 = vpop.permute.xlu0 %291
  %v295 = vsel %vm36, %v289, 0
  %v298 = vsel %vm36, %v290, 0
  %300 = vmatprep.subr.mxu0 0.0
  %301 = vmatpush1.msra.mxu0 0.0
  %302 = vmatprep.subr.mxu0 0.0
  %303 = vmatpush1.msra.mxu0 0.0
  %304 = vmatprep.subr.mxu0 0.0
  %305 = vmatpush1.msra.mxu0 0.0
  %306 = vmatprep.subr.mxu0 0.0
  %307 = vmatpush1.msra.mxu0 0.0
  %308 = vmatprep.subr.mxu0 0.0
  %309 = vmatpush1.msra.mxu0 0.0
  %310 = vmatprep.subr.mxu0 0.0
  %311 = vmatpush1.msra.mxu0 0.0
  %312 = vmatprep.subr.mxu0 0.0
  %313 = vmatpush1.msra.mxu0 0.0
  %314 = vmatprep.subr.mxu0 0.0
  %315 = vmatpush1.msra.mxu0 0.0
  %316 = vmatprep.subr.mxu0 0.0
  %317 = vmatpush1.msra.mxu0 0.0
  %318 = vmatprep.subr.mxu0 0.0
  %319 = vmatpush1.msra.mxu0 0.0
  %320 = vmatprep.subr.mxu0 0.0
  %321 = vmatpush1.msra.mxu0 0.0
  %322 = vmatprep.subr.mxu0 0.0
  %323 = vmatpush1.msra.mxu0 0.0
  %324 = vmatprep.subr.mxu0 0.0
  %325 = vmatpush1.msra.mxu0 0.0
  %326 = vmatprep.subr.mxu0 0.0
  %327 = vmatpush1.msra.mxu0 0.0
  %328 = vmatprep.subr.mxu0 0.0
  %329 = vmatpush1.msra.mxu0 0.0
  %330 = vmatprep.subr.mxu0 0.0
  %331 = vmatpush1.msra.mxu0 %v292
  %332 = vmatprep.subr.mxu0 0.0
  %333 = vmatpush2.msra.mxu0 0.0
  %334 = vmatprep.subr.mxu0 0.0
  %335 = vmatpush2.msra.mxu0 0.0
  %336 = vmatprep.subr.mxu0 0.0
  %337 = vmatpush2.msra.mxu0 0.0
  %338 = vmatprep.subr.mxu0 0.0
  %339 = vmatpush2.msra.mxu0 0.0
  %340 = vmatprep.subr.mxu0 0.0
  %341 = vmatpush2.msra.mxu0 0.0
  %342 = vmatprep.subr.mxu0 0.0
  %343 = vmatpush2.msra.mxu0 0.0
  %344 = vmatprep.subr.mxu0 0.0
  %345 = vmatpush2.msra.mxu0 0.0
  %346 = vmatprep.subr.mxu0 0.0
  %347 = vmatpush2.msra.mxu0 0.0
  %348 = vmatprep.subr.mxu0 0.0
  %349 = vmatpush2.msra.mxu0 0.0
  %350 = vmatprep.subr.mxu0 0.0
  %351 = vmatpush2.msra.mxu0 0.0
  %352 = vmatprep.subr.mxu0 0.0
  %353 = vmatpush2.msra.mxu0 0.0
  %354 = vmatprep.subr.mxu0 0.0
  %355 = vmatpush2.msra.mxu0 0.0
  %356 = vmatprep.subr.mxu0 0.0
  %357 = vmatpush2.msra.mxu0 0.0
  %358 = vmatprep.subr.mxu0 0.0
  %359 = vmatpush2.msra.mxu0 0.0
  %360 = vmatprep.subr.mxu0 0.0
  %361 = vmatpush2.msra.mxu0 0.0
  %362 = vmatprep.subr.mxu0 0.0
  %363 = vmatpush2.msra.mxu0 0.0
  %364 = vmatprep.mubr.f32.mxu0 0.0
  %365 = vmatmul.mubr.f32.gmra.mxu0 %v295
  %v366 = vpop.f32.mrf.mxu0
  %v367 = vadd.f32 0.0, %v366
  %v368 = vpop.f32.mrf.mxu0
  %369 = vmatprep.mubr.f32.mxu0 0.0
  %370 = vmatmul.mubr.f32.gmra.mxu0 %v298
  %v371 = vpop.f32.mrf.mxu0
  %v372 = vadd.f32 0.0, %v371
  %v373 = vpop.f32.mrf.mxu0
  %374 = vdwg.mxu0
  %v375 = vadd.f32 %v286, %v367
  %v376 = vadd.f32 %v287, %v372
  %s377 = scalar_lea.vmem %s1, 64
  %v378 = vld [vmem:[%s377] sm:$0xff]
  %v379 = vld [vmem:[%s377 + $0x8] sm:$0x3]
  %380 = vrot.lane.b32.xlu0 %v26, 124
  %v381 = vpop.permute.xlu0 %380
  %v384 = vsel %vm36, %v378, 0
  %v387 = vsel %vm36, %v379, 0
  %389 = vmatprep.subr.mxu0 0.0
  %390 = vmatpush1.msra.mxu0 0.0
  %391 = vmatprep.subr.mxu0 0.0
  %392 = vmatpush1.msra.mxu0 0.0
  %393 = vmatprep.subr.mxu0 0.0
  %394 = vmatpush1.msra.mxu0 0.0
  %395 = vmatprep.subr.mxu0 0.0
  %396 = vmatpush1.msra.mxu0 0.0
  %397 = vmatprep.subr.mxu0 0.0
  %398 = vmatpush1.msra.mxu0 0.0
  %399 = vmatprep.subr.mxu0 0.0
  %400 = vmatpush1.msra.mxu0 0.0
  %401 = vmatprep.subr.mxu0 0.0
  %402 = vmatpush1.msra.mxu0 0.0
  %403 = vmatprep.subr.mxu0 0.0
  %404 = vmatpush1.msra.mxu0 0.0
  %405 = vmatprep.subr.mxu0 0.0
  %406 = vmatpush1.msra.mxu0 0.0
  %407 = vmatprep.subr.mxu0 0.0
  %408 = vmatpush1.msra.mxu0 0.0
  %409 = vmatprep.subr.mxu0 0.0
  %410 = vmatpush1.msra.mxu0 0.0
  %411 = vmatprep.subr.mxu0 0.0
  %412 = vmatpush1.msra.mxu0 0.0
  %413 = vmatprep.subr.mxu0 0.0
  %414 = vmatpush1.msra.mxu0 0.0
  %415 = vmatprep.subr.mxu0 0.0
  %416 = vmatpush1.msra.mxu0 0.0
  %417 = vmatprep.subr.mxu0 0.0
  %418 = vmatpush1.msra.mxu0 0.0
  %419 = vmatprep.subr.mxu0 0.0
  %420 = vmatpush1.msra.mxu0 %v381
  %421 = vmatprep.subr.mxu0 0.0
  %422 = vmatpush2.msra.mxu0 0.0
  %423 = vmatprep.subr.mxu0 0.0
  %424 = vmatpush2.msra.mxu0 0.0
  %425 = vmatprep.subr.mxu0 0.0
  %426 = vmatpush2.msra.mxu0 0.0
  %427 = vmatprep.subr.mxu0 0.0
  %428 = vmatpush2.msra.mxu0 0.0
  %429 = vmatprep.subr.mxu0 0.0
  %430 = vmatpush2.msra.mxu0 0.0
  %431 = vmatprep.subr.mxu0 0.0
  %432 = vmatpush2.msra.mxu0 0.0
  %433 = vmatprep.subr.mxu0 0.0
  %434 = vmatpush2.msra.mxu0 0.0
  %435 = vmatprep.subr.mxu0 0.0
  %436 = vmatpush2.msra.mxu0 0.0
  %437 = vmatprep.subr.mxu0 0.0
  %438 = vmatpush2.msra.mxu0 0.0
  %439 = vmatprep.subr.mxu0 0.0
  %440 = vmatpush2.msra.mxu0 0.0
  %441 = vmatprep.subr.mxu0 0.0
  %442 = vmatpush2.msra.mxu0 0.0
  %443 = vmatprep.subr.mxu0 0.0
  %444 = vmatpush2.msra.mxu0 0.0
  %445 = vmatprep.subr.mxu0 0.0
  %446 = vmatpush2.msra.mxu0 0.0
  %447 = vmatprep.subr.mxu0 0.0
  %448 = vmatpush2.msra.mxu0 0.0
  %449 = vmatprep.subr.mxu0 0.0
  %450 = vmatpush2.msra.mxu0 0.0
  %451 = vmatprep.subr.mxu0 0.0
  %452 = vmatpush2.msra.mxu0 0.0
  %453 = vmatprep.mubr.f32.mxu0 0.0
  %454 = vmatmul.mubr.f32.gmra.mxu0 %v384
  %v455 = vpop.f32.mrf.mxu0
  %v456 = vadd.f32 0.0, %v455
  %v457 = vpop.f32.mrf.mxu0
  %458 = vmatprep.mubr.f32.mxu0 0.0
  %459 = vmatmul.mubr.f32.gmra.mxu0 %v387
  %v460 = vpop.f32.mrf.mxu0
  %v461 = vadd.f32 0.0, %v460
  %v462 = vpop.f32.mrf.mxu0
  %463 = vdwg.mxu0
  %v464 = vadd.f32 %v375, %v456
  %v465 = vadd.f32 %v376, %v461
  %s466 = scalar_lea.vmem %s1, 80
  %v467 = vld [vmem:[%s466] sm:$0xff]
  %v468 = vld [vmem:[%s466 + $0x8] sm:$0x3]
  %469 = vrot.lane.b32.xlu0 %v26, 123
  %v470 = vpop.permute.xlu0 %469
  %v473 = vsel %vm36, %v467, 0
  %v476 = vsel %vm36, %v468, 0
  %478 = vmatprep.subr.mxu0 0.0
  %479 = vmatpush1.msra.mxu0 0.0
  %480 = vmatprep.subr.mxu0 0.0
  %481 = vmatpush1.msra.mxu0 0.0
  %482 = vmatprep.subr.mxu0 0.0
  %483 = vmatpush1.msra.mxu0 0.0
  %484 = vmatprep.subr.mxu0 0.0
  %485 = vmatpush1.msra.mxu0 0.0
  %486 = vmatprep.subr.mxu0 0.0
  %487 = vmatpush1.msra.mxu0 0.0
  %488 = vmatprep.subr.mxu0 0.0
  %489 = vmatpush1.msra.mxu0 0.0
  %490 = vmatprep.subr.mxu0 0.0
  %491 = vmatpush1.msra.mxu0 0.0
  %492 = vmatprep.subr.mxu0 0.0
  %493 = vmatpush1.msra.mxu0 0.0
  %494 = vmatprep.subr.mxu0 0.0
  %495 = vmatpush1.msra.mxu0 0.0
  %496 = vmatprep.subr.mxu0 0.0
  %497 = vmatpush1.msra.mxu0 0.0
  %498 = vmatprep.subr.mxu0 0.0
  %499 = vmatpush1.msra.mxu0 0.0
  %500 = vmatprep.subr.mxu0 0.0
  %501 = vmatpush1.msra.mxu0 0.0
  %502 = vmatprep.subr.mxu0 0.0
  %503 = vmatpush1.msra.mxu0 0.0
  %504 = vmatprep.subr.mxu0 0.0
  %505 = vmatpush1.msra.mxu0 0.0
  %506 = vmatprep.subr.mxu0 0.0
  %507 = vmatpush1.msra.mxu0 0.0
  %508 = vmatprep.subr.mxu0 0.0
  %509 = vmatpush1.msra.mxu0 %v470
  %510 = vmatprep.subr.mxu0 0.0
  %511 = vmatpush2.msra.mxu0 0.0
  %512 = vmatprep.subr.mxu0 0.0
  %513 = vmatpush2.msra.mxu0 0.0
  %514 = vmatprep.subr.mxu0 0.0
  %515 = vmatpush2.msra.mxu0 0.0
  %516 = vmatprep.subr.mxu0 0.0
  %517 = vmatpush2.msra.mxu0 0.0
  %518 = vmatprep.subr.mxu0 0.0
  %519 = vmatpush2.msra.mxu0 0.0
  %520 = vmatprep.subr.mxu0 0.0
  %521 = vmatpush2.msra.mxu0 0.0
  %522 = vmatprep.subr.mxu0 0.0
  %523 = vmatpush2.msra.mxu0 0.0
  %524 = vmatprep.subr.mxu0 0.0
  %525 = vmatpush2.msra.mxu0 0.0
  %526 = vmatprep.subr.mxu0 0.0
  %527 = vmatpush2.msra.mxu0 0.0
  %528 = vmatprep.subr.mxu0 0.0
  %529 = vmatpush2.msra.mxu0 0.0
  %530 = vmatprep.subr.mxu0 0.0
  %531 = vmatpush2.msra.mxu0 0.0
  %532 = vmatprep.subr.mxu0 0.0
  %533 = vmatpush2.msra.mxu0 0.0
  %534 = vmatprep.subr.mxu0 0.0
  %535 = vmatpush2.msra.mxu0 0.0
  %536 = vmatprep.subr.mxu0 0.0
  %537 = vmatpush2.msra.mxu0 0.0
  %538 = vmatprep.subr.mxu0 0.0
  %539 = vmatpush2.msra.mxu0 0.0
  %540 = vmatprep.subr.mxu0 0.0
  %541 = vmatpush2.msra.mxu0 0.0
  %542 = vmatprep.mubr.f32.mxu0 0.0
  %543 = vmatmul.mubr.f32.gmra.mxu0 %v473
  %v544 = vpop.f32.mrf.mxu0
  %v545 = vadd.f32 0.0, %v544
  %v546 = vpop.f32.mrf.mxu0
  %547 = vmatprep.mubr.f32.mxu0 0.0
  %548 = vmatmul.mubr.f32.gmra.mxu0 %v476
  %v549 = vpop.f32.mrf.mxu0
  %v550 = vadd.f32 0.0, %v549
  %v551 = vpop.f32.mrf.mxu0
  %552 = vdwg.mxu0
  %v553 = vadd.f32 %v464, %v545
  %v554 = vadd.f32 %v465, %v550
  %s555 = scalar_lea.vmem %s1, 96
  %v556 = vld [vmem:[%s555] sm:$0xff]
  %v557 = vld [vmem:[%s555 + $0x8] sm:$0x3]
  %558 = vrot.lane.b32.xlu0 %v26, 122
  %v559 = vpop.permute.xlu0 %558
  %v562 = vsel %vm36, %v556, 0
  %v565 = vsel %vm36, %v557, 0
  %567 = vmatprep.subr.mxu0 0.0
  %568 = vmatpush1.msra.mxu0 0.0
  %569 = vmatprep.subr.mxu0 0.0
  %570 = vmatpush1.msra.mxu0 0.0
  %571 = vmatprep.subr.mxu0 0.0
  %572 = vmatpush1.msra.mxu0 0.0
  %573 = vmatprep.subr.mxu0 0.0
  %574 = vmatpush1.msra.mxu0 0.0
  %575 = vmatprep.subr.mxu0 0.0
  %576 = vmatpush1.msra.mxu0 0.0
  %577 = vmatprep.subr.mxu0 0.0
  %578 = vmatpush1.msra.mxu0 0.0
  %579 = vmatprep.subr.mxu0 0.0
  %580 = vmatpush1.msra.mxu0 0.0
  %581 = vmatprep.subr.mxu0 0.0
  %582 = vmatpush1.msra.mxu0 0.0
  %583 = vmatprep.subr.mxu0 0.0
  %584 = vmatpush1.msra.mxu0 0.0
  %585 = vmatprep.subr.mxu0 0.0
  %586 = vmatpush1.msra.mxu0 0.0
  %587 = vmatprep.subr.mxu0 0.0
  %588 = vmatpush1.msra.mxu0 0.0
  %589 = vmatprep.subr.mxu0 0.0
  %590 = vmatpush1.msra.mxu0 0.0
  %591 = vmatprep.subr.mxu0 0.0
  %592 = vmatpush1.msra.mxu0 0.0
  %593 = vmatprep.subr.mxu0 0.0
  %594 = vmatpush1.msra.mxu0 0.0
  %595 = vmatprep.subr.mxu0 0.0
  %596 = vmatpush1.msra.mxu0 0.0
  %597 = vmatprep.subr.mxu0 0.0
  %598 = vmatpush1.msra.mxu0 %v559
  %599 = vmatprep.subr.mxu0 0.0
  %600 = vmatpush2.msra.mxu0 0.0
  %601 = vmatprep.subr.mxu0 0.0
  %602 = vmatpush2.msra.mxu0 0.0
  %603 = vmatprep.subr.mxu0 0.0
  %604 = vmatpush2.msra.mxu0 0.0
  %605 = vmatprep.subr.mxu0 0.0
  %606 = vmatpush2.msra.mxu0 0.0
  %607 = vmatprep.subr.mxu0 0.0
  %608 = vmatpush2.msra.mxu0 0.0
  %609 = vmatprep.subr.mxu0 0.0
  %610 = vmatpush2.msra.mxu0 0.0
  %611 = vmatprep.subr.mxu0 0.0
  %612 = vmatpush2.msra.mxu0 0.0
  %613 = vmatprep.subr.mxu0 0.0
  %614 = vmatpush2.msra.mxu0 0.0
  %615 = vmatprep.subr.mxu0 0.0
  %616 = vmatpush2.msra.mxu0 0.0
  %617 = vmatprep.subr.mxu0 0.0
  %618 = vmatpush2.msra.mxu0 0.0
  %619 = vmatprep.subr.mxu0 0.0
  %620 = vmatpush2.msra.mxu0 0.0
  %621 = vmatprep.subr.mxu0 0.0
  %622 = vmatpush2.msra.mxu0 0.0
  %623 = vmatprep.subr.mxu0 0.0
  %624 = vmatpush2.msra.mxu0 0.0
  %625 = vmatprep.subr.mxu0 0.0
  %626 = vmatpush2.msra.mxu0 0.0
  %627 = vmatprep.subr.mxu0 0.0
  %628 = vmatpush2.msra.mxu0 0.0
  %629 = vmatprep.subr.mxu0 0.0
  %630 = vmatpush2.msra.mxu0 0.0
  %631 = vmatprep.mubr.f32.mxu0 0.0
  %632 = vmatmul.mubr.f32.gmra.mxu0 %v562
  %v633 = vpop.f32.mrf.mxu0
  %v634 = vadd.f32 0.0, %v633
  %v635 = vpop.f32.mrf.mxu0
  %636 = vmatprep.mubr.f32.mxu0 0.0
  %637 = vmatmul.mubr.f32.gmra.mxu0 %v565
  %v638 = vpop.f32.mrf.mxu0
  %v639 = vadd.f32 0.0, %v638
  %v640 = vpop.f32.mrf.mxu0
  %641 = vdwg.mxu0
  %v642 = vadd.f32 %v553, %v634
  %v643 = vadd.f32 %v554, %v639
  %s644 = scalar_lea.vmem %s1, 112
  %v645 = vld [vmem:[%s644] sm:$0xff]
  %v646 = vld [vmem:[%s644 + $0x8] sm:$0x3]
  %647 = vrot.lane.b32.xlu0 %v26, 121
  %v648 = vpop.permute.xlu0 %647
  %v651 = vsel %vm36, %v645, 0
  %v654 = vsel %vm36, %v646, 0
  %656 = vmatprep.subr.mxu0 0.0
  %657 = vmatpush1.msra.mxu0 0.0
  %658 = vmatprep.subr.mxu0 0.0
  %659 = vmatpush1.msra.mxu0 0.0
  %660 = vmatprep.subr.mxu0 0.0
  %661 = vmatpush1.msra.mxu0 0.0
  %662 = vmatprep.subr.mxu0 0.0
  %663 = vmatpush1.msra.mxu0 0.0
  %664 = vmatprep.subr.mxu0 0.0
  %665 = vmatpush1.msra.mxu0 0.0
  %666 = vmatprep.subr.mxu0 0.0
  %667 = vmatpush1.msra.mxu0 0.0
  %668 = vmatprep.subr.mxu0 0.0
  %669 = vmatpush1.msra.mxu0 0.0
  %670 = vmatprep.subr.mxu0 0.0
  %671 = vmatpush1.msra.mxu0 0.0
  %672 = vmatprep.subr.mxu0 0.0
  %673 = vmatpush1.msra.mxu0 0.0
  %674 = vmatprep.subr.mxu0 0.0
  %675 = vmatpush1.msra.mxu0 0.0
  %676 = vmatprep.subr.mxu0 0.0
  %677 = vmatpush1.msra.mxu0 0.0
  %678 = vmatprep.subr.mxu0 0.0
  %679 = vmatpush1.msra.mxu0 0.0
  %680 = vmatprep.subr.mxu0 0.0
  %681 = vmatpush1.msra.mxu0 0.0
  %682 = vmatprep.subr.mxu0 0.0
  %683 = vmatpush1.msra.mxu0 0.0
  %684 = vmatprep.subr.mxu0 0.0
  %685 = vmatpush1.msra.mxu0 0.0
  %686 = vmatprep.subr.mxu0 0.0
  %687 = vmatpush1.msra.mxu0 %v648
  %688 = vmatprep.subr.mxu0 0.0
  %689 = vmatpush2.msra.mxu0 0.0
  %690 = vmatprep.subr.mxu0 0.0
  %691 = vmatpush2.msra.mxu0 0.0
  %692 = vmatprep.subr.mxu0 0.0
  %693 = vmatpush2.msra.mxu0 0.0
  %694 = vmatprep.subr.mxu0 0.0
  %695 = vmatpush2.msra.mxu0 0.0
  %696 = vmatprep.subr.mxu0 0.0
  %697 = vmatpush2.msra.mxu0 0.0
  %698 = vmatprep.subr.mxu0 0.0
  %699 = vmatpush2.msra.mxu0 0.0
  %700 = vmatprep.subr.mxu0 0.0
  %701 = vmatpush2.msra.mxu0 0.0
  %702 = vmatprep.subr.mxu0 0.0
  %703 = vmatpush2.msra.mxu0 0.0
  %704 = vmatprep.subr.mxu0 0.0
  %705 = vmatpush2.msra.mxu0 0.0
  %706 = vmatprep.subr.mxu0 0.0
  %707 = vmatpush2.msra.mxu0 0.0
  %708 = vmatprep.subr.mxu0 0.0
  %709 = vmatpush2.msra.mxu0 0.0
  %710 = vmatprep.subr.mxu0 0.0
  %711 = vmatpush2.msra.mxu0 0.0
  %712 = vmatprep.subr.mxu0 0.0
  %713 = vmatpush2.msra.mxu0 0.0
  %714 = vmatprep.subr.mxu0 0.0
  %715 = vmatpush2.msra.mxu0 0.0
  %716 = vmatprep.subr.mxu0 0.0
  %717 = vmatpush2.msra.mxu0 0.0
  %718 = vmatprep.subr.mxu0 0.0
  %719 = vmatpush2.msra.mxu0 0.0
  %720 = vmatprep.mubr.f32.mxu0 0.0
  %721 = vmatmul.mubr.f32.gmra.mxu0 %v651
  %v722 = vpop.f32.mrf.mxu0
  %v723 = vadd.f32 0.0, %v722
  %v724 = vpop.f32.mrf.mxu0
  %725 = vmatprep.mubr.f32.mxu0 0.0
  %726 = vmatmul.mubr.f32.gmra.mxu0 %v654
  %v727 = vpop.f32.mrf.mxu0
  %v728 = vadd.f32 0.0, %v727
  %v729 = vpop.f32.mrf.mxu0
  %730 = vdwg.mxu0
  %v731 = vadd.f32 %v642, %v723
  %v732 = vadd.f32 %v643, %v728
  %s733 = scalar_lea.vmem %s1, 128
  %v734 = vld [vmem:[%s733] sm:$0xff]
  %v735 = vld [vmem:[%s733 + $0x8] sm:$0x3]
  %736 = vrot.lane.b32.xlu0 %v26, 120
  %v737 = vpop.permute.xlu0 %736
  %v740 = vsel %vm36, %v734, 0
  %v743 = vsel %vm36, %v735, 0
  %745 = vmatprep.subr.mxu0 0.0
  %746 = vmatpush1.msra.mxu0 0.0
  %747 = vmatprep.subr.mxu0 0.0
  %748 = vmatpush1.msra.mxu0 0.0
  %749 = vmatprep.subr.mxu0 0.0
  %750 = vmatpush1.msra.mxu0 0.0
  %751 = vmatprep.subr.mxu0 0.0
  %752 = vmatpush1.msra.mxu0 0.0
  %753 = vmatprep.subr.mxu0 0.0
  %754 = vmatpush1.msra.mxu0 0.0
  %755 = vmatprep.subr.mxu0 0.0
  %756 = vmatpush1.msra.mxu0 0.0
  %757 = vmatprep.subr.mxu0 0.0
  %758 = vmatpush1.msra.mxu0 0.0
  %759 = vmatprep.subr.mxu0 0.0
  %760 = vmatpush1.msra.mxu0 0.0
  %761 = vmatprep.subr.mxu0 0.0
  %762 = vmatpush1.msra.mxu0 0.0
  %763 = vmatprep.subr.mxu0 0.0
  %764 = vmatpush1.msra.mxu0 0.0
  %765 = vmatprep.subr.mxu0 0.0
  %766 = vmatpush1.msra.mxu0 0.0
  %767 = vmatprep.subr.mxu0 0.0
  %768 = vmatpush1.msra.mxu0 0.0
  %769 = vmatprep.subr.mxu0 0.0
  %770 = vmatpush1.msra.mxu0 0.0
  %771 = vmatprep.subr.mxu0 0.0
  %772 = vmatpush1.msra.mxu0 0.0
  %773 = vmatprep.subr.mxu0 0.0
  %774 = vmatpush1.msra.mxu0 0.0
  %775 = vmatprep.subr.mxu0 0.0
  %776 = vmatpush1.msra.mxu0 %v737
  %777 = vmatprep.subr.mxu0 0.0
  %778 = vmatpush2.msra.mxu0 0.0
  %779 = vmatprep.subr.mxu0 0.0
  %780 = vmatpush2.msra.mxu0 0.0
  %781 = vmatprep.subr.mxu0 0.0
  %782 = vmatpush2.msra.mxu0 0.0
  %783 = vmatprep.subr.mxu0 0.0
  %784 = vmatpush2.msra.mxu0 0.0
  %785 = vmatprep.subr.mxu0 0.0
  %786 = vmatpush2.msra.mxu0 0.0
  %787 = vmatprep.subr.mxu0 0.0
  %788 = vmatpush2.msra.mxu0 0.0
  %789 = vmatprep.subr.mxu0 0.0
  %790 = vmatpush2.msra.mxu0 0.0
  %791 = vmatprep.subr.mxu0 0.0
  %792 = vmatpush2.msra.mxu0 0.0
  %793 = vmatprep.subr.mxu0 0.0
  %794 = vmatpush2.msra.mxu0 0.0
  %795 = vmatprep.subr.mxu0 0.0
  %796 = vmatpush2.msra.mxu0 0.0
  %797 = vmatprep.subr.mxu0 0.0
  %798 = vmatpush2.msra.mxu0 0.0
  %799 = vmatprep.subr.mxu0 0.0
  %800 = vmatpush2.msra.mxu0 0.0
  %801 = vmatprep.subr.mxu0 0.0
  %802 = vmatpush2.msra.mxu0 0.0
  %803 = vmatprep.subr.mxu0 0.0
  %804 = vmatpush2.msra.mxu0 0.0
  %805 = vmatprep.subr.mxu0 0.0
  %806 = vmatpush2.msra.mxu0 0.0
  %807 = vmatprep.subr.mxu0 0.0
  %808 = vmatpush2.msra.mxu0 0.0
  %809 = vmatprep.mubr.f32.mxu0 0.0
  %810 = vmatmul.mubr.f32.gmra.mxu0 %v740
  %v811 = vpop.f32.mrf.mxu0
  %v812 = vadd.f32 0.0, %v811
  %v813 = vpop.f32.mrf.mxu0
  %814 = vmatprep.mubr.f32.mxu0 0.0
  %815 = vmatmul.mubr.f32.gmra.mxu0 %v743
  %v816 = vpop.f32.mrf.mxu0
  %v817 = vadd.f32 0.0, %v816
  %v818 = vpop.f32.mrf.mxu0
  %819 = vdwg.mxu0
  %v820 = vadd.f32 %v731, %v812
  %v821 = vadd.f32 %v732, %v817
  %s822 = scalar_lea.vmem %s1, 144
  %v823 = vld [vmem:[%s822] sm:$0xff]
  %v824 = vld [vmem:[%s822 + $0x8] sm:$0x3]
  %825 = vrot.lane.b32.xlu0 %v26, 119
  %v826 = vpop.permute.xlu0 %825
  %v829 = vsel %vm36, %v823, 0
  %v832 = vsel %vm36, %v824, 0
  %834 = vmatprep.subr.mxu0 0.0
  %835 = vmatpush1.msra.mxu0 0.0
  %836 = vmatprep.subr.mxu0 0.0
  %837 = vmatpush1.msra.mxu0 0.0
  %838 = vmatprep.subr.mxu0 0.0
  %839 = vmatpush1.msra.mxu0 0.0
  %840 = vmatprep.subr.mxu0 0.0
  %841 = vmatpush1.msra.mxu0 0.0
  %842 = vmatprep.subr.mxu0 0.0
  %843 = vmatpush1.msra.mxu0 0.0
  %844 = vmatprep.subr.mxu0 0.0
  %845 = vmatpush1.msra.mxu0 0.0
  %846 = vmatprep.subr.mxu0 0.0
  %847 = vmatpush1.msra.mxu0 0.0
  %848 = vmatprep.subr.mxu0 0.0
  %849 = vmatpush1.msra.mxu0 0.0
  %850 = vmatprep.subr.mxu0 0.0
  %851 = vmatpush1.msra.mxu0 0.0
  %852 = vmatprep.subr.mxu0 0.0
  %853 = vmatpush1.msra.mxu0 0.0
  %854 = vmatprep.subr.mxu0 0.0
  %855 = vmatpush1.msra.mxu0 0.0
  %856 = vmatprep.subr.mxu0 0.0
  %857 = vmatpush1.msra.mxu0 0.0
  %858 = vmatprep.subr.mxu0 0.0
  %859 = vmatpush1.msra.mxu0 0.0
  %860 = vmatprep.subr.mxu0 0.0
  %861 = vmatpush1.msra.mxu0 0.0
  %862 = vmatprep.subr.mxu0 0.0
  %863 = vmatpush1.msra.mxu0 0.0
  %864 = vmatprep.subr.mxu0 0.0
  %865 = vmatpush1.msra.mxu0 %v826
  %866 = vmatprep.subr.mxu0 0.0
  %867 = vmatpush2.msra.mxu0 0.0
  %868 = vmatprep.subr.mxu0 0.0
  %869 = vmatpush2.msra.mxu0 0.0
  %870 = vmatprep.subr.mxu0 0.0
  %871 = vmatpush2.msra.mxu0 0.0
  %872 = vmatprep.subr.mxu0 0.0
  %873 = vmatpush2.msra.mxu0 0.0
  %874 = vmatprep.subr.mxu0 0.0
  %875 = vmatpush2.msra.mxu0 0.0
  %876 = vmatprep.subr.mxu0 0.0
  %877 = vmatpush2.msra.mxu0 0.0
  %878 = vmatprep.subr.mxu0 0.0
  %879 = vmatpush2.msra.mxu0 0.0
  %880 = vmatprep.subr.mxu0 0.0
  %881 = vmatpush2.msra.mxu0 0.0
  %882 = vmatprep.subr.mxu0 0.0
  %883 = vmatpush2.msra.mxu0 0.0
  %884 = vmatprep.subr.mxu0 0.0
  %885 = vmatpush2.msra.mxu0 0.0
  %886 = vmatprep.subr.mxu0 0.0
  %887 = vmatpush2.msra.mxu0 0.0
  %888 = vmatprep.subr.mxu0 0.0
  %889 = vmatpush2.msra.mxu0 0.0
  %890 = vmatprep.subr.mxu0 0.0
  %891 = vmatpush2.msra.mxu0 0.0
  %892 = vmatprep.subr.mxu0 0.0
  %893 = vmatpush2.msra.mxu0 0.0
  %894 = vmatprep.subr.mxu0 0.0
  %895 = vmatpush2.msra.mxu0 0.0
  %896 = vmatprep.subr.mxu0 0.0
  %897 = vmatpush2.msra.mxu0 0.0
  %898 = vmatprep.mubr.f32.mxu0 0.0
  %899 = vmatmul.mubr.f32.gmra.mxu0 %v829
  %v900 = vpop.f32.mrf.mxu0
  %v901 = vadd.f32 0.0, %v900
  %v902 = vpop.f32.mrf.mxu0
  %903 = vmatprep.mubr.f32.mxu0 0.0
  %904 = vmatmul.mubr.f32.gmra.mxu0 %v832
  %v905 = vpop.f32.mrf.mxu0
  %v906 = vadd.f32 0.0, %v905
  %v907 = vpop.f32.mrf.mxu0
  %908 = vdwg.mxu0
  %v909 = vadd.f32 %v820, %v901
  %v910 = vadd.f32 %v821, %v906
  %s911 = scalar_lea.vmem %s1, 160
  %v912 = vld [vmem:[%s911] sm:$0xff]
  %v913 = vld [vmem:[%s911 + $0x8] sm:$0x3]
  %914 = vrot.lane.b32.xlu0 %v26, 118
  %v915 = vpop.permute.xlu0 %914
  %v918 = vsel %vm36, %v912, 0
  %v921 = vsel %vm36, %v913, 0
  %923 = vmatprep.subr.mxu0 0.0
  %924 = vmatpush1.msra.mxu0 0.0
  %925 = vmatprep.subr.mxu0 0.0
  %926 = vmatpush1.msra.mxu0 0.0
  %927 = vmatprep.subr.mxu0 0.0
  %928 = vmatpush1.msra.mxu0 0.0
  %929 = vmatprep.subr.mxu0 0.0
  %930 = vmatpush1.msra.mxu0 0.0
  %931 = vmatprep.subr.mxu0 0.0
  %932 = vmatpush1.msra.mxu0 0.0
  %933 = vmatprep.subr.mxu0 0.0
  %934 = vmatpush1.msra.mxu0 0.0
  %935 = vmatprep.subr.mxu0 0.0
  %936 = vmatpush1.msra.mxu0 0.0
  %937 = vmatprep.subr.mxu0 0.0
  %938 = vmatpush1.msra.mxu0 0.0
  %939 = vmatprep.subr.mxu0 0.0
  %940 = vmatpush1.msra.mxu0 0.0
  %941 = vmatprep.subr.mxu0 0.0
  %942 = vmatpush1.msra.mxu0 0.0
  %943 = vmatprep.subr.mxu0 0.0
  %944 = vmatpush1.msra.mxu0 0.0
  %945 = vmatprep.subr.mxu0 0.0
  %946 = vmatpush1.msra.mxu0 0.0
  %947 = vmatprep.subr.mxu0 0.0
  %948 = vmatpush1.msra.mxu0 0.0
  %949 = vmatprep.subr.mxu0 0.0
  %950 = vmatpush1.msra.mxu0 0.0
  %951 = vmatprep.subr.mxu0 0.0
  %952 = vmatpush1.msra.mxu0 0.0
  %953 = vmatprep.subr.mxu0 0.0
  %954 = vmatpush1.msra.mxu0 %v915
  %955 = vmatprep.subr.mxu0 0.0
  %956 = vmatpush2.msra.mxu0 0.0
  %957 = vmatprep.subr.mxu0 0.0
  %958 = vmatpush2.msra.mxu0 0.0
  %959 = vmatprep.subr.mxu0 0.0
  %960 = vmatpush2.msra.mxu0 0.0
  %961 = vmatprep.subr.mxu0 0.0
  %962 = vmatpush2.msra.mxu0 0.0
  %963 = vmatprep.subr.mxu0 0.0
  %964 = vmatpush2.msra.mxu0 0.0
  %965 = vmatprep.subr.mxu0 0.0
  %966 = vmatpush2.msra.mxu0 0.0
  %967 = vmatprep.subr.mxu0 0.0
  %968 = vmatpush2.msra.mxu0 0.0
  %969 = vmatprep.subr.mxu0 0.0
  %970 = vmatpush2.msra.mxu0 0.0
  %971 = vmatprep.subr.mxu0 0.0
  %972 = vmatpush2.msra.mxu0 0.0
  %973 = vmatprep.subr.mxu0 0.0
  %974 = vmatpush2.msra.mxu0 0.0
  %975 = vmatprep.subr.mxu0 0.0
  %976 = vmatpush2.msra.mxu0 0.0
  %977 = vmatprep.subr.mxu0 0.0
  %978 = vmatpush2.msra.mxu0 0.0
  %979 = vmatprep.subr.mxu0 0.0
  %980 = vmatpush2.msra.mxu0 0.0
  %981 = vmatprep.subr.mxu0 0.0
  %982 = vmatpush2.msra.mxu0 0.0
  %983 = vmatprep.subr.mxu0 0.0
  %984 = vmatpush2.msra.mxu0 0.0
  %985 = vmatprep.subr.mxu0 0.0
  %986 = vmatpush2.msra.mxu0 0.0
  %987 = vmatprep.mubr.f32.mxu0 0.0
  %988 = vmatmul.mubr.f32.gmra.mxu0 %v918
  %v989 = vpop.f32.mrf.mxu0
  %v990 = vadd.f32 0.0, %v989
  %v991 = vpop.f32.mrf.mxu0
  %992 = vmatprep.mubr.f32.mxu0 0.0
  %993 = vmatmul.mubr.f32.gmra.mxu0 %v921
  %v994 = vpop.f32.mrf.mxu0
  %v995 = vadd.f32 0.0, %v994
  %v996 = vpop.f32.mrf.mxu0
  %997 = vdwg.mxu0
  %v998 = vadd.f32 %v909, %v990
  %v999 = vadd.f32 %v910, %v995
  %s1000 = scalar_lea.vmem %s1, 176
  %v1001 = vld [vmem:[%s1000] sm:$0xff]
  %v1002 = vld [vmem:[%s1000 + $0x8] sm:$0x3]
  %1003 = vrot.lane.b32.xlu0 %v26, 117
  %v1004 = vpop.permute.xlu0 %1003
  %v1007 = vsel %vm36, %v1001, 0
  %v1010 = vsel %vm36, %v1002, 0
  %1012 = vmatprep.subr.mxu0 0.0
  %1013 = vmatpush1.msra.mxu0 0.0
  %1014 = vmatprep.subr.mxu0 0.0
  %1015 = vmatpush1.msra.mxu0 0.0
  %1016 = vmatprep.subr.mxu0 0.0
  %1017 = vmatpush1.msra.mxu0 0.0
  %1018 = vmatprep.subr.mxu0 0.0
  %1019 = vmatpush1.msra.mxu0 0.0
  %1020 = vmatprep.subr.mxu0 0.0
  %1021 = vmatpush1.msra.mxu0 0.0
  %1022 = vmatprep.subr.mxu0 0.0
  %1023 = vmatpush1.msra.mxu0 0.0
  %1024 = vmatprep.subr.mxu0 0.0
  %1025 = vmatpush1.msra.mxu0 0.0
  %1026 = vmatprep.subr.mxu0 0.0
  %1027 = vmatpush1.msra.mxu0 0.0
  %1028 = vmatprep.subr.mxu0 0.0
  %1029 = vmatpush1.msra.mxu0 0.0
  %1030 = vmatprep.subr.mxu0 0.0
  %1031 = vmatpush1.msra.mxu0 0.0
  %1032 = vmatprep.subr.mxu0 0.0
  %1033 = vmatpush1.msra.mxu0 0.0
  %1034 = vmatprep.subr.mxu0 0.0
  %1035 = vmatpush1.msra.mxu0 0.0
  %1036 = vmatprep.subr.mxu0 0.0
  %1037 = vmatpush1.msra.mxu0 0.0
  %1038 = vmatprep.subr.mxu0 0.0
  %1039 = vmatpush1.msra.mxu0 0.0
  %1040 = vmatprep.subr.mxu0 0.0
  %1041 = vmatpush1.msra.mxu0 0.0
  %1042 = vmatprep.subr.mxu0 0.0
  %1043 = vmatpush1.msra.mxu0 %v1004
  %1044 = vmatprep.subr.mxu0 0.0
  %1045 = vmatpush2.msra.mxu0 0.0
  %1046 = vmatprep.subr.mxu0 0.0
  %1047 = vmatpush2.msra.mxu0 0.0
  %1048 = vmatprep.subr.mxu0 0.0
  %1049 = vmatpush2.msra.mxu0 0.0
  %1050 = vmatprep.subr.mxu0 0.0
  %1051 = vmatpush2.msra.mxu0 0.0
  %1052 = vmatprep.subr.mxu0 0.0
  %1053 = vmatpush2.msra.mxu0 0.0
  %1054 = vmatprep.subr.mxu0 0.0
  %1055 = vmatpush2.msra.mxu0 0.0
  %1056 = vmatprep.subr.mxu0 0.0
  %1057 = vmatpush2.msra.mxu0 0.0
  %1058 = vmatprep.subr.mxu0 0.0
  %1059 = vmatpush2.msra.mxu0 0.0
  %1060 = vmatprep.subr.mxu0 0.0
  %1061 = vmatpush2.msra.mxu0 0.0
  %1062 = vmatprep.subr.mxu0 0.0
  %1063 = vmatpush2.msra.mxu0 0.0
  %1064 = vmatprep.subr.mxu0 0.0
  %1065 = vmatpush2.msra.mxu0 0.0
  %1066 = vmatprep.subr.mxu0 0.0
  %1067 = vmatpush2.msra.mxu0 0.0
  %1068 = vmatprep.subr.mxu0 0.0
  %1069 = vmatpush2.msra.mxu0 0.0
  %1070 = vmatprep.subr.mxu0 0.0
  %1071 = vmatpush2.msra.mxu0 0.0
  %1072 = vmatprep.subr.mxu0 0.0
  %1073 = vmatpush2.msra.mxu0 0.0
  %1074 = vmatprep.subr.mxu0 0.0
  %1075 = vmatpush2.msra.mxu0 0.0
  %1076 = vmatprep.mubr.f32.mxu0 0.0
  %1077 = vmatmul.mubr.f32.gmra.mxu0 %v1007
  %v1078 = vpop.f32.mrf.mxu0
  %v1079 = vadd.f32 0.0, %v1078
  %v1080 = vpop.f32.mrf.mxu0
  %1081 = vmatprep.mubr.f32.mxu0 0.0
  %1082 = vmatmul.mubr.f32.gmra.mxu0 %v1010
  %v1083 = vpop.f32.mrf.mxu0
  %v1084 = vadd.f32 0.0, %v1083
  %v1085 = vpop.f32.mrf.mxu0
  %1086 = vdwg.mxu0
  %v1087 = vadd.f32 %v998, %v1079
  %v1088 = vadd.f32 %v999, %v1084
  %s1089 = scalar_lea.vmem %s1, 192
  %v1090 = vld [vmem:[%s1089] sm:$0xff]
  %v1091 = vld [vmem:[%s1089 + $0x8] sm:$0x3]
  %1092 = vrot.lane.b32.xlu0 %v26, 116
  %v1093 = vpop.permute.xlu0 %1092
  %v1096 = vsel %vm36, %v1090, 0
  %v1099 = vsel %vm36, %v1091, 0
  %1101 = vmatprep.subr.mxu0 0.0
  %1102 = vmatpush1.msra.mxu0 0.0
  %1103 = vmatprep.subr.mxu0 0.0
  %1104 = vmatpush1.msra.mxu0 0.0
  %1105 = vmatprep.subr.mxu0 0.0
  %1106 = vmatpush1.msra.mxu0 0.0
  %1107 = vmatprep.subr.mxu0 0.0
  %1108 = vmatpush1.msra.mxu0 0.0
  %1109 = vmatprep.subr.mxu0 0.0
  %1110 = vmatpush1.msra.mxu0 0.0
  %1111 = vmatprep.subr.mxu0 0.0
  %1112 = vmatpush1.msra.mxu0 0.0
  %1113 = vmatprep.subr.mxu0 0.0
  %1114 = vmatpush1.msra.mxu0 0.0
  %1115 = vmatprep.subr.mxu0 0.0
  %1116 = vmatpush1.msra.mxu0 0.0
  %1117 = vmatprep.subr.mxu0 0.0
  %1118 = vmatpush1.msra.mxu0 0.0
  %1119 = vmatprep.subr.mxu0 0.0
  %1120 = vmatpush1.msra.mxu0 0.0
  %1121 = vmatprep.subr.mxu0 0.0
  %1122 = vmatpush1.msra.mxu0 0.0
  %1123 = vmatprep.subr.mxu0 0.0
  %1124 = vmatpush1.msra.mxu0 0.0
  %1125 = vmatprep.subr.mxu0 0.0
  %1126 = vmatpush1.msra.mxu0 0.0
  %1127 = vmatprep.subr.mxu0 0.0
  %1128 = vmatpush1.msra.mxu0 0.0
  %1129 = vmatprep.subr.mxu0 0.0
  %1130 = vmatpush1.msra.mxu0 0.0
  %1131 = vmatprep.subr.mxu0 0.0
  %1132 = vmatpush1.msra.mxu0 %v1093
  %1133 = vmatprep.subr.mxu0 0.0
  %1134 = vmatpush2.msra.mxu0 0.0
  %1135 = vmatprep.subr.mxu0 0.0
  %1136 = vmatpush2.msra.mxu0 0.0
  %1137 = vmatprep.subr.mxu0 0.0
  %1138 = vmatpush2.msra.mxu0 0.0
  %1139 = vmatprep.subr.mxu0 0.0
  %1140 = vmatpush2.msra.mxu0 0.0
  %1141 = vmatprep.subr.mxu0 0.0
  %1142 = vmatpush2.msra.mxu0 0.0
  %1143 = vmatprep.subr.mxu0 0.0
  %1144 = vmatpush2.msra.mxu0 0.0
  %1145 = vmatprep.subr.mxu0 0.0
  %1146 = vmatpush2.msra.mxu0 0.0
  %1147 = vmatprep.subr.mxu0 0.0
  %1148 = vmatpush2.msra.mxu0 0.0
  %1149 = vmatprep.subr.mxu0 0.0
  %1150 = vmatpush2.msra.mxu0 0.0
  %1151 = vmatprep.subr.mxu0 0.0
  %1152 = vmatpush2.msra.mxu0 0.0
  %1153 = vmatprep.subr.mxu0 0.0
  %1154 = vmatpush2.msra.mxu0 0.0
  %1155 = vmatprep.subr.mxu0 0.0
  %1156 = vmatpush2.msra.mxu0 0.0
  %1157 = vmatprep.subr.mxu0 0.0
  %1158 = vmatpush2.msra.mxu0 0.0
  %1159 = vmatprep.subr.mxu0 0.0
  %1160 = vmatpush2.msra.mxu0 0.0
  %1161 = vmatprep.subr.mxu0 0.0
  %1162 = vmatpush2.msra.mxu0 0.0
  %1163 = vmatprep.subr.mxu0 0.0
  %1164 = vmatpush2.msra.mxu0 0.0
  %1165 = vmatprep.mubr.f32.mxu0 0.0
  %1166 = vmatmul.mubr.f32.gmra.mxu0 %v1096
  %v1167 = vpop.f32.mrf.mxu0
  %v1168 = vadd.f32 0.0, %v1167
  %v1169 = vpop.f32.mrf.mxu0
  %1170 = vmatprep.mubr.f32.mxu0 0.0
  %1171 = vmatmul.mubr.f32.gmra.mxu0 %v1099
  %v1172 = vpop.f32.mrf.mxu0
  %v1173 = vadd.f32 0.0, %v1172
  %v1174 = vpop.f32.mrf.mxu0
  %1175 = vdwg.mxu0
  %v1176 = vadd.f32 %v1087, %v1168
  %v1177 = vadd.f32 %v1088, %v1173
  %s1178 = scalar_lea.vmem %s1, 208
  %v1179 = vld [vmem:[%s1178] sm:$0xff]
  %v1180 = vld [vmem:[%s1178 + $0x8] sm:$0x3]
  %1181 = vrot.lane.b32.xlu0 %v26, 115
  %v1182 = vpop.permute.xlu0 %1181
  %v1185 = vsel %vm36, %v1179, 0
  %v1188 = vsel %vm36, %v1180, 0
  %1190 = vmatprep.subr.mxu0 0.0
  %1191 = vmatpush1.msra.mxu0 0.0
  %1192 = vmatprep.subr.mxu0 0.0
  %1193 = vmatpush1.msra.mxu0 0.0
  %1194 = vmatprep.subr.mxu0 0.0
  %1195 = vmatpush1.msra.mxu0 0.0
  %1196 = vmatprep.subr.mxu0 0.0
  %1197 = vmatpush1.msra.mxu0 0.0
  %1198 = vmatprep.subr.mxu0 0.0
  %1199 = vmatpush1.msra.mxu0 0.0
  %1200 = vmatprep.subr.mxu0 0.0
  %1201 = vmatpush1.msra.mxu0 0.0
  %1202 = vmatprep.subr.mxu0 0.0
  %1203 = vmatpush1.msra.mxu0 0.0
  %1204 = vmatprep.subr.mxu0 0.0
  %1205 = vmatpush1.msra.mxu0 0.0
  %1206 = vmatprep.subr.mxu0 0.0
  %1207 = vmatpush1.msra.mxu0 0.0
  %1208 = vmatprep.subr.mxu0 0.0
  %1209 = vmatpush1.msra.mxu0 0.0
  %1210 = vmatprep.subr.mxu0 0.0
  %1211 = vmatpush1.msra.mxu0 0.0
  %1212 = vmatprep.subr.mxu0 0.0
  %1213 = vmatpush1.msra.mxu0 0.0
  %1214 = vmatprep.subr.mxu0 0.0
  %1215 = vmatpush1.msra.mxu0 0.0
  %1216 = vmatprep.subr.mxu0 0.0
  %1217 = vmatpush1.msra.mxu0 0.0
  %1218 = vmatprep.subr.mxu0 0.0
  %1219 = vmatpush1.msra.mxu0 0.0
  %1220 = vmatprep.subr.mxu0 0.0
  %1221 = vmatpush1.msra.mxu0 %v1182
  %1222 = vmatprep.subr.mxu0 0.0
  %1223 = vmatpush2.msra.mxu0 0.0
  %1224 = vmatprep.subr.mxu0 0.0
  %1225 = vmatpush2.msra.mxu0 0.0
  %1226 = vmatprep.subr.mxu0 0.0
  %1227 = vmatpush2.msra.mxu0 0.0
  %1228 = vmatprep.subr.mxu0 0.0
  %1229 = vmatpush2.msra.mxu0 0.0
  %1230 = vmatprep.subr.mxu0 0.0
  %1231 = vmatpush2.msra.mxu0 0.0
  %1232 = vmatprep.subr.mxu0 0.0
  %1233 = vmatpush2.msra.mxu0 0.0
  %1234 = vmatprep.subr.mxu0 0.0
  %1235 = vmatpush2.msra.mxu0 0.0
  %1236 = vmatprep.subr.mxu0 0.0
  %1237 = vmatpush2.msra.mxu0 0.0
  %1238 = vmatprep.subr.mxu0 0.0
  %1239 = vmatpush2.msra.mxu0 0.0
  %1240 = vmatprep.subr.mxu0 0.0
  %1241 = vmatpush2.msra.mxu0 0.0
  %1242 = vmatprep.subr.mxu0 0.0
  %1243 = vmatpush2.msra.mxu0 0.0
  %1244 = vmatprep.subr.mxu0 0.0
  %1245 = vmatpush2.msra.mxu0 0.0
  %1246 = vmatprep.subr.mxu0 0.0
  %1247 = vmatpush2.msra.mxu0 0.0
  %1248 = vmatprep.subr.mxu0 0.0
  %1249 = vmatpush2.msra.mxu0 0.0
  %1250 = vmatprep.subr.mxu0 0.0
  %1251 = vmatpush2.msra.mxu0 0.0
  %1252 = vmatprep.subr.mxu0 0.0
  %1253 = vmatpush2.msra.mxu0 0.0
  %1254 = vmatprep.mubr.f32.mxu0 0.0
  %1255 = vmatmul.mubr.f32.gmra.mxu0 %v1185
  %v1256 = vpop.f32.mrf.mxu0
  %v1257 = vadd.f32 0.0, %v1256
  %v1258 = vpop.f32.mrf.mxu0
  %1259 = vmatprep.mubr.f32.mxu0 0.0
  %1260 = vmatmul.mubr.f32.gmra.mxu0 %v1188
  %v1261 = vpop.f32.mrf.mxu0
  %v1262 = vadd.f32 0.0, %v1261
  %v1263 = vpop.f32.mrf.mxu0
  %1264 = vdwg.mxu0
  %v1265 = vadd.f32 %v1176, %v1257
  %v1266 = vadd.f32 %v1177, %v1262
  %s1267 = scalar_lea.vmem %s1, 224
  %v1268 = vld [vmem:[%s1267] sm:$0xff]
  %v1269 = vld [vmem:[%s1267 + $0x8] sm:$0x3]
  %1270 = vrot.lane.b32.xlu0 %v26, 114
  %v1271 = vpop.permute.xlu0 %1270
  %v1274 = vsel %vm36, %v1268, 0
  %v1277 = vsel %vm36, %v1269, 0
  %1279 = vmatprep.subr.mxu0 0.0
  %1280 = vmatpush1.msra.mxu0 0.0
  %1281 = vmatprep.subr.mxu0 0.0
  %1282 = vmatpush1.msra.mxu0 0.0
  %1283 = vmatprep.subr.mxu0 0.0
  %1284 = vmatpush1.msra.mxu0 0.0
  %1285 = vmatprep.subr.mxu0 0.0
  %1286 = vmatpush1.msra.mxu0 0.0
  %1287 = vmatprep.subr.mxu0 0.0
  %1288 = vmatpush1.msra.mxu0 0.0
  %1289 = vmatprep.subr.mxu0 0.0
  %1290 = vmatpush1.msra.mxu0 0.0
  %1291 = vmatprep.subr.mxu0 0.0
  %1292 = vmatpush1.msra.mxu0 0.0
  %1293 = vmatprep.subr.mxu0 0.0
  %1294 = vmatpush1.msra.mxu0 0.0
  %1295 = vmatprep.subr.mxu0 0.0
  %1296 = vmatpush1.msra.mxu0 0.0
  %1297 = vmatprep.subr.mxu0 0.0
  %1298 = vmatpush1.msra.mxu0 0.0
  %1299 = vmatprep.subr.mxu0 0.0
  %1300 = vmatpush1.msra.mxu0 0.0
  %1301 = vmatprep.subr.mxu0 0.0
  %1302 = vmatpush1.msra.mxu0 0.0
  %1303 = vmatprep.subr.mxu0 0.0
  %1304 = vmatpush1.msra.mxu0 0.0
  %1305 = vmatprep.subr.mxu0 0.0
  %1306 = vmatpush1.msra.mxu0 0.0
  %1307 = vmatprep.subr.mxu0 0.0
  %1308 = vmatpush1.msra.mxu0 0.0
  %1309 = vmatprep.subr.mxu0 0.0
  %1310 = vmatpush1.msra.mxu0 %v1271
  %1311 = vmatprep.subr.mxu0 0.0
  %1312 = vmatpush2.msra.mxu0 0.0
  %1313 = vmatprep.subr.mxu0 0.0
  %1314 = vmatpush2.msra.mxu0 0.0
  %1315 = vmatprep.subr.mxu0 0.0
  %1316 = vmatpush2.msra.mxu0 0.0
  %1317 = vmatprep.subr.mxu0 0.0
  %1318 = vmatpush2.msra.mxu0 0.0
  %1319 = vmatprep.subr.mxu0 0.0
  %1320 = vmatpush2.msra.mxu0 0.0
  %1321 = vmatprep.subr.mxu0 0.0
  %1322 = vmatpush2.msra.mxu0 0.0
  %1323 = vmatprep.subr.mxu0 0.0
  %1324 = vmatpush2.msra.mxu0 0.0
  %1325 = vmatprep.subr.mxu0 0.0
  %1326 = vmatpush2.msra.mxu0 0.0
  %1327 = vmatprep.subr.mxu0 0.0
  %1328 = vmatpush2.msra.mxu0 0.0
  %1329 = vmatprep.subr.mxu0 0.0
  %1330 = vmatpush2.msra.mxu0 0.0
  %1331 = vmatprep.subr.mxu0 0.0
  %1332 = vmatpush2.msra.mxu0 0.0
  %1333 = vmatprep.subr.mxu0 0.0
  %1334 = vmatpush2.msra.mxu0 0.0
  %1335 = vmatprep.subr.mxu0 0.0
  %1336 = vmatpush2.msra.mxu0 0.0
  %1337 = vmatprep.subr.mxu0 0.0
  %1338 = vmatpush2.msra.mxu0 0.0
  %1339 = vmatprep.subr.mxu0 0.0
  %1340 = vmatpush2.msra.mxu0 0.0
  %1341 = vmatprep.subr.mxu0 0.0
  %1342 = vmatpush2.msra.mxu0 0.0
  %1343 = vmatprep.mubr.f32.mxu0 0.0
  %1344 = vmatmul.mubr.f32.gmra.mxu0 %v1274
  %v1345 = vpop.f32.mrf.mxu0
  %v1346 = vadd.f32 0.0, %v1345
  %v1347 = vpop.f32.mrf.mxu0
  %1348 = vmatprep.mubr.f32.mxu0 0.0
  %1349 = vmatmul.mubr.f32.gmra.mxu0 %v1277
  %v1350 = vpop.f32.mrf.mxu0
  %v1351 = vadd.f32 0.0, %v1350
  %v1352 = vpop.f32.mrf.mxu0
  %1353 = vdwg.mxu0
  %v1354 = vadd.f32 %v1265, %v1346
  %v1355 = vadd.f32 %v1266, %v1351
  %s1356 = scalar_lea.vmem %s1, 240
  %v1357 = vld [vmem:[%s1356] sm:$0xff]
  %v1358 = vld [vmem:[%s1356 + $0x8] sm:$0x3]
  %1359 = vrot.lane.b32.xlu0 %v26, 113
  %v1360 = vpop.permute.xlu0 %1359
  %v1363 = vsel %vm36, %v1357, 0
  %v1366 = vsel %vm36, %v1358, 0
  %1368 = vmatprep.subr.mxu0 0.0
  %1369 = vmatpush1.msra.mxu0 0.0
  %1370 = vmatprep.subr.mxu0 0.0
  %1371 = vmatpush1.msra.mxu0 0.0
  %1372 = vmatprep.subr.mxu0 0.0
  %1373 = vmatpush1.msra.mxu0 0.0
  %1374 = vmatprep.subr.mxu0 0.0
  %1375 = vmatpush1.msra.mxu0 0.0
  %1376 = vmatprep.subr.mxu0 0.0
  %1377 = vmatpush1.msra.mxu0 0.0
  %1378 = vmatprep.subr.mxu0 0.0
  %1379 = vmatpush1.msra.mxu0 0.0
  %1380 = vmatprep.subr.mxu0 0.0
  %1381 = vmatpush1.msra.mxu0 0.0
  %1382 = vmatprep.subr.mxu0 0.0
  %1383 = vmatpush1.msra.mxu0 0.0
  %1384 = vmatprep.subr.mxu0 0.0
  %1385 = vmatpush1.msra.mxu0 0.0
  %1386 = vmatprep.subr.mxu0 0.0
  %1387 = vmatpush1.msra.mxu0 0.0
  %1388 = vmatprep.subr.mxu0 0.0
  %1389 = vmatpush1.msra.mxu0 0.0
  %1390 = vmatprep.subr.mxu0 0.0
  %1391 = vmatpush1.msra.mxu0 0.0
  %1392 = vmatprep.subr.mxu0 0.0
  %1393 = vmatpush1.msra.mxu0 0.0
  %1394 = vmatprep.subr.mxu0 0.0
  %1395 = vmatpush1.msra.mxu0 0.0
  %1396 = vmatprep.subr.mxu0 0.0
  %1397 = vmatpush1.msra.mxu0 0.0
  %1398 = vmatprep.subr.mxu0 0.0
  %1399 = vmatpush1.msra.mxu0 %v1360
  %1400 = vmatprep.subr.mxu0 0.0
  %1401 = vmatpush2.msra.mxu0 0.0
  %1402 = vmatprep.subr.mxu0 0.0
  %1403 = vmatpush2.msra.mxu0 0.0
  %1404 = vmatprep.subr.mxu0 0.0
  %1405 = vmatpush2.msra.mxu0 0.0
  %1406 = vmatprep.subr.mxu0 0.0
  %1407 = vmatpush2.msra.mxu0 0.0
  %1408 = vmatprep.subr.mxu0 0.0
  %1409 = vmatpush2.msra.mxu0 0.0
  %1410 = vmatprep.subr.mxu0 0.0
  %1411 = vmatpush2.msra.mxu0 0.0
  %1412 = vmatprep.subr.mxu0 0.0
  %1413 = vmatpush2.msra.mxu0 0.0
  %1414 = vmatprep.subr.mxu0 0.0
  %1415 = vmatpush2.msra.mxu0 0.0
  %1416 = vmatprep.subr.mxu0 0.0
  %1417 = vmatpush2.msra.mxu0 0.0
  %1418 = vmatprep.subr.mxu0 0.0
  %1419 = vmatpush2.msra.mxu0 0.0
  %1420 = vmatprep.subr.mxu0 0.0
  %1421 = vmatpush2.msra.mxu0 0.0
  %1422 = vmatprep.subr.mxu0 0.0
  %1423 = vmatpush2.msra.mxu0 0.0
  %1424 = vmatprep.subr.mxu0 0.0
  %1425 = vmatpush2.msra.mxu0 0.0
  %1426 = vmatprep.subr.mxu0 0.0
  %1427 = vmatpush2.msra.mxu0 0.0
  %1428 = vmatprep.subr.mxu0 0.0
  %1429 = vmatpush2.msra.mxu0 0.0
  %1430 = vmatprep.subr.mxu0 0.0
  %1431 = vmatpush2.msra.mxu0 0.0
  %1432 = vmatprep.mubr.f32.mxu0 0.0
  %1433 = vmatmul.mubr.f32.gmra.mxu0 %v1363
  %v1434 = vpop.f32.mrf.mxu0
  %v1435 = vadd.f32 0.0, %v1434
  %v1436 = vpop.f32.mrf.mxu0
  %1437 = vmatprep.mubr.f32.mxu0 0.0
  %1438 = vmatmul.mubr.f32.gmra.mxu0 %v1366
  %v1439 = vpop.f32.mrf.mxu0
  %v1440 = vadd.f32 0.0, %v1439
  %v1441 = vpop.f32.mrf.mxu0
  %1442 = vdwg.mxu0
  %v1443 = vadd.f32 %v1354, %v1435
  %v1444 = vadd.f32 %v1355, %v1440
  %s1445 = scalar_lea.vmem %s1, 256
  %v1446 = vld [vmem:[%s1445] sm:$0xff]
  %v1447 = vld [vmem:[%s1445 + $0x8] sm:$0x3]
  %1448 = vrot.lane.b32.xlu0 %v26, 112
  %v1449 = vpop.permute.xlu0 %1448
  %v1452 = vsel %vm36, %v1446, 0
  %v1455 = vsel %vm36, %v1447, 0
  %1457 = vmatprep.subr.mxu0 0.0
  %1458 = vmatpush1.msra.mxu0 0.0
  %1459 = vmatprep.subr.mxu0 0.0
  %1460 = vmatpush1.msra.mxu0 0.0
  %1461 = vmatprep.subr.mxu0 0.0
  %1462 = vmatpush1.msra.mxu0 0.0
  %1463 = vmatprep.subr.mxu0 0.0
  %1464 = vmatpush1.msra.mxu0 0.0
  %1465 = vmatprep.subr.mxu0 0.0
  %1466 = vmatpush1.msra.mxu0 0.0
  %1467 = vmatprep.subr.mxu0 0.0
  %1468 = vmatpush1.msra.mxu0 0.0
  %1469 = vmatprep.subr.mxu0 0.0
  %1470 = vmatpush1.msra.mxu0 0.0
  %1471 = vmatprep.subr.mxu0 0.0
  %1472 = vmatpush1.msra.mxu0 0.0
  %1473 = vmatprep.subr.mxu0 0.0
  %1474 = vmatpush1.msra.mxu0 0.0
  %1475 = vmatprep.subr.mxu0 0.0
  %1476 = vmatpush1.msra.mxu0 0.0
  %1477 = vmatprep.subr.mxu0 0.0
  %1478 = vmatpush1.msra.mxu0 0.0
  %1479 = vmatprep.subr.mxu0 0.0
  %1480 = vmatpush1.msra.mxu0 0.0
  %1481 = vmatprep.subr.mxu0 0.0
  %1482 = vmatpush1.msra.mxu0 0.0
  %1483 = vmatprep.subr.mxu0 0.0
  %1484 = vmatpush1.msra.mxu0 0.0
  %1485 = vmatprep.subr.mxu0 0.0
  %1486 = vmatpush1.msra.mxu0 0.0
  %1487 = vmatprep.subr.mxu0 0.0
  %1488 = vmatpush1.msra.mxu0 %v1449
  %1489 = vmatprep.subr.mxu0 0.0
  %1490 = vmatpush2.msra.mxu0 0.0
  %1491 = vmatprep.subr.mxu0 0.0
  %1492 = vmatpush2.msra.mxu0 0.0
  %1493 = vmatprep.subr.mxu0 0.0
  %1494 = vmatpush2.msra.mxu0 0.0
  %1495 = vmatprep.subr.mxu0 0.0
  %1496 = vmatpush2.msra.mxu0 0.0
  %1497 = vmatprep.subr.mxu0 0.0
  %1498 = vmatpush2.msra.mxu0 0.0
  %1499 = vmatprep.subr.mxu0 0.0
  %1500 = vmatpush2.msra.mxu0 0.0
  %1501 = vmatprep.subr.mxu0 0.0
  %1502 = vmatpush2.msra.mxu0 0.0
  %1503 = vmatprep.subr.mxu0 0.0
  %1504 = vmatpush2.msra.mxu0 0.0
  %1505 = vmatprep.subr.mxu0 0.0
  %1506 = vmatpush2.msra.mxu0 0.0
  %1507 = vmatprep.subr.mxu0 0.0
  %1508 = vmatpush2.msra.mxu0 0.0
  %1509 = vmatprep.subr.mxu0 0.0
  %1510 = vmatpush2.msra.mxu0 0.0
  %1511 = vmatprep.subr.mxu0 0.0
  %1512 = vmatpush2.msra.mxu0 0.0
  %1513 = vmatprep.subr.mxu0 0.0
  %1514 = vmatpush2.msra.mxu0 0.0
  %1515 = vmatprep.subr.mxu0 0.0
  %1516 = vmatpush2.msra.mxu0 0.0
  %1517 = vmatprep.subr.mxu0 0.0
  %1518 = vmatpush2.msra.mxu0 0.0
  %1519 = vmatprep.subr.mxu0 0.0
  %1520 = vmatpush2.msra.mxu0 0.0
  %1521 = vmatprep.mubr.f32.mxu0 0.0
  %1522 = vmatmul.mubr.f32.gmra.mxu0 %v1452
  %v1523 = vpop.f32.mrf.mxu0
  %v1524 = vadd.f32 0.0, %v1523
  %v1525 = vpop.f32.mrf.mxu0
  %1526 = vmatprep.mubr.f32.mxu0 0.0
  %1527 = vmatmul.mubr.f32.gmra.mxu0 %v1455
  %v1528 = vpop.f32.mrf.mxu0
  %v1529 = vadd.f32 0.0, %v1528
  %v1530 = vpop.f32.mrf.mxu0
  %1531 = vdwg.mxu0
  %v1532 = vadd.f32 %v1443, %v1524
  %v1533 = vadd.f32 %v1444, %v1529
  %v1534 = vld [vmem:[%s2] sm:$0xff]
  %v1535 = vld [vmem:[%s2 + $0x8] sm:$0x3]
  %1537 = vset.pattern.permute.xlu0 0
  %1538 = vperm.xlu0 %1537, %v1534
  %v1539 = vpop.permute.xlu0 %1538
  %1542 = vset.pattern.permute.xlu0 0
  %1543 = vperm.xlu0 %1542, %v1535
  %v1544 = vpop.permute.xlu0 %1543
  %v1546 = vadd.f32 %v1532, %v1539
  %v1547 = vadd.f32 %v1533, %v1544
  %v1548 = vmax.f32 %v1546, 0.0
  %v1549 = vmax.f32 %v1547, 0.0
  %vm1550 = vcmask 130048
  %v1551 = vsel %vm1550, %v1548, 0.0
  %1552 = vadd.xlane.f32.xlu0 %v1551
  %v1553 = vpop.xlane.xlu0 %1552
  %vm1554 = vcmask 123904
  %v1555 = vsel %vm1554, %v1549, 0.0
  %1556 = vadd.xlane.f32.xlu0 %v1555
  %v1557 = vpop.xlane.xlu0 %1556
  %v1558 = vmul.f32 %v1553, 0.0625
  %v1559 = vmul.f32 %v1557, 0.0625
  %v1560 = vld [vmem:[%s3] sm:$0xff]
  %v1561 = vld [vmem:[%s3 + $0x8] sm:$0x3]
  %v1562 = vld [vmem:[%s4] sm:$0xff]
  %v1563 = vld [vmem:[%s4 + $0x8] sm:$0x3]
  %vm1564 = vcmask 80896
  %v1566 = vsel %vm1564, %v1560, 0
  %v1569 = vsel %vm1564, %v1561, 0
  %vm1571 = vcmask 1041408
  %v1573 = vsel %vm1571, %v1559, 0
  %1575 = vmatprep.subr.mxu0 0.0
  %1576 = vmatpush1.msra.mxu0 0.0
  %1577 = vmatprep.subr.mxu0 0.0
  %1578 = vmatpush1.msra.mxu0 0.0
  %1579 = vmatprep.subr.mxu0 0.0
  %1580 = vmatpush1.msra.mxu0 0.0
  %1581 = vmatprep.subr.mxu0 0.0
  %1582 = vmatpush1.msra.mxu0 0.0
  %1583 = vmatprep.subr.mxu0 0.0
  %1584 = vmatpush1.msra.mxu0 0.0
  %1585 = vmatprep.subr.mxu0 0.0
  %1586 = vmatpush1.msra.mxu0 0.0
  %1587 = vmatprep.subr.mxu0 0.0
  %1588 = vmatpush1.msra.mxu0 0.0
  %1589 = vmatprep.subr.mxu0 0.0
  %1590 = vmatpush1.msra.mxu0 0.0
  %1591 = vmatprep.subr.mxu0 0.0
  %1592 = vmatpush1.msra.mxu0 0.0
  %1593 = vmatprep.subr.mxu0 0.0
  %1594 = vmatpush1.msra.mxu0 0.0
  %1595 = vmatprep.subr.mxu0 0.0
  %1596 = vmatpush1.msra.mxu0 0.0
  %1597 = vmatprep.subr.mxu0 0.0
  %1598 = vmatpush1.msra.mxu0 0.0
  %1599 = vmatprep.subr.mxu0 0.0
  %1600 = vmatpush1.msra.mxu0 0.0
  %1601 = vmatprep.subr.mxu0 0.0
  %1602 = vmatpush1.msra.mxu0 0.0
  %1603 = vmatprep.subr.mxu0 0.0
  %1604 = vmatpush1.msra.mxu0 %v1573
  %1605 = vmatprep.subr.mxu0 0.0
  %1606 = vmatpush1.msra.mxu0 %v1558
  %1607 = vmatprep.subr.mxu0 0.0
  %1608 = vmatpush2.msra.mxu0 0.0
  %1609 = vmatprep.subr.mxu0 0.0
  %1610 = vmatpush2.msra.mxu0 0.0
  %1611 = vmatprep.subr.mxu0 0.0
  %1612 = vmatpush2.msra.mxu0 0.0
  %1613 = vmatprep.subr.mxu0 0.0
  %1614 = vmatpush2.msra.mxu0 0.0
  %1615 = vmatprep.subr.mxu0 0.0
  %1616 = vmatpush2.msra.mxu0 0.0
  %1617 = vmatprep.subr.mxu0 0.0
  %1618 = vmatpush2.msra.mxu0 0.0
  %1619 = vmatprep.subr.mxu0 0.0
  %1620 = vmatpush2.msra.mxu0 0.0
  %1621 = vmatprep.subr.mxu0 0.0
  %1622 = vmatpush2.msra.mxu0 0.0
  %1623 = vmatprep.subr.mxu0 0.0
  %1624 = vmatpush2.msra.mxu0 0.0
  %1625 = vmatprep.subr.mxu0 0.0
  %1626 = vmatpush2.msra.mxu0 0.0
  %1627 = vmatprep.subr.mxu0 0.0
  %1628 = vmatpush2.msra.mxu0 0.0
  %1629 = vmatprep.subr.mxu0 0.0
  %1630 = vmatpush2.msra.mxu0 0.0
  %1631 = vmatprep.subr.mxu0 0.0
  %1632 = vmatpush2.msra.mxu0 0.0
  %1633 = vmatprep.subr.mxu0 0.0
  %1634 = vmatpush2.msra.mxu0 0.0
  %1635 = vmatprep.subr.mxu0 0.0
  %1636 = vmatpush2.msra.mxu0 0.0
  %1637 = vmatprep.subr.mxu0 0.0
  %1638 = vmatpush2.msra.mxu0 0.0
  %1639 = vmatprep.mubr.f32.mxu0 0.0
  %1640 = vmatmul.mubr.f32.gmra.mxu0 %v1566
  %v1641 = vpop.f32.mrf.mxu0
  %v1642 = vadd.f32 %v1562, %v1641
  %v1643 = vpop.f32.mrf.mxu0
  %1644 = vmatprep.mubr.f32.mxu0 0.0
  %1645 = vmatmul.mubr.f32.gmra.mxu0 %v1569
  %v1646 = vpop.f32.mrf.mxu0
  %v1647 = vadd.f32 %v1563, %v1646
  %v1648 = vpop.f32.mrf.mxu0
  %1649 = vdwg.mxu0
  %v1650 = vmax.f32 %v1642, 0.0
  %v1651 = vmax.f32 %v1647, 0.0
  %v1652 = vld [vmem:[%s5] sm:$0xf]
  %v1653 = vld [vmem:[%s6] sm:$0xf]
  %v1655 = vsel %vm1564, %v1652, 0
  %v1658 = vsel %vm1571, %v1651, 0
  %1660 = vmatprep.subr.mxu0 0.0
  %1661 = vmatpush1.msra.mxu0 0.0
  %1662 = vmatprep.subr.mxu0 0.0
  %1663 = vmatpush1.msra.mxu0 0.0
  %1664 = vmatprep.subr.mxu0 0.0
  %1665 = vmatpush1.msra.mxu0 0.0
  %1666 = vmatprep.subr.mxu0 0.0
  %1667 = vmatpush1.msra.mxu0 0.0
  %1668 = vmatprep.subr.mxu0 0.0
  %1669 = vmatpush1.msra.mxu0 0.0
  %1670 = vmatprep.subr.mxu0 0.0
  %1671 = vmatpush1.msra.mxu0 0.0
  %1672 = vmatprep.subr.mxu0 0.0
  %1673 = vmatpush1.msra.mxu0 0.0
  %1674 = vmatprep.subr.mxu0 0.0
  %1675 = vmatpush1.msra.mxu0 0.0
  %1676 = vmatprep.subr.mxu0 0.0
  %1677 = vmatpush1.msra.mxu0 0.0
  %1678 = vmatprep.subr.mxu0 0.0
  %1679 = vmatpush1.msra.mxu0 0.0
  %1680 = vmatprep.subr.mxu0 0.0
  %1681 = vmatpush1.msra.mxu0 0.0
  %1682 = vmatprep.subr.mxu0 0.0
  %1683 = vmatpush1.msra.mxu0 0.0
  %1684 = vmatprep.subr.mxu0 0.0
  %1685 = vmatpush1.msra.mxu0 0.0
  %1686 = vmatprep.subr.mxu0 0.0
  %1687 = vmatpush1.msra.mxu0 0.0
  %1688 = vmatprep.subr.mxu0 0.0
  %1689 = vmatpush1.msra.mxu0 %v1658
  %1690 = vmatprep.subr.mxu0 0.0
  %1691 = vmatpush1.msra.mxu0 %v1650
  %1692 = vmatprep.subr.mxu0 0.0
  %1693 = vmatpush2.msra.mxu0 0.0
  %1694 = vmatprep.subr.mxu0 0.0
  %1695 = vmatpush2.msra.mxu0 0.0
  %1696 = vmatprep.subr.mxu0 0.0
  %1697 = vmatpush2.msra.mxu0 0.0
  %1698 = vmatprep.subr.mxu0 0.0
  %1699 = vmatpush2.msra.mxu0 0.0
  %1700 = vmatprep.subr.mxu0 0.0
  %1701 = vmatpush2.msra.mxu0 0.0
  %1702 = vmatprep.subr.mxu0 0.0
  %1703 = vmatpush2.msra.mxu0 0.0
  %1704 = vmatprep.subr.mxu0 0.0
  %1705 = vmatpush2.msra.mxu0 0.0
  %1706 = vmatprep.subr.mxu0 0.0
  %1707 = vmatpush2.msra.mxu0 0.0
  %1708 = vmatprep.subr.mxu0 0.0
  %1709 = vmatpush2.msra.mxu0 0.0
  %1710 = vmatprep.subr.mxu0 0.0
  %1711 = vmatpush2.msra.mxu0 0.0
  %1712 = vmatprep.subr.mxu0 0.0
  %1713 = vmatpush2.msra.mxu0 0.0
  %1714 = vmatprep.subr.mxu0 0.0
  %1715 = vmatpush2.msra.mxu0 0.0
  %1716 = vmatprep.subr.mxu0 0.0
  %1717 = vmatpush2.msra.mxu0 0.0
  %1718 = vmatprep.subr.mxu0 0.0
  %1719 = vmatpush2.msra.mxu0 0.0
  %1720 = vmatprep.subr.mxu0 0.0
  %1721 = vmatpush2.msra.mxu0 0.0
  %1722 = vmatprep.subr.mxu0 0.0
  %1723 = vmatpush2.msra.mxu0 0.0
  %1724 = vmatprep.mubr.f32.mxu0 0.0
  %1725 = vmatmul.mubr.f32.gmra.mxu0 %v1655
  %v1726 = vpop.f32.mrf.mxu0
  %v1727 = vadd.f32 %v1653, %v1726
  %v1728 = vpop.f32.mrf.mxu0
  %1729 = vdwg.mxu0
  %v1730 = vsub.f32 0.0, %v1727
  %v1731 = vmul.f32 %v1730, 1.442695
  %v1732 = vpow.pop %v1731
  %v1733 = vadd.f32 %v1732, 1.0
  %v1734 = vrcp.pop %v1733
  %v1735 = vmul.f32 1.0, %v1734
  %vm1736 = vcmask 3072
  %1737 = vst.msk [vmem:[%s7] sm:$0xf] %vm1736, %v1735
  // Predicated region
  $region30: #{tpu_custom_call.1} parent=0 // pred_check
    _
  $region31: #{tpu_custom_call.1} parent=0 // pred_check_branch
    %1739 = sbr.rel (0) target = $region33
  $region32: #{tpu_custom_call.1} parent=0 // pred_region
    _
  $region33: #{tpu_custom_call.1} parent=0 // pred_fallthru
    _
  // Predicated region
  $region34: #{tpu_custom_call.1} parent=0 // pred_check
    _
  $region35: #{tpu_custom_call.1} parent=0 // pred_check_branch
    %1741 = sbr.rel (0) target = $region37
  $region36: #{tpu_custom_call.1} parent=0 // pred_region
    _
  $region37: #{tpu_custom_call.1} parent=0 // pred_fallthru
    _

// kernel: tpu_custom_call.1
$region0: #{tpu_custom_call.1}
  #allocation0 [shape = 'u32[]', space=smem, size = 0x4, offset = 0x4, fixed_abs, tag = 'smem constant byte address 0x4 - core index']
  #allocation1 [shape = 'u32[144,128]{1,0:T(1,128)}', space=vmem, size = 0x12000, scoped, tag = 'internal scratch']
  %s0 = inlined_call_operand.vmem [shape: f32[8,32], index: 0, kind: input, shape index: {}]
  %s1 = inlined_call_operand.vmem [shape: f32[17,10,8], index: 1, kind: input, shape index: {}]
  %s2 = inlined_call_operand.vmem [shape: f32[10,1], index: 2, kind: input, shape index: {}]
  %s3 = inlined_call_operand.vmem [shape: f32[10,10], index: 3, kind: input, shape index: {}]
  %s4 = inlined_call_operand.vmem [shape: f32[10,1], index: 4, kind: input, shape index: {}]
  %s5 = inlined_call_operand.vmem [shape: f32[4,10], index: 5, kind: input, shape index: {}]
  %s6 = inlined_call_operand.vmem [shape: f32[4,1], index: 6, kind: input, shape index: {}]
  %s7 = inlined_call_operand.vmem [shape: f32[4,1], index: 7, kind: output, shape index: {}]
  %s8 = sld [smem:[#allocation0]]
  $region38: #{tpu_custom_call.1} parent=0
    _
  %s10 = ssub.s32 1, %s8
  %s11 = scalar_select 0, %s10, %s8
  // Predicated region
  $region2: #{tpu_custom_call.1} parent=0 // pred_check
    _
  $region3: #{tpu_custom_call.1} parent=0 // pred_check_branch
    %13 = sbr.rel (0) target = $region5
  $region4: #{tpu_custom_call.1} parent=0 // pred_region
    _
  $region5: #{tpu_custom_call.1} parent=0 // pred_fallthru
    _
  // Predicated region
  $region6: #{tpu_custom_call.1} parent=0 // pred_check
    _
  $region7: #{tpu_custom_call.1} parent=0 // pred_check_branch
    %15 = sbr.rel (0) target = $region9
  $region8: #{tpu_custom_call.1} parent=0 // pred_region
    _
  $region9: #{tpu_custom_call.1} parent=0 // pred_fallthru
    _
  // Predicated region
  $region10: #{tpu_custom_call.1} parent=0 // pred_check
    _
  $region11: #{tpu_custom_call.1} parent=0 // pred_check_branch
    %17 = sbr.rel (0) target = $region13
  $region12: #{tpu_custom_call.1} parent=0 // pred_region
    _
  $region13: #{tpu_custom_call.1} parent=0 // pred_fallthru
    _
  // Predicated region
  $region14: #{tpu_custom_call.1} parent=0 // pred_check
    _
  $region15: #{tpu_custom_call.1} parent=0 // pred_check_branch
    %19 = sbr.rel (0) target = $region17
  $region16: #{tpu_custom_call.1} parent=0 // pred_region
    _
  $region17: #{tpu_custom_call.1} parent=0 // pred_fallthru
    _
  // Predicated region
  $region18: #{tpu_custom_call.1} parent=0 // pred_check
    _
  $region19: #{tpu_custom_call.1} parent=0 // pred_check_branch
    %21 = sbr.rel (0) target = $region21
  $region20: #{tpu_custom_call.1} parent=0 // pred_region
    _
  $region21: #{tpu_custom_call.1} parent=0 // pred_fallthru
    _
  // Predicated region
  $region22: #{tpu_custom_call.1} parent=0 // pred_check
    _
  $region23: #{tpu_custom_call.1} parent=0 // pred_check_branch
    %23 = sbr.rel (0) target = $region25
  $region24: #{tpu_custom_call.1} parent=0 // pred_region
    _
  $region25: #{tpu_custom_call.1} parent=0 // pred_fallthru
    _
  // Predicated region
  $region26: #{tpu_custom_call.1} parent=0 // pred_check
    _
  $region27: #{tpu_custom_call.1} parent=0 // pred_check_branch
    %25 = sbr.rel (0) target = $region29
  $region28: #{tpu_custom_call.1} parent=0 // pred_region
    _
  $region29: #{tpu_custom_call.1} parent=0 // pred_fallthru
    _
  %v26 = vld [vmem:[%s0] sm:$0xff]
  %v27 = vld [vmem:[%s1] sm:$0xff]
  %v28 = vld [vmem:[%s1 + $0x8] sm:$0x3]
  %s29 = scalar_lea.vmem %s1, 16
  %v30 = vld [vmem:[%s29] sm:$0xff]
  %v31 = vld [vmem:[%s29 + $0x8] sm:$0x3]
  %33 = vrot.lane.b32.xlu0 %v26, 127
  %v34 = vpop.permute.xlu0 %33
  %vm36 = vcmask 64512
  %v38 = vsel %vm36, %v30, 0
  %v41 = vsel %vm36, %v31, 0
  %43 = vmatprep.subr.mxu0 0.0
  %44 = vmatpush1.msra.mxu0 0.0
  %45 = vmatprep.subr.mxu0 0.0
  %46 = vmatpush1.msra.mxu0 0.0
  %47 = vmatprep.subr.mxu0 0.0
  %48 = vmatpush1.msra.mxu0 0.0
  %49 = vmatprep.subr.mxu0 0.0
  %50 = vmatpush1.msra.mxu0 0.0
  %51 = vmatprep.subr.mxu0 0.0
  %52 = vmatpush1.msra.mxu0 0.0
  %53 = vmatprep.subr.mxu0 0.0
  %54 = vmatpush1.msra.mxu0 0.0
  %55 = vmatprep.subr.mxu0 0.0
  %56 = vmatpush1.msra.mxu0 0.0
  %57 = vmatprep.subr.mxu0 0.0
  %58 = vmatpush1.msra.mxu0 0.0
  %59 = vmatprep.subr.mxu0 0.0
  %60 = vmatpush1.msra.mxu0 0.0
  %61 = vmatprep.subr.mxu0 0.0
  %62 = vmatpush1.msra.mxu0 0.0
  %63 = vmatprep.subr.mxu0 0.0
  %64 = vmatpush1.msra.mxu0 0.0
  %65 = vmatprep.subr.mxu0 0.0
  %66 = vmatpush1.msra.mxu0 0.0
  %67 = vmatprep.subr.mxu0 0.0
  %68 = vmatpush1.msra.mxu0 0.0
  %69 = vmatprep.subr.mxu0 0.0
  %70 = vmatpush1.msra.mxu0 0.0
  %71 = vmatprep.subr.mxu0 0.0
  %72 = vmatpush1.msra.mxu0 0.0
  %73 = vmatprep.subr.mxu0 0.0
  %74 = vmatpush1.msra.mxu0 %v34
  %75 = vmatprep.subr.mxu0 0.0
  %76 = vmatpush2.msra.mxu0 0.0
  %77 = vmatprep.subr.mxu0 0.0
  %78 = vmatpush2.msra.mxu0 0.0
  %79 = vmatprep.subr.mxu0 0.0
  %80 = vmatpush2.msra.mxu0 0.0
  %81 = vmatprep.subr.mxu0 0.0
  %82 = vmatpush2.msra.mxu0 0.0
  %83 = vmatprep.subr.mxu0 0.0
  %84 = vmatpush2.msra.mxu0 0.0
  %85 = vmatprep.subr.mxu0 0.0
  %86 = vmatpush2.msra.mxu0 0.0
  %87 = vmatprep.subr.mxu0 0.0
  %88 = vmatpush2.msra.mxu0 0.0
  %89 = vmatprep.subr.mxu0 0.0
  %90 = vmatpush2.msra.mxu0 0.0
  %91 = vmatprep.subr.mxu0 0.0
  %92 = vmatpush2.msra.mxu0 0.0
  %93 = vmatprep.subr.mxu0 0.0
  %94 = vmatpush2.msra.mxu0 0.0
  %95 = vmatprep.subr.mxu0 0.0
  %96 = vmatpush2.msra.mxu0 0.0
  %97 = vmatprep.subr.mxu0 0.0
  %98 = vmatpush2.msra.mxu0 0.0
  %99 = vmatprep.subr.mxu0 0.0
  %100 = vmatpush2.msra.mxu0 0.0
  %101 = vmatprep.subr.mxu0 0.0
  %102 = vmatpush2.msra.mxu0 0.0
  %103 = vmatprep.subr.mxu0 0.0
  %104 = vmatpush2.msra.mxu0 0.0
  %105 = vmatprep.subr.mxu0 0.0
  %106 = vmatpush2.msra.mxu0 0.0
  %107 = vmatprep.mubr.f32.mxu0 0.0
  %108 = vmatmul.mubr.f32.gmra.mxu0 %v38
  %v109 = vpop.f32.mrf.mxu0
  %v110 = vadd.f32 0.0, %v109
  %v111 = vpop.f32.mrf.mxu0
  %112 = vmatprep.mubr.f32.mxu0 0.0
  %113 = vmatmul.mubr.f32.gmra.mxu0 %v41
  %v114 = vpop.f32.mrf.mxu0
  %v115 = vadd.f32 0.0, %v114
  %v116 = vpop.f32.mrf.mxu0
  %117 = vdwg.mxu0
  %v119 = vsel %vm36, %v27, 0
  %v122 = vsel %vm36, %v28, 0
  %124 = vmatprep.subr.mxu0 0.0
  %125 = vmatpush1.msra.mxu0 0.0
  %126 = vmatprep.subr.mxu0 0.0
  %127 = vmatpush1.msra.mxu0 0.0
  %128 = vmatprep.subr.mxu0 0.0
  %129 = vmatpush1.msra.mxu0 0.0
  %130 = vmatprep.subr.mxu0 0.0
  %131 = vmatpush1.msra.mxu0 0.0
  %132 = vmatprep.subr.mxu0 0.0
  %133 = vmatpush1.msra.mxu0 0.0
  %134 = vmatprep.subr.mxu0 0.0
  %135 = vmatpush1.msra.mxu0 0.0
  %136 = vmatprep.subr.mxu0 0.0
  %137 = vmatpush1.msra.mxu0 0.0
  %138 = vmatprep.subr.mxu0 0.0
  %139 = vmatpush1.msra.mxu0 0.0
  %140 = vmatprep.subr.mxu0 0.0
  %141 = vmatpush1.msra.mxu0 0.0
  %142 = vmatprep.subr.mxu0 0.0
  %143 = vmatpush1.msra.mxu0 0.0
  %144 = vmatprep.subr.mxu0 0.0
  %145 = vmatpush1.msra.mxu0 0.0
  %146 = vmatprep.subr.mxu0 0.0
  %147 = vmatpush1.msra.mxu0 0.0
  %148 = vmatprep.subr.mxu0 0.0
  %149 = vmatpush1.msra.mxu0 0.0
  %150 = vmatprep.subr.mxu0 0.0
  %151 = vmatpush1.msra.mxu0 0.0
  %152 = vmatprep.subr.mxu0 0.0
  %153 = vmatpush1.msra.mxu0 0.0
  %154 = vmatprep.subr.mxu0 0.0
  %155 = vmatpush1.msra.mxu0 %v26
  %156 = vmatprep.subr.mxu0 0.0
  %157 = vmatpush2.msra.mxu0 0.0
  %158 = vmatprep.subr.mxu0 0.0
  %159 = vmatpush2.msra.mxu0 0.0
  %160 = vmatprep.subr.mxu0 0.0
  %161 = vmatpush2.msra.mxu0 0.0
  %162 = vmatprep.subr.mxu0 0.0
  %163 = vmatpush2.msra.mxu0 0.0
  %164 = vmatprep.subr.mxu0 0.0
  %165 = vmatpush2.msra.mxu0 0.0
  %166 = vmatprep.subr.mxu0 0.0
  %167 = vmatpush2.msra.mxu0 0.0
  %168 = vmatprep.subr.mxu0 0.0
  %169 = vmatpush2.msra.mxu0 0.0
  %170 = vmatprep.subr.mxu0 0.0
  %171 = vmatpush2.msra.mxu0 0.0
  %172 = vmatprep.subr.mxu0 0.0
  %173 = vmatpush2.msra.mxu0 0.0
  %174 = vmatprep.subr.mxu0 0.0
  %175 = vmatpush2.msra.mxu0 0.0
  %176 = vmatprep.subr.mxu0 0.0
  %177 = vmatpush2.msra.mxu0 0.0
  %178 = vmatprep.subr.mxu0 0.0
  %179 = vmatpush2.msra.mxu0 0.0
  %180 = vmatprep.subr.mxu0 0.0
  %181 = vmatpush2.msra.mxu0 0.0
  %182 = vmatprep.subr.mxu0 0.0
  %183 = vmatpush2.msra.mxu0 0.0
  %184 = vmatprep.subr.mxu0 0.0
  %185 = vmatpush2.msra.mxu0 0.0
  %186 = vmatprep.subr.mxu0 0.0
  %187 = vmatpush2.msra.mxu0 0.0
  %188 = vmatprep.mubr.f32.mxu0 0.0
  %189 = vmatmul.mubr.f32.gmra.mxu0 %v119
  %v190 = vpop.f32.mrf.mxu0
  %v191 = vadd.f32 %v110, %v190
  %v192 = vpop.f32.mrf.mxu0
  %193 = vmatprep.mubr.f32.mxu0 0.0
  %194 = vmatmul.mubr.f32.gmra.mxu0 %v122
  %v195 = vpop.f32.mrf.mxu0
  %v196 = vadd.f32 %v115, %v195
  %v197 = vpop.f32.mrf.mxu0
  %198 = vdwg.mxu0
  %s199 = scalar_lea.vmem %s1, 32
  %v200 = vld [vmem:[%s199] sm:$0xff]
  %v201 = vld [vmem:[%s199 + $0x8] sm:$0x3]
  %202 = vrot.lane.b32.xlu0 %v26, 126
  %v203 = vpop.permute.xlu0 %202
  %v206 = vsel %vm36, %v200, 0
  %v209 = vsel %vm36, %v201, 0
  %211 = vmatprep.subr.mxu0 0.0
  %212 = vmatpush1.msra.mxu0 0.0
  %213 = vmatprep.subr.mxu0 0.0
  %214 = vmatpush1.msra.mxu0 0.0
  %215 = vmatprep.subr.mxu0 0.0
  %216 = vmatpush1.msra.mxu0 0.0
  %217 = vmatprep.subr.mxu0 0.0
  %218 = vmatpush1.msra.mxu0 0.0
  %219 = vmatprep.subr.mxu0 0.0
  %220 = vmatpush1.msra.mxu0 0.0
  %221 = vmatprep.subr.mxu0 0.0
  %222 = vmatpush1.msra.mxu0 0.0
  %223 = vmatprep.subr.mxu0 0.0
  %224 = vmatpush1.msra.mxu0 0.0
  %225 = vmatprep.subr.mxu0 0.0
  %226 = vmatpush1.msra.mxu0 0.0
  %227 = vmatprep.subr.mxu0 0.0
  %228 = vmatpush1.msra.mxu0 0.0
  %229 = vmatprep.subr.mxu0 0.0
  %230 = vmatpush1.msra.mxu0 0.0
  %231 = vmatprep.subr.mxu0 0.0
  %232 = vmatpush1.msra.mxu0 0.0
  %233 = vmatprep.subr.mxu0 0.0
  %234 = vmatpush1.msra.mxu0 0.0
  %235 = vmatprep.subr.mxu0 0.0
  %236 = vmatpush1.msra.mxu0 0.0
  %237 = vmatprep.subr.mxu0 0.0
  %238 = vmatpush1.msra.mxu0 0.0
  %239 = vmatprep.subr.mxu0 0.0
  %240 = vmatpush1.msra.mxu0 0.0
  %241 = vmatprep.subr.mxu0 0.0
  %242 = vmatpush1.msra.mxu0 %v203
  %243 = vmatprep.subr.mxu0 0.0
  %244 = vmatpush2.msra.mxu0 0.0
  %245 = vmatprep.subr.mxu0 0.0
  %246 = vmatpush2.msra.mxu0 0.0
  %247 = vmatprep.subr.mxu0 0.0
  %248 = vmatpush2.msra.mxu0 0.0
  %249 = vmatprep.subr.mxu0 0.0
  %250 = vmatpush2.msra.mxu0 0.0
  %251 = vmatprep.subr.mxu0 0.0
  %252 = vmatpush2.msra.mxu0 0.0
  %253 = vmatprep.subr.mxu0 0.0
  %254 = vmatpush2.msra.mxu0 0.0
  %255 = vmatprep.subr.mxu0 0.0
  %256 = vmatpush2.msra.mxu0 0.0
  %257 = vmatprep.subr.mxu0 0.0
  %258 = vmatpush2.msra.mxu0 0.0
  %259 = vmatprep.subr.mxu0 0.0
  %260 = vmatpush2.msra.mxu0 0.0
  %261 = vmatprep.subr.mxu0 0.0
  %262 = vmatpush2.msra.mxu0 0.0
  %263 = vmatprep.subr.mxu0 0.0
  %264 = vmatpush2.msra.mxu0 0.0
  %265 = vmatprep.subr.mxu0 0.0
  %266 = vmatpush2.msra.mxu0 0.0
  %267 = vmatprep.subr.mxu0 0.0
  %268 = vmatpush2.msra.mxu0 0.0
  %269 = vmatprep.subr.mxu0 0.0
  %270 = vmatpush2.msra.mxu0 0.0
  %271 = vmatprep.subr.mxu0 0.0
  %272 = vmatpush2.msra.mxu0 0.0
  %273 = vmatprep.subr.mxu0 0.0
  %274 = vmatpush2.msra.mxu0 0.0
  %275 = vmatprep.mubr.f32.mxu0 0.0
  %276 = vmatmul.mubr.f32.gmra.mxu0 %v206
  %v277 = vpop.f32.mrf.mxu0
  %v278 = vadd.f32 0.0, %v277
  %v279 = vpop.f32.mrf.mxu0
  %280 = vmatprep.mubr.f32.mxu0 0.0
  %281 = vmatmul.mubr.f32.gmra.mxu0 %v209
  %v282 = vpop.f32.mrf.mxu0
  %v283 = vadd.f32 0.0, %v282
  %v284 = vpop.f32.mrf.mxu0
  %285 = vdwg.mxu0
  %v286 = vadd.f32 %v191, %v278
  %v287 = vadd.f32 %v196, %v283
  %s288 = scalar_lea.vmem %s1, 48
  %v289 = vld [vmem:[%s288] sm:$0xff]
  %v290 = vld [vmem:[%s288 + $0x8] sm:$0x3]
  %291 = vrot.lane.b32.xlu0 %v26, 125
  %v292 = vpop.permute.xlu0 %291
  %v295 = vsel %vm36, %v289, 0
  %v298 = vsel %vm36, %v290, 0
  %300 = vmatprep.subr.mxu0 0.0
  %301 = vmatpush1.msra.mxu0 0.0
  %302 = vmatprep.subr.mxu0 0.0
  %303 = vmatpush1.msra.mxu0 0.0
  %304 = vmatprep.subr.mxu0 0.0
  %305 = vmatpush1.msra.mxu0 0.0
  %306 = vmatprep.subr.mxu0 0.0
  %307 = vmatpush1.msra.mxu0 0.0
  %308 = vmatprep.subr.mxu0 0.0
  %309 = vmatpush1.msra.mxu0 0.0
  %310 = vmatprep.subr.mxu0 0.0
  %311 = vmatpush1.msra.mxu0 0.0
  %312 = vmatprep.subr.mxu0 0.0
  %313 = vmatpush1.msra.mxu0 0.0
  %314 = vmatprep.subr.mxu0 0.0
  %315 = vmatpush1.msra.mxu0 0.0
  %316 = vmatprep.subr.mxu0 0.0
  %317 = vmatpush1.msra.mxu0 0.0
  %318 = vmatprep.subr.mxu0 0.0
  %319 = vmatpush1.msra.mxu0 0.0
  %320 = vmatprep.subr.mxu0 0.0
  %321 = vmatpush1.msra.mxu0 0.0
  %322 = vmatprep.subr.mxu0 0.0
  %323 = vmatpush1.msra.mxu0 0.0
  %324 = vmatprep.subr.mxu0 0.0
  %325 = vmatpush1.msra.mxu0 0.0
  %326 = vmatprep.subr.mxu0 0.0
  %327 = vmatpush1.msra.mxu0 0.0
  %328 = vmatprep.subr.mxu0 0.0
  %329 = vmatpush1.msra.mxu0 0.0
  %330 = vmatprep.subr.mxu0 0.0
  %331 = vmatpush1.msra.mxu0 %v292
  %332 = vmatprep.subr.mxu0 0.0
  %333 = vmatpush2.msra.mxu0 0.0
  %334 = vmatprep.subr.mxu0 0.0
  %335 = vmatpush2.msra.mxu0 0.0
  %336 = vmatprep.subr.mxu0 0.0
  %337 = vmatpush2.msra.mxu0 0.0
  %338 = vmatprep.subr.mxu0 0.0
  %339 = vmatpush2.msra.mxu0 0.0
  %340 = vmatprep.subr.mxu0 0.0
  %341 = vmatpush2.msra.mxu0 0.0
  %342 = vmatprep.subr.mxu0 0.0
  %343 = vmatpush2.msra.mxu0 0.0
  %344 = vmatprep.subr.mxu0 0.0
  %345 = vmatpush2.msra.mxu0 0.0
  %346 = vmatprep.subr.mxu0 0.0
  %347 = vmatpush2.msra.mxu0 0.0
  %348 = vmatprep.subr.mxu0 0.0
  %349 = vmatpush2.msra.mxu0 0.0
  %350 = vmatprep.subr.mxu0 0.0
  %351 = vmatpush2.msra.mxu0 0.0
  %352 = vmatprep.subr.mxu0 0.0
  %353 = vmatpush2.msra.mxu0 0.0
  %354 = vmatprep.subr.mxu0 0.0
  %355 = vmatpush2.msra.mxu0 0.0
  %356 = vmatprep.subr.mxu0 0.0
  %357 = vmatpush2.msra.mxu0 0.0
  %358 = vmatprep.subr.mxu0 0.0
  %359 = vmatpush2.msra.mxu0 0.0
  %360 = vmatprep.subr.mxu0 0.0
  %361 = vmatpush2.msra.mxu0 0.0
  %362 = vmatprep.subr.mxu0 0.0
  %363 = vmatpush2.msra.mxu0 0.0
  %364 = vmatprep.mubr.f32.mxu0 0.0
  %365 = vmatmul.mubr.f32.gmra.mxu0 %v295
  %v366 = vpop.f32.mrf.mxu0
  %v367 = vadd.f32 0.0, %v366
  %v368 = vpop.f32.mrf.mxu0
  %369 = vmatprep.mubr.f32.mxu0 0.0
  %370 = vmatmul.mubr.f32.gmra.mxu0 %v298
  %v371 = vpop.f32.mrf.mxu0
  %v372 = vadd.f32 0.0, %v371
  %v373 = vpop.f32.mrf.mxu0
  %374 = vdwg.mxu0
  %v375 = vadd.f32 %v286, %v367
  %v376 = vadd.f32 %v287, %v372
  %s377 = scalar_lea.vmem %s1, 64
  %v378 = vld [vmem:[%s377] sm:$0xff]
  %v379 = vld [vmem:[%s377 + $0x8] sm:$0x3]
  %380 = vrot.lane.b32.xlu0 %v26, 124
  %v381 = vpop.permute.xlu0 %380
  %v384 = vsel %vm36, %v378, 0
  %v387 = vsel %vm36, %v379, 0
  %389 = vmatprep.subr.mxu0 0.0
  %390 = vmatpush1.msra.mxu0 0.0
  %391 = vmatprep.subr.mxu0 0.0
  %392 = vmatpush1.msra.mxu0 0.0
  %393 = vmatprep.subr.mxu0 0.0
  %394 = vmatpush1.msra.mxu0 0.0
  %395 = vmatprep.subr.mxu0 0.0
  %396 = vmatpush1.msra.mxu0 0.0
  %397 = vmatprep.subr.mxu0 0.0
  %398 = vmatpush1.msra.mxu0 0.0
  %399 = vmatprep.subr.mxu0 0.0
  %400 = vmatpush1.msra.mxu0 0.0
  %401 = vmatprep.subr.mxu0 0.0
  %402 = vmatpush1.msra.mxu0 0.0
  %403 = vmatprep.subr.mxu0 0.0
  %404 = vmatpush1.msra.mxu0 0.0
  %405 = vmatprep.subr.mxu0 0.0
  %406 = vmatpush1.msra.mxu0 0.0
  %407 = vmatprep.subr.mxu0 0.0
  %408 = vmatpush1.msra.mxu0 0.0
  %409 = vmatprep.subr.mxu0 0.0
  %410 = vmatpush1.msra.mxu0 0.0
  %411 = vmatprep.subr.mxu0 0.0
  %412 = vmatpush1.msra.mxu0 0.0
  %413 = vmatprep.subr.mxu0 0.0
  %414 = vmatpush1.msra.mxu0 0.0
  %415 = vmatprep.subr.mxu0 0.0
  %416 = vmatpush1.msra.mxu0 0.0
  %417 = vmatprep.subr.mxu0 0.0
  %418 = vmatpush1.msra.mxu0 0.0
  %419 = vmatprep.subr.mxu0 0.0
  %420 = vmatpush1.msra.mxu0 %v381
  %421 = vmatprep.subr.mxu0 0.0
  %422 = vmatpush2.msra.mxu0 0.0
  %423 = vmatprep.subr.mxu0 0.0
  %424 = vmatpush2.msra.mxu0 0.0
  %425 = vmatprep.subr.mxu0 0.0
  %426 = vmatpush2.msra.mxu0 0.0
  %427 = vmatprep.subr.mxu0 0.0
  %428 = vmatpush2.msra.mxu0 0.0
  %429 = vmatprep.subr.mxu0 0.0
  %430 = vmatpush2.msra.mxu0 0.0
  %431 = vmatprep.subr.mxu0 0.0
  %432 = vmatpush2.msra.mxu0 0.0
  %433 = vmatprep.subr.mxu0 0.0
  %434 = vmatpush2.msra.mxu0 0.0
  %435 = vmatprep.subr.mxu0 0.0
  %436 = vmatpush2.msra.mxu0 0.0
  %437 = vmatprep.subr.mxu0 0.0
  %438 = vmatpush2.msra.mxu0 0.0
  %439 = vmatprep.subr.mxu0 0.0
  %440 = vmatpush2.msra.mxu0 0.0
  %441 = vmatprep.subr.mxu0 0.0
  %442 = vmatpush2.msra.mxu0 0.0
  %443 = vmatprep.subr.mxu0 0.0
  %444 = vmatpush2.msra.mxu0 0.0
  %445 = vmatprep.subr.mxu0 0.0
  %446 = vmatpush2.msra.mxu0 0.0
  %447 = vmatprep.subr.mxu0 0.0
  %448 = vmatpush2.msra.mxu0 0.0
  %449 = vmatprep.subr.mxu0 0.0
  %450 = vmatpush2.msra.mxu0 0.0
  %451 = vmatprep.subr.mxu0 0.0
  %452 = vmatpush2.msra.mxu0 0.0
  %453 = vmatprep.mubr.f32.mxu0 0.0
  %454 = vmatmul.mubr.f32.gmra.mxu0 %v384
  %v455 = vpop.f32.mrf.mxu0
  %v456 = vadd.f32 0.0, %v455
  %v457 = vpop.f32.mrf.mxu0
  %458 = vmatprep.mubr.f32.mxu0 0.0
  %459 = vmatmul.mubr.f32.gmra.mxu0 %v387
  %v460 = vpop.f32.mrf.mxu0
  %v461 = vadd.f32 0.0, %v460
  %v462 = vpop.f32.mrf.mxu0
  %463 = vdwg.mxu0
  %v464 = vadd.f32 %v375, %v456
  %v465 = vadd.f32 %v376, %v461
  %s466 = scalar_lea.vmem %s1, 80
  %v467 = vld [vmem:[%s466] sm:$0xff]
  %v468 = vld [vmem:[%s466 + $0x8] sm:$0x3]
  %469 = vrot.lane.b32.xlu0 %v26, 123
  %v470 = vpop.permute.xlu0 %469
  %v473 = vsel %vm36, %v467, 0
  %v476 = vsel %vm36, %v468, 0
  %478 = vmatprep.subr.mxu0 0.0
  %479 = vmatpush1.msra.mxu0 0.0
  %480 = vmatprep.subr.mxu0 0.0
  %481 = vmatpush1.msra.mxu0 0.0
  %482 = vmatprep.subr.mxu0 0.0
  %483 = vmatpush1.msra.mxu0 0.0
  %484 = vmatprep.subr.mxu0 0.0
  %485 = vmatpush1.msra.mxu0 0.0
  %486 = vmatprep.subr.mxu0 0.0
  %487 = vmatpush1.msra.mxu0 0.0
  %488 = vmatprep.subr.mxu0 0.0
  %489 = vmatpush1.msra.mxu0 0.0
  %490 = vmatprep.subr.mxu0 0.0
  %491 = vmatpush1.msra.mxu0 0.0
  %492 = vmatprep.subr.mxu0 0.0
  %493 = vmatpush1.msra.mxu0 0.0
  %494 = vmatprep.subr.mxu0 0.0
  %495 = vmatpush1.msra.mxu0 0.0
  %496 = vmatprep.subr.mxu0 0.0
  %497 = vmatpush1.msra.mxu0 0.0
  %498 = vmatprep.subr.mxu0 0.0
  %499 = vmatpush1.msra.mxu0 0.0
  %500 = vmatprep.subr.mxu0 0.0
  %501 = vmatpush1.msra.mxu0 0.0
  %502 = vmatprep.subr.mxu0 0.0
  %503 = vmatpush1.msra.mxu0 0.0
  %504 = vmatprep.subr.mxu0 0.0
  %505 = vmatpush1.msra.mxu0 0.0
  %506 = vmatprep.subr.mxu0 0.0
  %507 = vmatpush1.msra.mxu0 0.0
  %508 = vmatprep.subr.mxu0 0.0
  %509 = vmatpush1.msra.mxu0 %v470
  %510 = vmatprep.subr.mxu0 0.0
  %511 = vmatpush2.msra.mxu0 0.0
  %512 = vmatprep.subr.mxu0 0.0
  %513 = vmatpush2.msra.mxu0 0.0
  %514 = vmatprep.subr.mxu0 0.0
  %515 = vmatpush2.msra.mxu0 0.0
  %516 = vmatprep.subr.mxu0 0.0
  %517 = vmatpush2.msra.mxu0 0.0
  %518 = vmatprep.subr.mxu0 0.0
  %519 = vmatpush2.msra.mxu0 0.0
  %520 = vmatprep.subr.mxu0 0.0
  %521 = vmatpush2.msra.mxu0 0.0
  %522 = vmatprep.subr.mxu0 0.0
  %523 = vmatpush2.msra.mxu0 0.0
  %524 = vmatprep.subr.mxu0 0.0
  %525 = vmatpush2.msra.mxu0 0.0
  %526 = vmatprep.subr.mxu0 0.0
  %527 = vmatpush2.msra.mxu0 0.0
  %528 = vmatprep.subr.mxu0 0.0
  %529 = vmatpush2.msra.mxu0 0.0
  %530 = vmatprep.subr.mxu0 0.0
  %531 = vmatpush2.msra.mxu0 0.0
  %532 = vmatprep.subr.mxu0 0.0
  %533 = vmatpush2.msra.mxu0 0.0
  %534 = vmatprep.subr.mxu0 0.0
  %535 = vmatpush2.msra.mxu0 0.0
  %536 = vmatprep.subr.mxu0 0.0
  %537 = vmatpush2.msra.mxu0 0.0
  %538 = vmatprep.subr.mxu0 0.0
  %539 = vmatpush2.msra.mxu0 0.0
  %540 = vmatprep.subr.mxu0 0.0
  %541 = vmatpush2.msra.mxu0 0.0
  %542 = vmatprep.mubr.f32.mxu0 0.0
  %543 = vmatmul.mubr.f32.gmra.mxu0 %v473
  %v544 = vpop.f32.mrf.mxu0
  %v545 = vadd.f32 0.0, %v544
  %v546 = vpop.f32.mrf.mxu0
  %547 = vmatprep.mubr.f32.mxu0 0.0
  %548 = vmatmul.mubr.f32.gmra.mxu0 %v476
  %v549 = vpop.f32.mrf.mxu0
  %v550 = vadd.f32 0.0, %v549
  %v551 = vpop.f32.mrf.mxu0
  %552 = vdwg.mxu0
  %v553 = vadd.f32 %v464, %v545
  %v554 = vadd.f32 %v465, %v550
  %s555 = scalar_lea.vmem %s1, 96
  %v556 = vld [vmem:[%s555] sm:$0xff]
  %v557 = vld [vmem:[%s555 + $0x8] sm:$0x3]
  %558 = vrot.lane.b32.xlu0 %v26, 122
  %v559 = vpop.permute.xlu0 %558
  %v562 = vsel %vm36, %v556, 0
  %v565 = vsel %vm36, %v557, 0
  %567 = vmatprep.subr.mxu0 0.0
  %568 = vmatpush1.msra.mxu0 0.0
  %569 = vmatprep.subr.mxu0 0.0
  %570 = vmatpush1.msra.mxu0 0.0
  %571 = vmatprep.subr.mxu0 0.0
  %572 = vmatpush1.msra.mxu0 0.0
  %573 = vmatprep.subr.mxu0 0.0
  %574 = vmatpush1.msra.mxu0 0.0
  %575 = vmatprep.subr.mxu0 0.0
  %576 = vmatpush1.msra.mxu0 0.0
  %577 = vmatprep.subr.mxu0 0.0
  %578 = vmatpush1.msra.mxu0 0.0
  %579 = vmatprep.subr.mxu0 0.0
  %580 = vmatpush1.msra.mxu0 0.0
  %581 = vmatprep.subr.mxu0 0.0
  %582 = vmatpush1.msra.mxu0 0.0
  %583 = vmatprep.subr.mxu0 0.0
  %584 = vmatpush1.msra.mxu0 0.0
  %585 = vmatprep.subr.mxu0 0.0
  %586 = vmatpush1.msra.mxu0 0.0
  %587 = vmatprep.subr.mxu0 0.0
  %588 = vmatpush1.msra.mxu0 0.0
  %589 = vmatprep.subr.mxu0 0.0
  %590 = vmatpush1.msra.mxu0 0.0
  %591 = vmatprep.subr.mxu0 0.0
  %592 = vmatpush1.msra.mxu0 0.0
  %593 = vmatprep.subr.mxu0 0.0
  %594 = vmatpush1.msra.mxu0 0.0
  %595 = vmatprep.subr.mxu0 0.0
  %596 = vmatpush1.msra.mxu0 0.0
  %597 = vmatprep.subr.mxu0 0.0
  %598 = vmatpush1.msra.mxu0 %v559
  %599 = vmatprep.subr.mxu0 0.0
  %600 = vmatpush2.msra.mxu0 0.0
  %601 = vmatprep.subr.mxu0 0.0
  %602 = vmatpush2.msra.mxu0 0.0
  %603 = vmatprep.subr.mxu0 0.0
  %604 = vmatpush2.msra.mxu0 0.0
  %605 = vmatprep.subr.mxu0 0.0
  %606 = vmatpush2.msra.mxu0 0.0
  %607 = vmatprep.subr.mxu0 0.0
  %608 = vmatpush2.msra.mxu0 0.0
  %609 = vmatprep.subr.mxu0 0.0
  %610 = vmatpush2.msra.mxu0 0.0
  %611 = vmatprep.subr.mxu0 0.0
  %612 = vmatpush2.msra.mxu0 0.0
  %613 = vmatprep.subr.mxu0 0.0
  %614 = vmatpush2.msra.mxu0 0.0
  %615 = vmatprep.subr.mxu0 0.0
  %616 = vmatpush2.msra.mxu0 0.0
  %617 = vmatprep.subr.mxu0 0.0
  %618 = vmatpush2.msra.mxu0 0.0
  %619 = vmatprep.subr.mxu0 0.0
  %620 = vmatpush2.msra.mxu0 0.0
  %621 = vmatprep.subr.mxu0 0.0
  %622 = vmatpush2.msra.mxu0 0.0
  %623 = vmatprep.subr.mxu0 0.0
  %624 = vmatpush2.msra.mxu0 0.0
  %625 = vmatprep.subr.mxu0 0.0
  %626 = vmatpush2.msra.mxu0 0.0
  %627 = vmatprep.subr.mxu0 0.0
  %628 = vmatpush2.msra.mxu0 0.0
  %629 = vmatprep.subr.mxu0 0.0
  %630 = vmatpush2.msra.mxu0 0.0
  %631 = vmatprep.mubr.f32.mxu0 0.0
  %632 = vmatmul.mubr.f32.gmra.mxu0 %v562
  %v633 = vpop.f32.mrf.mxu0
  %v634 = vadd.f32 0.0, %v633
  %v635 = vpop.f32.mrf.mxu0
  %636 = vmatprep.mubr.f32.mxu0 0.0
  %637 = vmatmul.mubr.f32.gmra.mxu0 %v565
  %v638 = vpop.f32.mrf.mxu0
  %v639 = vadd.f32 0.0, %v638
  %v640 = vpop.f32.mrf.mxu0
  %641 = vdwg.mxu0
  %v642 = vadd.f32 %v553, %v634
  %v643 = vadd.f32 %v554, %v639
  %s644 = scalar_lea.vmem %s1, 112
  %v645 = vld [vmem:[%s644] sm:$0xff]
  %v646 = vld [vmem:[%s644 + $0x8] sm:$0x3]
  %647 = vrot.lane.b32.xlu0 %v26, 121
  %v648 = vpop.permute.xlu0 %647
  %v651 = vsel %vm36, %v645, 0
  %v654 = vsel %vm36, %v646, 0
  %656 = vmatprep.subr.mxu0 0.0
  %657 = vmatpush1.msra.mxu0 0.0
  %658 = vmatprep.subr.mxu0 0.0
  %659 = vmatpush1.msra.mxu0 0.0
  %660 = vmatprep.subr.mxu0 0.0
  %661 = vmatpush1.msra.mxu0 0.0
  %662 = vmatprep.subr.mxu0 0.0
  %663 = vmatpush1.msra.mxu0 0.0
  %664 = vmatprep.subr.mxu0 0.0
  %665 = vmatpush1.msra.mxu0 0.0
  %666 = vmatprep.subr.mxu0 0.0
  %667 = vmatpush1.msra.mxu0 0.0
  %668 = vmatprep.subr.mxu0 0.0
  %669 = vmatpush1.msra.mxu0 0.0
  %670 = vmatprep.subr.mxu0 0.0
  %671 = vmatpush1.msra.mxu0 0.0
  %672 = vmatprep.subr.mxu0 0.0
  %673 = vmatpush1.msra.mxu0 0.0
  %674 = vmatprep.subr.mxu0 0.0
  %675 = vmatpush1.msra.mxu0 0.0
  %676 = vmatprep.subr.mxu0 0.0
  %677 = vmatpush1.msra.mxu0 0.0
  %678 = vmatprep.subr.mxu0 0.0
  %679 = vmatpush1.msra.mxu0 0.0
  %680 = vmatprep.subr.mxu0 0.0
  %681 = vmatpush1.msra.mxu0 0.0
  %682 = vmatprep.subr.mxu0 0.0
  %683 = vmatpush1.msra.mxu0 0.0
  %684 = vmatprep.subr.mxu0 0.0
  %685 = vmatpush1.msra.mxu0 0.0
  %686 = vmatprep.subr.mxu0 0.0
  %687 = vmatpush1.msra.mxu0 %v648
  %688 = vmatprep.subr.mxu0 0.0
  %689 = vmatpush2.msra.mxu0 0.0
  %690 = vmatprep.subr.mxu0 0.0
  %691 = vmatpush2.msra.mxu0 0.0
  %692 = vmatprep.subr.mxu0 0.0
  %693 = vmatpush2.msra.mxu0 0.0
  %694 = vmatprep.subr.mxu0 0.0
  %695 = vmatpush2.msra.mxu0 0.0
  %696 = vmatprep.subr.mxu0 0.0
  %697 = vmatpush2.msra.mxu0 0.0
  %698 = vmatprep.subr.mxu0 0.0
  %699 = vmatpush2.msra.mxu0 0.0
  %700 = vmatprep.subr.mxu0 0.0
  %701 = vmatpush2.msra.mxu0 0.0
  %702 = vmatprep.subr.mxu0 0.0
  %703 = vmatpush2.msra.mxu0 0.0
  %704 = vmatprep.subr.mxu0 0.0
  %705 = vmatpush2.msra.mxu0 0.0
  %706 = vmatprep.subr.mxu0 0.0
  %707 = vmatpush2.msra.mxu0 0.0
  %708 = vmatprep.subr.mxu0 0.0
  %709 = vmatpush2.msra.mxu0 0.0
  %710 = vmatprep.subr.mxu0 0.0
  %711 = vmatpush2.msra.mxu0 0.0
  %712 = vmatprep.subr.mxu0 0.0
  %713 = vmatpush2.msra.mxu0 0.0
  %714 = vmatprep.subr.mxu0 0.0
  %715 = vmatpush2.msra.mxu0 0.0
  %716 = vmatprep.subr.mxu0 0.0
  %717 = vmatpush2.msra.mxu0 0.0
  %718 = vmatprep.subr.mxu0 0.0
  %719 = vmatpush2.msra.mxu0 0.0
  %720 = vmatprep.mubr.f32.mxu0 0.0
  %721 = vmatmul.mubr.f32.gmra.mxu0 %v651
  %v722 = vpop.f32.mrf.mxu0
  %v723 = vadd.f32 0.0, %v722
  %v724 = vpop.f32.mrf.mxu0
  %725 = vmatprep.mubr.f32.mxu0 0.0
  %726 = vmatmul.mubr.f32.gmra.mxu0 %v654
  %v727 = vpop.f32.mrf.mxu0
  %v728 = vadd.f32 0.0, %v727
  %v729 = vpop.f32.mrf.mxu0
  %730 = vdwg.mxu0
  %v731 = vadd.f32 %v642, %v723
  %v732 = vadd.f32 %v643, %v728
  %s733 = scalar_lea.vmem %s1, 128
  %v734 = vld [vmem:[%s733] sm:$0xff]
  %v735 = vld [vmem:[%s733 + $0x8] sm:$0x3]
  %736 = vrot.lane.b32.xlu0 %v26, 120
  %v737 = vpop.permute.xlu0 %736
  %v740 = vsel %vm36, %v734, 0
  %v743 = vsel %vm36, %v735, 0
  %745 = vmatprep.subr.mxu0 0.0
  %746 = vmatpush1.msra.mxu0 0.0
  %747 = vmatprep.subr.mxu0 0.0
  %748 = vmatpush1.msra.mxu0 0.0
  %749 = vmatprep.subr.mxu0 0.0
  %750 = vmatpush1.msra.mxu0 0.0
  %751 = vmatprep.subr.mxu0 0.0
  %752 = vmatpush1.msra.mxu0 0.0
  %753 = vmatprep.subr.mxu0 0.0
  %754 = vmatpush1.msra.mxu0 0.0
  %755 = vmatprep.subr.mxu0 0.0
  %756 = vmatpush1.msra.mxu0 0.0
  %757 = vmatprep.subr.mxu0 0.0
  %758 = vmatpush1.msra.mxu0 0.0
  %759 = vmatprep.subr.mxu0 0.0
  %760 = vmatpush1.msra.mxu0 0.0
  %761 = vmatprep.subr.mxu0 0.0
  %762 = vmatpush1.msra.mxu0 0.0
  %763 = vmatprep.subr.mxu0 0.0
  %764 = vmatpush1.msra.mxu0 0.0
  %765 = vmatprep.subr.mxu0 0.0
  %766 = vmatpush1.msra.mxu0 0.0
  %767 = vmatprep.subr.mxu0 0.0
  %768 = vmatpush1.msra.mxu0 0.0
  %769 = vmatprep.subr.mxu0 0.0
  %770 = vmatpush1.msra.mxu0 0.0
  %771 = vmatprep.subr.mxu0 0.0
  %772 = vmatpush1.msra.mxu0 0.0
  %773 = vmatprep.subr.mxu0 0.0
  %774 = vmatpush1.msra.mxu0 0.0
  %775 = vmatprep.subr.mxu0 0.0
  %776 = vmatpush1.msra.mxu0 %v737
  %777 = vmatprep.subr.mxu0 0.0
  %778 = vmatpush2.msra.mxu0 0.0
  %779 = vmatprep.subr.mxu0 0.0
  %780 = vmatpush2.msra.mxu0 0.0
  %781 = vmatprep.subr.mxu0 0.0
  %782 = vmatpush2.msra.mxu0 0.0
  %783 = vmatprep.subr.mxu0 0.0
  %784 = vmatpush2.msra.mxu0 0.0
  %785 = vmatprep.subr.mxu0 0.0
  %786 = vmatpush2.msra.mxu0 0.0
  %787 = vmatprep.subr.mxu0 0.0
  %788 = vmatpush2.msra.mxu0 0.0
  %789 = vmatprep.subr.mxu0 0.0
  %790 = vmatpush2.msra.mxu0 0.0
  %791 = vmatprep.subr.mxu0 0.0
  %792 = vmatpush2.msra.mxu0 0.0
  %793 = vmatprep.subr.mxu0 0.0
  %794 = vmatpush2.msra.mxu0 0.0
  %795 = vmatprep.subr.mxu0 0.0
  %796 = vmatpush2.msra.mxu0 0.0
  %797 = vmatprep.subr.mxu0 0.0
  %798 = vmatpush2.msra.mxu0 0.0
  %799 = vmatprep.subr.mxu0 0.0
  %800 = vmatpush2.msra.mxu0 0.0
  %801 = vmatprep.subr.mxu0 0.0
  %802 = vmatpush2.msra.mxu0 0.0
  %803 = vmatprep.subr.mxu0 0.0
  %804 = vmatpush2.msra.mxu0 0.0
  %805 = vmatprep.subr.mxu0 0.0
  %806 = vmatpush2.msra.mxu0 0.0
  %807 = vmatprep.subr.mxu0 0.0
  %808 = vmatpush2.msra.mxu0 0.0
  %809 = vmatprep.mubr.f32.mxu0 0.0
  %810 = vmatmul.mubr.f32.gmra.mxu0 %v740
  %v811 = vpop.f32.mrf.mxu0
  %v812 = vadd.f32 0.0, %v811
  %v813 = vpop.f32.mrf.mxu0
  %814 = vmatprep.mubr.f32.mxu0 0.0
  %815 = vmatmul.mubr.f32.gmra.mxu0 %v743
  %v816 = vpop.f32.mrf.mxu0
  %v817 = vadd.f32 0.0, %v816
  %v818 = vpop.f32.mrf.mxu0
  %819 = vdwg.mxu0
  %v820 = vadd.f32 %v731, %v812
  %v821 = vadd.f32 %v732, %v817
  %s822 = scalar_lea.vmem %s1, 144
  %v823 = vld [vmem:[%s822] sm:$0xff]
  %v824 = vld [vmem:[%s822 + $0x8] sm:$0x3]
  %825 = vrot.lane.b32.xlu0 %v26, 119
  %v826 = vpop.permute.xlu0 %825
  %v829 = vsel %vm36, %v823, 0
  %v832 = vsel %vm36, %v824, 0
  %834 = vmatprep.subr.mxu0 0.0
  %835 = vmatpush1.msra.mxu0 0.0
  %836 = vmatprep.subr.mxu0 0.0
  %837 = vmatpush1.msra.mxu0 0.0
  %838 = vmatprep.subr.mxu0 0.0
  %839 = vmatpush1.msra.mxu0 0.0
  %840 = vmatprep.subr.mxu0 0.0
  %841 = vmatpush1.msra.mxu0 0.0
  %842 = vmatprep.subr.mxu0 0.0
  %843 = vmatpush1.msra.mxu0 0.0
  %844 = vmatprep.subr.mxu0 0.0
  %845 = vmatpush1.msra.mxu0 0.0
  %846 = vmatprep.subr.mxu0 0.0
  %847 = vmatpush1.msra.mxu0 0.0
  %848 = vmatprep.subr.mxu0 0.0
  %849 = vmatpush1.msra.mxu0 0.0
  %850 = vmatprep.subr.mxu0 0.0
  %851 = vmatpush1.msra.mxu0 0.0
  %852 = vmatprep.subr.mxu0 0.0
  %853 = vmatpush1.msra.mxu0 0.0
  %854 = vmatprep.subr.mxu0 0.0
  %855 = vmatpush1.msra.mxu0 0.0
  %856 = vmatprep.subr.mxu0 0.0
  %857 = vmatpush1.msra.mxu0 0.0
  %858 = vmatprep.subr.mxu0 0.0
  %859 = vmatpush1.msra.mxu0 0.0
  %860 = vmatprep.subr.mxu0 0.0
  %861 = vmatpush1.msra.mxu0 0.0
  %862 = vmatprep.subr.mxu0 0.0
  %863 = vmatpush1.msra.mxu0 0.0
  %864 = vmatprep.subr.mxu0 0.0
  %865 = vmatpush1.msra.mxu0 %v826
  %866 = vmatprep.subr.mxu0 0.0
  %867 = vmatpush2.msra.mxu0 0.0
  %868 = vmatprep.subr.mxu0 0.0
  %869 = vmatpush2.msra.mxu0 0.0
  %870 = vmatprep.subr.mxu0 0.0
  %871 = vmatpush2.msra.mxu0 0.0
  %872 = vmatprep.subr.mxu0 0.0
  %873 = vmatpush2.msra.mxu0 0.0
  %874 = vmatprep.subr.mxu0 0.0
  %875 = vmatpush2.msra.mxu0 0.0
  %876 = vmatprep.subr.mxu0 0.0
  %877 = vmatpush2.msra.mxu0 0.0
  %878 = vmatprep.subr.mxu0 0.0
  %879 = vmatpush2.msra.mxu0 0.0
  %880 = vmatprep.subr.mxu0 0.0
  %881 = vmatpush2.msra.mxu0 0.0
  %882 = vmatprep.subr.mxu0 0.0
  %883 = vmatpush2.msra.mxu0 0.0
  %884 = vmatprep.subr.mxu0 0.0
  %885 = vmatpush2.msra.mxu0 0.0
  %886 = vmatprep.subr.mxu0 0.0
  %887 = vmatpush2.msra.mxu0 0.0
  %888 = vmatprep.subr.mxu0 0.0
  %889 = vmatpush2.msra.mxu0 0.0
  %890 = vmatprep.subr.mxu0 0.0
  %891 = vmatpush2.msra.mxu0 0.0
  %892 = vmatprep.subr.mxu0 0.0
  %893 = vmatpush2.msra.mxu0 0.0
  %894 = vmatprep.subr.mxu0 0.0
  %895 = vmatpush2.msra.mxu0 0.0
  %896 = vmatprep.subr.mxu0 0.0
  %897 = vmatpush2.msra.mxu0 0.0
  %898 = vmatprep.mubr.f32.mxu0 0.0
  %899 = vmatmul.mubr.f32.gmra.mxu0 %v829
  %v900 = vpop.f32.mrf.mxu0
  %v901 = vadd.f32 0.0, %v900
  %v902 = vpop.f32.mrf.mxu0
  %903 = vmatprep.mubr.f32.mxu0 0.0
  %904 = vmatmul.mubr.f32.gmra.mxu0 %v832
  %v905 = vpop.f32.mrf.mxu0
  %v906 = vadd.f32 0.0, %v905
  %v907 = vpop.f32.mrf.mxu0
  %908 = vdwg.mxu0
  %v909 = vadd.f32 %v820, %v901
  %v910 = vadd.f32 %v821, %v906
  %s911 = scalar_lea.vmem %s1, 160
  %v912 = vld [vmem:[%s911] sm:$0xff]
  %v913 = vld [vmem:[%s911 + $0x8] sm:$0x3]
  %914 = vrot.lane.b32.xlu0 %v26, 118
  %v915 = vpop.permute.xlu0 %914
  %v918 = vsel %vm36, %v912, 0
  %v921 = vsel %vm36, %v913, 0
  %923 = vmatprep.subr.mxu0 0.0
  %924 = vmatpush1.msra.mxu0 0.0
  %925 = vmatprep.subr.mxu0 0.0
  %926 = vmatpush1.msra.mxu0 0.0
  %927 = vmatprep.subr.mxu0 0.0
  %928 = vmatpush1.msra.mxu0 0.0
  %929 = vmatprep.subr.mxu0 0.0
  %930 = vmatpush1.msra.mxu0 0.0
  %931 = vmatprep.subr.mxu0 0.0
  %932 = vmatpush1.msra.mxu0 0.0
  %933 = vmatprep.subr.mxu0 0.0
  %934 = vmatpush1.msra.mxu0 0.0
  %935 = vmatprep.subr.mxu0 0.0
  %936 = vmatpush1.msra.mxu0 0.0
  %937 = vmatprep.subr.mxu0 0.0
  %938 = vmatpush1.msra.mxu0 0.0
  %939 = vmatprep.subr.mxu0 0.0
  %940 = vmatpush1.msra.mxu0 0.0
  %941 = vmatprep.subr.mxu0 0.0
  %942 = vmatpush1.msra.mxu0 0.0
  %943 = vmatprep.subr.mxu0 0.0
  %944 = vmatpush1.msra.mxu0 0.0
  %945 = vmatprep.subr.mxu0 0.0
  %946 = vmatpush1.msra.mxu0 0.0
  %947 = vmatprep.subr.mxu0 0.0
  %948 = vmatpush1.msra.mxu0 0.0
  %949 = vmatprep.subr.mxu0 0.0
  %950 = vmatpush1.msra.mxu0 0.0
  %951 = vmatprep.subr.mxu0 0.0
  %952 = vmatpush1.msra.mxu0 0.0
  %953 = vmatprep.subr.mxu0 0.0
  %954 = vmatpush1.msra.mxu0 %v915
  %955 = vmatprep.subr.mxu0 0.0
  %956 = vmatpush2.msra.mxu0 0.0
  %957 = vmatprep.subr.mxu0 0.0
  %958 = vmatpush2.msra.mxu0 0.0
  %959 = vmatprep.subr.mxu0 0.0
  %960 = vmatpush2.msra.mxu0 0.0
  %961 = vmatprep.subr.mxu0 0.0
  %962 = vmatpush2.msra.mxu0 0.0
  %963 = vmatprep.subr.mxu0 0.0
  %964 = vmatpush2.msra.mxu0 0.0
  %965 = vmatprep.subr.mxu0 0.0
  %966 = vmatpush2.msra.mxu0 0.0
  %967 = vmatprep.subr.mxu0 0.0
  %968 = vmatpush2.msra.mxu0 0.0
  %969 = vmatprep.subr.mxu0 0.0
  %970 = vmatpush2.msra.mxu0 0.0
  %971 = vmatprep.subr.mxu0 0.0
  %972 = vmatpush2.msra.mxu0 0.0
  %973 = vmatprep.subr.mxu0 0.0
  %974 = vmatpush2.msra.mxu0 0.0
  %975 = vmatprep.subr.mxu0 0.0
  %976 = vmatpush2.msra.mxu0 0.0
  %977 = vmatprep.subr.mxu0 0.0
  %978 = vmatpush2.msra.mxu0 0.0
  %979 = vmatprep.subr.mxu0 0.0
  %980 = vmatpush2.msra.mxu0 0.0
  %981 = vmatprep.subr.mxu0 0.0
  %982 = vmatpush2.msra.mxu0 0.0
  %983 = vmatprep.subr.mxu0 0.0
  %984 = vmatpush2.msra.mxu0 0.0
  %985 = vmatprep.subr.mxu0 0.0
  %986 = vmatpush2.msra.mxu0 0.0
  %987 = vmatprep.mubr.f32.mxu0 0.0
  %988 = vmatmul.mubr.f32.gmra.mxu0 %v918
  %v989 = vpop.f32.mrf.mxu0
  %v990 = vadd.f32 0.0, %v989
  %v991 = vpop.f32.mrf.mxu0
  %992 = vmatprep.mubr.f32.mxu0 0.0
  %993 = vmatmul.mubr.f32.gmra.mxu0 %v921
  %v994 = vpop.f32.mrf.mxu0
  %v995 = vadd.f32 0.0, %v994
  %v996 = vpop.f32.mrf.mxu0
  %997 = vdwg.mxu0
  %v998 = vadd.f32 %v909, %v990
  %v999 = vadd.f32 %v910, %v995
  %s1000 = scalar_lea.vmem %s1, 176
  %v1001 = vld [vmem:[%s1000] sm:$0xff]
  %v1002 = vld [vmem:[%s1000 + $0x8] sm:$0x3]
  %1003 = vrot.lane.b32.xlu0 %v26, 117
  %v1004 = vpop.permute.xlu0 %1003
  %v1007 = vsel %vm36, %v1001, 0
  %v1010 = vsel %vm36, %v1002, 0
  %1012 = vmatprep.subr.mxu0 0.0
  %1013 = vmatpush1.msra.mxu0 0.0
  %1014 = vmatprep.subr.mxu0 0.0
  %1015 = vmatpush1.msra.mxu0 0.0
  %1016 = vmatprep.subr.mxu0 0.0
  %1017 = vmatpush1.msra.mxu0 0.0
  %1018 = vmatprep.subr.mxu0 0.0
  %1019 = vmatpush1.msra.mxu0 0.0
  %1020 = vmatprep.subr.mxu0 0.0
  %1021 = vmatpush1.msra.mxu0 0.0
  %1022 = vmatprep.subr.mxu0 0.0
  %1023 = vmatpush1.msra.mxu0 0.0
  %1024 = vmatprep.subr.mxu0 0.0
  %1025 = vmatpush1.msra.mxu0 0.0
  %1026 = vmatprep.subr.mxu0 0.0
  %1027 = vmatpush1.msra.mxu0 0.0
  %1028 = vmatprep.subr.mxu0 0.0
  %1029 = vmatpush1.msra.mxu0 0.0
  %1030 = vmatprep.subr.mxu0 0.0
  %1031 = vmatpush1.msra.mxu0 0.0
  %1032 = vmatprep.subr.mxu0 0.0
  %1033 = vmatpush1.msra.mxu0 0.0
  %1034 = vmatprep.subr.mxu0 0.0
  %1035 = vmatpush1.msra.mxu0 0.0
  %1036 = vmatprep.subr.mxu0 0.0
  %1037 = vmatpush1.msra.mxu0 0.0
  %1038 = vmatprep.subr.mxu0 0.0
  %1039 = vmatpush1.msra.mxu0 0.0
  %1040 = vmatprep.subr.mxu0 0.0
  %1041 = vmatpush1.msra.mxu0 0.0
  %1042 = vmatprep.subr.mxu0 0.0
  %1043 = vmatpush1.msra.mxu0 %v1004
  %1044 = vmatprep.subr.mxu0 0.0
  %1045 = vmatpush2.msra.mxu0 0.0
  %1046 = vmatprep.subr.mxu0 0.0
  %1047 = vmatpush2.msra.mxu0 0.0
  %1048 = vmatprep.subr.mxu0 0.0
  %1049 = vmatpush2.msra.mxu0 0.0
  %1050 = vmatprep.subr.mxu0 0.0
  %1051 = vmatpush2.msra.mxu0 0.0
  %1052 = vmatprep.subr.mxu0 0.0
  %1053 = vmatpush2.msra.mxu0 0.0
  %1054 = vmatprep.subr.mxu0 0.0
  %1055 = vmatpush2.msra.mxu0 0.0
  %1056 = vmatprep.subr.mxu0 0.0
  %1057 = vmatpush2.msra.mxu0 0.0
  %1058 = vmatprep.subr.mxu0 0.0
  %1059 = vmatpush2.msra.mxu0 0.0
  %1060 = vmatprep.subr.mxu0 0.0
  %1061 = vmatpush2.msra.mxu0 0.0
  %1062 = vmatprep.subr.mxu0 0.0
  %1063 = vmatpush2.msra.mxu0 0.0
  %1064 = vmatprep.subr.mxu0 0.0
  %1065 = vmatpush2.msra.mxu0 0.0
  %1066 = vmatprep.subr.mxu0 0.0
  %1067 = vmatpush2.msra.mxu0 0.0
  %1068 = vmatprep.subr.mxu0 0.0
  %1069 = vmatpush2.msra.mxu0 0.0
  %1070 = vmatprep.subr.mxu0 0.0
  %1071 = vmatpush2.msra.mxu0 0.0
  %1072 = vmatprep.subr.mxu0 0.0
  %1073 = vmatpush2.msra.mxu0 0.0
  %1074 = vmatprep.subr.mxu0 0.0
  %1075 = vmatpush2.msra.mxu0 0.0
  %1076 = vmatprep.mubr.f32.mxu0 0.0
  %1077 = vmatmul.mubr.f32.gmra.mxu0 %v1007
  %v1078 = vpop.f32.mrf.mxu0
  %v1079 = vadd.f32 0.0, %v1078
  %v1080 = vpop.f32.mrf.mxu0
  %1081 = vmatprep.mubr.f32.mxu0 0.0
  %1082 = vmatmul.mubr.f32.gmra.mxu0 %v1010
  %v1083 = vpop.f32.mrf.mxu0
  %v1084 = vadd.f32 0.0, %v1083
  %v1085 = vpop.f32.mrf.mxu0
  %1086 = vdwg.mxu0
  %v1087 = vadd.f32 %v998, %v1079
  %v1088 = vadd.f32 %v999, %v1084
  %s1089 = scalar_lea.vmem %s1, 192
  %v1090 = vld [vmem:[%s1089] sm:$0xff]
  %v1091 = vld [vmem:[%s1089 + $0x8] sm:$0x3]
  %1092 = vrot.lane.b32.xlu0 %v26, 116
  %v1093 = vpop.permute.xlu0 %1092
  %v1096 = vsel %vm36, %v1090, 0
  %v1099 = vsel %vm36, %v1091, 0
  %1101 = vmatprep.subr.mxu0 0.0
  %1102 = vmatpush1.msra.mxu0 0.0
  %1103 = vmatprep.subr.mxu0 0.0
  %1104 = vmatpush1.msra.mxu0 0.0
  %1105 = vmatprep.subr.mxu0 0.0
  %1106 = vmatpush1.msra.mxu0 0.0
  %1107 = vmatprep.subr.mxu0 0.0
  %1108 = vmatpush1.msra.mxu0 0.0
  %1109 = vmatprep.subr.mxu0 0.0
  %1110 = vmatpush1.msra.mxu0 0.0
  %1111 = vmatprep.subr.mxu0 0.0
  %1112 = vmatpush1.msra.mxu0 0.0
  %1113 = vmatprep.subr.mxu0 0.0
  %1114 = vmatpush1.msra.mxu0 0.0
  %1115 = vmatprep.subr.mxu0 0.0
  %1116 = vmatpush1.msra.mxu0 0.0
  %1117 = vmatprep.subr.mxu0 0.0
  %1118 = vmatpush1.msra.mxu0 0.0
  %1119 = vmatprep.subr.mxu0 0.0
  %1120 = vmatpush1.msra.mxu0 0.0
  %1121 = vmatprep.subr.mxu0 0.0
  %1122 = vmatpush1.msra.mxu0 0.0
  %1123 = vmatprep.subr.mxu0 0.0
  %1124 = vmatpush1.msra.mxu0 0.0
  %1125 = vmatprep.subr.mxu0 0.0
  %1126 = vmatpush1.msra.mxu0 0.0
  %1127 = vmatprep.subr.mxu0 0.0
  %1128 = vmatpush1.msra.mxu0 0.0
  %1129 = vmatprep.subr.mxu0 0.0
  %1130 = vmatpush1.msra.mxu0 0.0
  %1131 = vmatprep.subr.mxu0 0.0
  %1132 = vmatpush1.msra.mxu0 %v1093
  %1133 = vmatprep.subr.mxu0 0.0
  %1134 = vmatpush2.msra.mxu0 0.0
  %1135 = vmatprep.subr.mxu0 0.0
  %1136 = vmatpush2.msra.mxu0 0.0
  %1137 = vmatprep.subr.mxu0 0.0
  %1138 = vmatpush2.msra.mxu0 0.0
  %1139 = vmatprep.subr.mxu0 0.0
  %1140 = vmatpush2.msra.mxu0 0.0
  %1141 = vmatprep.subr.mxu0 0.0
  %1142 = vmatpush2.msra.mxu0 0.0
  %1143 = vmatprep.subr.mxu0 0.0
  %1144 = vmatpush2.msra.mxu0 0.0
  %1145 = vmatprep.subr.mxu0 0.0
  %1146 = vmatpush2.msra.mxu0 0.0
  %1147 = vmatprep.subr.mxu0 0.0
  %1148 = vmatpush2.msra.mxu0 0.0
  %1149 = vmatprep.subr.mxu0 0.0
  %1150 = vmatpush2.msra.mxu0 0.0
  %1151 = vmatprep.subr.mxu0 0.0
  %1152 = vmatpush2.msra.mxu0 0.0
  %1153 = vmatprep.subr.mxu0 0.0
  %1154 = vmatpush2.msra.mxu0 0.0
  %1155 = vmatprep.subr.mxu0 0.0
  %1156 = vmatpush2.msra.mxu0 0.0
  %1157 = vmatprep.subr.mxu0 0.0
  %1158 = vmatpush2.msra.mxu0 0.0
  %1159 = vmatprep.subr.mxu0 0.0
  %1160 = vmatpush2.msra.mxu0 0.0
  %1161 = vmatprep.subr.mxu0 0.0
  %1162 = vmatpush2.msra.mxu0 0.0
  %1163 = vmatprep.subr.mxu0 0.0
  %1164 = vmatpush2.msra.mxu0 0.0
  %1165 = vmatprep.mubr.f32.mxu0 0.0
  %1166 = vmatmul.mubr.f32.gmra.mxu0 %v1096
  %v1167 = vpop.f32.mrf.mxu0
  %v1168 = vadd.f32 0.0, %v1167
  %v1169 = vpop.f32.mrf.mxu0
  %1170 = vmatprep.mubr.f32.mxu0 0.0
  %1171 = vmatmul.mubr.f32.gmra.mxu0 %v1099
  %v1172 = vpop.f32.mrf.mxu0
  %v1173 = vadd.f32 0.0, %v1172
  %v1174 = vpop.f32.mrf.mxu0
  %1175 = vdwg.mxu0
  %v1176 = vadd.f32 %v1087, %v1168
  %v1177 = vadd.f32 %v1088, %v1173
  %s1178 = scalar_lea.vmem %s1, 208
  %v1179 = vld [vmem:[%s1178] sm:$0xff]
  %v1180 = vld [vmem:[%s1178 + $0x8] sm:$0x3]
  %1181 = vrot.lane.b32.xlu0 %v26, 115
  %v1182 = vpop.permute.xlu0 %1181
  %v1185 = vsel %vm36, %v1179, 0
  %v1188 = vsel %vm36, %v1180, 0
  %1190 = vmatprep.subr.mxu0 0.0
  %1191 = vmatpush1.msra.mxu0 0.0
  %1192 = vmatprep.subr.mxu0 0.0
  %1193 = vmatpush1.msra.mxu0 0.0
  %1194 = vmatprep.subr.mxu0 0.0
  %1195 = vmatpush1.msra.mxu0 0.0
  %1196 = vmatprep.subr.mxu0 0.0
  %1197 = vmatpush1.msra.mxu0 0.0
  %1198 = vmatprep.subr.mxu0 0.0
  %1199 = vmatpush1.msra.mxu0 0.0
  %1200 = vmatprep.subr.mxu0 0.0
  %1201 = vmatpush1.msra.mxu0 0.0
  %1202 = vmatprep.subr.mxu0 0.0
  %1203 = vmatpush1.msra.mxu0 0.0
  %1204 = vmatprep.subr.mxu0 0.0
  %1205 = vmatpush1.msra.mxu0 0.0
  %1206 = vmatprep.subr.mxu0 0.0
  %1207 = vmatpush1.msra.mxu0 0.0
  %1208 = vmatprep.subr.mxu0 0.0
  %1209 = vmatpush1.msra.mxu0 0.0
  %1210 = vmatprep.subr.mxu0 0.0
  %1211 = vmatpush1.msra.mxu0 0.0
  %1212 = vmatprep.subr.mxu0 0.0
  %1213 = vmatpush1.msra.mxu0 0.0
  %1214 = vmatprep.subr.mxu0 0.0
  %1215 = vmatpush1.msra.mxu0 0.0
  %1216 = vmatprep.subr.mxu0 0.0
  %1217 = vmatpush1.msra.mxu0 0.0
  %1218 = vmatprep.subr.mxu0 0.0
  %1219 = vmatpush1.msra.mxu0 0.0
  %1220 = vmatprep.subr.mxu0 0.0
  %1221 = vmatpush1.msra.mxu0 %v1182
  %1222 = vmatprep.subr.mxu0 0.0
  %1223 = vmatpush2.msra.mxu0 0.0
  %1224 = vmatprep.subr.mxu0 0.0
  %1225 = vmatpush2.msra.mxu0 0.0
  %1226 = vmatprep.subr.mxu0 0.0
  %1227 = vmatpush2.msra.mxu0 0.0
  %1228 = vmatprep.subr.mxu0 0.0
  %1229 = vmatpush2.msra.mxu0 0.0
  %1230 = vmatprep.subr.mxu0 0.0
  %1231 = vmatpush2.msra.mxu0 0.0
  %1232 = vmatprep.subr.mxu0 0.0
  %1233 = vmatpush2.msra.mxu0 0.0
  %1234 = vmatprep.subr.mxu0 0.0
  %1235 = vmatpush2.msra.mxu0 0.0
  %1236 = vmatprep.subr.mxu0 0.0
  %1237 = vmatpush2.msra.mxu0 0.0
  %1238 = vmatprep.subr.mxu0 0.0
  %1239 = vmatpush2.msra.mxu0 0.0
  %1240 = vmatprep.subr.mxu0 0.0
  %1241 = vmatpush2.msra.mxu0 0.0
  %1242 = vmatprep.subr.mxu0 0.0
  %1243 = vmatpush2.msra.mxu0 0.0
  %1244 = vmatprep.subr.mxu0 0.0
  %1245 = vmatpush2.msra.mxu0 0.0
  %1246 = vmatprep.subr.mxu0 0.0
  %1247 = vmatpush2.msra.mxu0 0.0
  %1248 = vmatprep.subr.mxu0 0.0
  %1249 = vmatpush2.msra.mxu0 0.0
  %1250 = vmatprep.subr.mxu0 0.0
  %1251 = vmatpush2.msra.mxu0 0.0
  %1252 = vmatprep.subr.mxu0 0.0
  %1253 = vmatpush2.msra.mxu0 0.0
  %1254 = vmatprep.mubr.f32.mxu0 0.0
  %1255 = vmatmul.mubr.f32.gmra.mxu0 %v1185
  %v1256 = vpop.f32.mrf.mxu0
  %v1257 = vadd.f32 0.0, %v1256
  %v1258 = vpop.f32.mrf.mxu0
  %1259 = vmatprep.mubr.f32.mxu0 0.0
  %1260 = vmatmul.mubr.f32.gmra.mxu0 %v1188
  %v1261 = vpop.f32.mrf.mxu0
  %v1262 = vadd.f32 0.0, %v1261
  %v1263 = vpop.f32.mrf.mxu0
  %1264 = vdwg.mxu0
  %v1265 = vadd.f32 %v1176, %v1257
  %v1266 = vadd.f32 %v1177, %v1262
  %s1267 = scalar_lea.vmem %s1, 224
  %v1268 = vld [vmem:[%s1267] sm:$0xff]
  %v1269 = vld [vmem:[%s1267 + $0x8] sm:$0x3]
  %1270 = vrot.lane.b32.xlu0 %v26, 114
  %v1271 = vpop.permute.xlu0 %1270
  %v1274 = vsel %vm36, %v1268, 0
  %v1277 = vsel %vm36, %v1269, 0
  %1279 = vmatprep.subr.mxu0 0.0
  %1280 = vmatpush1.msra.mxu0 0.0
  %1281 = vmatprep.subr.mxu0 0.0
  %1282 = vmatpush1.msra.mxu0 0.0
  %1283 = vmatprep.subr.mxu0 0.0
  %1284 = vmatpush1.msra.mxu0 0.0
  %1285 = vmatprep.subr.mxu0 0.0
  %1286 = vmatpush1.msra.mxu0 0.0
  %1287 = vmatprep.subr.mxu0 0.0
  %1288 = vmatpush1.msra.mxu0 0.0
  %1289 = vmatprep.subr.mxu0 0.0
  %1290 = vmatpush1.msra.mxu0 0.0
  %1291 = vmatprep.subr.mxu0 0.0
  %1292 = vmatpush1.msra.mxu0 0.0
  %1293 = vmatprep.subr.mxu0 0.0
  %1294 = vmatpush1.msra.mxu0 0.0
  %1295 = vmatprep.subr.mxu0 0.0
  %1296 = vmatpush1.msra.mxu0 0.0
  %1297 = vmatprep.subr.mxu0 0.0
  %1298 = vmatpush1.msra.mxu0 0.0
  %1299 = vmatprep.subr.mxu0 0.0
  %1300 = vmatpush1.msra.mxu0 0.0
  %1301 = vmatprep.subr.mxu0 0.0
  %1302 = vmatpush1.msra.mxu0 0.0
  %1303 = vmatprep.subr.mxu0 0.0
  %1304 = vmatpush1.msra.mxu0 0.0
  %1305 = vmatprep.subr.mxu0 0.0
  %1306 = vmatpush1.msra.mxu0 0.0
  %1307 = vmatprep.subr.mxu0 0.0
  %1308 = vmatpush1.msra.mxu0 0.0
  %1309 = vmatprep.subr.mxu0 0.0
  %1310 = vmatpush1.msra.mxu0 %v1271
  %1311 = vmatprep.subr.mxu0 0.0
  %1312 = vmatpush2.msra.mxu0 0.0
  %1313 = vmatprep.subr.mxu0 0.0
  %1314 = vmatpush2.msra.mxu0 0.0
  %1315 = vmatprep.subr.mxu0 0.0
  %1316 = vmatpush2.msra.mxu0 0.0
  %1317 = vmatprep.subr.mxu0 0.0
  %1318 = vmatpush2.msra.mxu0 0.0
  %1319 = vmatprep.subr.mxu0 0.0
  %1320 = vmatpush2.msra.mxu0 0.0
  %1321 = vmatprep.subr.mxu0 0.0
  %1322 = vmatpush2.msra.mxu0 0.0
  %1323 = vmatprep.subr.mxu0 0.0
  %1324 = vmatpush2.msra.mxu0 0.0
  %1325 = vmatprep.subr.mxu0 0.0
  %1326 = vmatpush2.msra.mxu0 0.0
  %1327 = vmatprep.subr.mxu0 0.0
  %1328 = vmatpush2.msra.mxu0 0.0
  %1329 = vmatprep.subr.mxu0 0.0
  %1330 = vmatpush2.msra.mxu0 0.0
  %1331 = vmatprep.subr.mxu0 0.0
  %1332 = vmatpush2.msra.mxu0 0.0
  %1333 = vmatprep.subr.mxu0 0.0
  %1334 = vmatpush2.msra.mxu0 0.0
  %1335 = vmatprep.subr.mxu0 0.0
  %1336 = vmatpush2.msra.mxu0 0.0
  %1337 = vmatprep.subr.mxu0 0.0
  %1338 = vmatpush2.msra.mxu0 0.0
  %1339 = vmatprep.subr.mxu0 0.0
  %1340 = vmatpush2.msra.mxu0 0.0
  %1341 = vmatprep.subr.mxu0 0.0
  %1342 = vmatpush2.msra.mxu0 0.0
  %1343 = vmatprep.mubr.f32.mxu0 0.0
  %1344 = vmatmul.mubr.f32.gmra.mxu0 %v1274
  %v1345 = vpop.f32.mrf.mxu0
  %v1346 = vadd.f32 0.0, %v1345
  %v1347 = vpop.f32.mrf.mxu0
  %1348 = vmatprep.mubr.f32.mxu0 0.0
  %1349 = vmatmul.mubr.f32.gmra.mxu0 %v1277
  %v1350 = vpop.f32.mrf.mxu0
  %v1351 = vadd.f32 0.0, %v1350
  %v1352 = vpop.f32.mrf.mxu0
  %1353 = vdwg.mxu0
  %v1354 = vadd.f32 %v1265, %v1346
  %v1355 = vadd.f32 %v1266, %v1351
  %s1356 = scalar_lea.vmem %s1, 240
  %v1357 = vld [vmem:[%s1356] sm:$0xff]
  %v1358 = vld [vmem:[%s1356 + $0x8] sm:$0x3]
  %1359 = vrot.lane.b32.xlu0 %v26, 113
  %v1360 = vpop.permute.xlu0 %1359
  %v1363 = vsel %vm36, %v1357, 0
  %v1366 = vsel %vm36, %v1358, 0
  %1368 = vmatprep.subr.mxu0 0.0
  %1369 = vmatpush1.msra.mxu0 0.0
  %1370 = vmatprep.subr.mxu0 0.0
  %1371 = vmatpush1.msra.mxu0 0.0
  %1372 = vmatprep.subr.mxu0 0.0
  %1373 = vmatpush1.msra.mxu0 0.0
  %1374 = vmatprep.subr.mxu0 0.0
  %1375 = vmatpush1.msra.mxu0 0.0
  %1376 = vmatprep.subr.mxu0 0.0
  %1377 = vmatpush1.msra.mxu0 0.0
  %1378 = vmatprep.subr.mxu0 0.0
  %1379 = vmatpush1.msra.mxu0 0.0
  %1380 = vmatprep.subr.mxu0 0.0
  %1381 = vmatpush1.msra.mxu0 0.0
  %1382 = vmatprep.subr.mxu0 0.0
  %1383 = vmatpush1.msra.mxu0 0.0
  %1384 = vmatprep.subr.mxu0 0.0
  %1385 = vmatpush1.msra.mxu0 0.0
  %1386 = vmatprep.subr.mxu0 0.0
  %1387 = vmatpush1.msra.mxu0 0.0
  %1388 = vmatprep.subr.mxu0 0.0
  %1389 = vmatpush1.msra.mxu0 0.0
  %1390 = vmatprep.subr.mxu0 0.0
  %1391 = vmatpush1.msra.mxu0 0.0
  %1392 = vmatprep.subr.mxu0 0.0
  %1393 = vmatpush1.msra.mxu0 0.0
  %1394 = vmatprep.subr.mxu0 0.0
  %1395 = vmatpush1.msra.mxu0 0.0
  %1396 = vmatprep.subr.mxu0 0.0
  %1397 = vmatpush1.msra.mxu0 0.0
  %1398 = vmatprep.subr.mxu0 0.0
  %1399 = vmatpush1.msra.mxu0 %v1360
  %1400 = vmatprep.subr.mxu0 0.0
  %1401 = vmatpush2.msra.mxu0 0.0
  %1402 = vmatprep.subr.mxu0 0.0
  %1403 = vmatpush2.msra.mxu0 0.0
  %1404 = vmatprep.subr.mxu0 0.0
  %1405 = vmatpush2.msra.mxu0 0.0
  %1406 = vmatprep.subr.mxu0 0.0
  %1407 = vmatpush2.msra.mxu0 0.0
  %1408 = vmatprep.subr.mxu0 0.0
  %1409 = vmatpush2.msra.mxu0 0.0
  %1410 = vmatprep.subr.mxu0 0.0
  %1411 = vmatpush2.msra.mxu0 0.0
  %1412 = vmatprep.subr.mxu0 0.0
  %1413 = vmatpush2.msra.mxu0 0.0
  %1414 = vmatprep.subr.mxu0 0.0
  %1415 = vmatpush2.msra.mxu0 0.0
  %1416 = vmatprep.subr.mxu0 0.0
  %1417 = vmatpush2.msra.mxu0 0.0
  %1418 = vmatprep.subr.mxu0 0.0
  %1419 = vmatpush2.msra.mxu0 0.0
  %1420 = vmatprep.subr.mxu0 0.0
  %1421 = vmatpush2.msra.mxu0 0.0
  %1422 = vmatprep.subr.mxu0 0.0
  %1423 = vmatpush2.msra.mxu0 0.0
  %1424 = vmatprep.subr.mxu0 0.0
  %1425 = vmatpush2.msra.mxu0 0.0
  %1426 = vmatprep.subr.mxu0 0.0
  %1427 = vmatpush2.msra.mxu0 0.0
  %1428 = vmatprep.subr.mxu0 0.0
  %1429 = vmatpush2.msra.mxu0 0.0
  %1430 = vmatprep.subr.mxu0 0.0
  %1431 = vmatpush2.msra.mxu0 0.0
  %1432 = vmatprep.mubr.f32.mxu0 0.0
  %1433 = vmatmul.mubr.f32.gmra.mxu0 %v1363
  %v1434 = vpop.f32.mrf.mxu0
  %v1435 = vadd.f32 0.0, %v1434
  %v1436 = vpop.f32.mrf.mxu0
  %1437 = vmatprep.mubr.f32.mxu0 0.0
  %1438 = vmatmul.mubr.f32.gmra.mxu0 %v1366
  %v1439 = vpop.f32.mrf.mxu0
  %v1440 = vadd.f32 0.0, %v1439
  %v1441 = vpop.f32.mrf.mxu0
  %1442 = vdwg.mxu0
  %v1443 = vadd.f32 %v1354, %v1435
  %v1444 = vadd.f32 %v1355, %v1440
  %s1445 = scalar_lea.vmem %s1, 256
  %v1446 = vld [vmem:[%s1445] sm:$0xff]
  %v1447 = vld [vmem:[%s1445 + $0x8] sm:$0x3]
  %1448 = vrot.lane.b32.xlu0 %v26, 112
  %v1449 = vpop.permute.xlu0 %1448
  %v1452 = vsel %vm36, %v1446, 0
  %v1455 = vsel %vm36, %v1447, 0
  %1457 = vmatprep.subr.mxu0 0.0
  %1458 = vmatpush1.msra.mxu0 0.0
  %1459 = vmatprep.subr.mxu0 0.0
  %1460 = vmatpush1.msra.mxu0 0.0
  %1461 = vmatprep.subr.mxu0 0.0
  %1462 = vmatpush1.msra.mxu0 0.0
  %1463 = vmatprep.subr.mxu0 0.0
  %1464 = vmatpush1.msra.mxu0 0.0
  %1465 = vmatprep.subr.mxu0 0.0
  %1466 = vmatpush1.msra.mxu0 0.0
  %1467 = vmatprep.subr.mxu0 0.0
  %1468 = vmatpush1.msra.mxu0 0.0
  %1469 = vmatprep.subr.mxu0 0.0
  %1470 = vmatpush1.msra.mxu0 0.0
  %1471 = vmatprep.subr.mxu0 0.0
  %1472 = vmatpush1.msra.mxu0 0.0
  %1473 = vmatprep.subr.mxu0 0.0
  %1474 = vmatpush1.msra.mxu0 0.0
  %1475 = vmatprep.subr.mxu0 0.0
  %1476 = vmatpush1.msra.mxu0 0.0
  %1477 = vmatprep.subr.mxu0 0.0
  %1478 = vmatpush1.msra.mxu0 0.0
  %1479 = vmatprep.subr.mxu0 0.0
  %1480 = vmatpush1.msra.mxu0 0.0
  %1481 = vmatprep.subr.mxu0 0.0
  %1482 = vmatpush1.msra.mxu0 0.0
  %1483 = vmatprep.subr.mxu0 0.0
  %1484 = vmatpush1.msra.mxu0 0.0
  %1485 = vmatprep.subr.mxu0 0.0
  %1486 = vmatpush1.msra.mxu0 0.0
  %1487 = vmatprep.subr.mxu0 0.0
  %1488 = vmatpush1.msra.mxu0 %v1449
  %1489 = vmatprep.subr.mxu0 0.0
  %1490 = vmatpush2.msra.mxu0 0.0
  %1491 = vmatprep.subr.mxu0 0.0
  %1492 = vmatpush2.msra.mxu0 0.0
  %1493 = vmatprep.subr.mxu0 0.0
  %1494 = vmatpush2.msra.mxu0 0.0
  %1495 = vmatprep.subr.mxu0 0.0
  %1496 = vmatpush2.msra.mxu0 0.0
  %1497 = vmatprep.subr.mxu0 0.0
  %1498 = vmatpush2.msra.mxu0 0.0
  %1499 = vmatprep.subr.mxu0 0.0
  %1500 = vmatpush2.msra.mxu0 0.0
  %1501 = vmatprep.subr.mxu0 0.0
  %1502 = vmatpush2.msra.mxu0 0.0
  %1503 = vmatprep.subr.mxu0 0.0
  %1504 = vmatpush2.msra.mxu0 0.0
  %1505 = vmatprep.subr.mxu0 0.0
  %1506 = vmatpush2.msra.mxu0 0.0
  %1507 = vmatprep.subr.mxu0 0.0
  %1508 = vmatpush2.msra.mxu0 0.0
  %1509 = vmatprep.subr.mxu0 0.0
  %1510 = vmatpush2.msra.mxu0 0.0
  %1511 = vmatprep.subr.mxu0 0.0
  %1512 = vmatpush2.msra.mxu0 0.0
  %1513 = vmatprep.subr.mxu0 0.0
  %1514 = vmatpush2.msra.mxu0 0.0
  %1515 = vmatprep.subr.mxu0 0.0
  %1516 = vmatpush2.msra.mxu0 0.0
  %1517 = vmatprep.subr.mxu0 0.0
  %1518 = vmatpush2.msra.mxu0 0.0
  %1519 = vmatprep.subr.mxu0 0.0
  %1520 = vmatpush2.msra.mxu0 0.0
  %1521 = vmatprep.mubr.f32.mxu0 0.0
  %1522 = vmatmul.mubr.f32.gmra.mxu0 %v1452
  %v1523 = vpop.f32.mrf.mxu0
  %v1524 = vadd.f32 0.0, %v1523
  %v1525 = vpop.f32.mrf.mxu0
  %1526 = vmatprep.mubr.f32.mxu0 0.0
  %1527 = vmatmul.mubr.f32.gmra.mxu0 %v1455
  %v1528 = vpop.f32.mrf.mxu0
  %v1529 = vadd.f32 0.0, %v1528
  %v1530 = vpop.f32.mrf.mxu0
  %1531 = vdwg.mxu0
  %v1532 = vadd.f32 %v1443, %v1524
  %v1533 = vadd.f32 %v1444, %v1529
  %v1534 = vld [vmem:[%s2] sm:$0xff]
  %v1535 = vld [vmem:[%s2 + $0x8] sm:$0x3]
  %1537 = vset.pattern.permute.xlu0 0
  %1538 = vperm.xlu0 %1537, %v1534
  %v1539 = vpop.permute.xlu0 %1538
  %1542 = vset.pattern.permute.xlu0 0
  %1543 = vperm.xlu0 %1542, %v1535
  %v1544 = vpop.permute.xlu0 %1543
  %v1546 = vadd.f32 %v1532, %v1539
  %v1547 = vadd.f32 %v1533, %v1544
  %v1548 = vmax.f32 %v1546, 0.0
  %v1549 = vmax.f32 %v1547, 0.0
  %vm1550 = vcmask 130048
  %v1551 = vsel %vm1550, %v1548, 0.0
  %1552 = vadd.xlane.f32.xlu0 %v1551
  %v1553 = vpop.xlane.xlu0 %1552
  %vm1554 = vcmask 123904
  %v1555 = vsel %vm1554, %v1549, 0.0
  %1556 = vadd.xlane.f32.xlu0 %v1555
  %v1557 = vpop.xlane.xlu0 %1556
  %v1558 = vmul.f32 %v1553, 0.0625
  %v1559 = vmul.f32 %v1557, 0.0625
  %v1560 = vld [vmem:[%s3] sm:$0xff]
  %v1561 = vld [vmem:[%s3 + $0x8] sm:$0x3]
  %v1562 = vld [vmem:[%s4] sm:$0xff]
  %v1563 = vld [vmem:[%s4 + $0x8] sm:$0x3]
  %vm1564 = vcmask 80896
  %v1566 = vsel %vm1564, %v1560, 0
  %v1569 = vsel %vm1564, %v1561, 0
  %vm1571 = vcmask 1041408
  %v1573 = vsel %vm1571, %v1559, 0
  %1575 = vmatprep.subr.mxu0 0.0
  %1576 = vmatpush1.msra.mxu0 0.0
  %1577 = vmatprep.subr.mxu0 0.0
  %1578 = vmatpush1.msra.mxu0 0.0
  %1579 = vmatprep.subr.mxu0 0.0
  %1580 = vmatpush1.msra.mxu0 0.0
  %1581 = vmatprep.subr.mxu0 0.0
  %1582 = vmatpush1.msra.mxu0 0.0
  %1583 = vmatprep.subr.mxu0 0.0
  %1584 = vmatpush1.msra.mxu0 0.0
  %1585 = vmatprep.subr.mxu0 0.0
  %1586 = vmatpush1.msra.mxu0 0.0
  %1587 = vmatprep.subr.mxu0 0.0
  %1588 = vmatpush1.msra.mxu0 0.0
  %1589 = vmatprep.subr.mxu0 0.0
  %1590 = vmatpush1.msra.mxu0 0.0
  %1591 = vmatprep.subr.mxu0 0.0
  %1592 = vmatpush1.msra.mxu0 0.0
  %1593 = vmatprep.subr.mxu0 0.0
  %1594 = vmatpush1.msra.mxu0 0.0
  %1595 = vmatprep.subr.mxu0 0.0
  %1596 = vmatpush1.msra.mxu0 0.0
  %1597 = vmatprep.subr.mxu0 0.0
  %1598 = vmatpush1.msra.mxu0 0.0
  %1599 = vmatprep.subr.mxu0 0.0
  %1600 = vmatpush1.msra.mxu0 0.0
  %1601 = vmatprep.subr.mxu0 0.0
  %1602 = vmatpush1.msra.mxu0 0.0
  %1603 = vmatprep.subr.mxu0 0.0
  %1604 = vmatpush1.msra.mxu0 %v1573
  %1605 = vmatprep.subr.mxu0 0.0
  %1606 = vmatpush1.msra.mxu0 %v1558
  %1607 = vmatprep.subr.mxu0 0.0
  %1608 = vmatpush2.msra.mxu0 0.0
  %1609 = vmatprep.subr.mxu0 0.0
  %1610 = vmatpush2.msra.mxu0 0.0
  %1611 = vmatprep.subr.mxu0 0.0
  %1612 = vmatpush2.msra.mxu0 0.0
  %1613 = vmatprep.subr.mxu0 0.0
  %1614 = vmatpush2.msra.mxu0 0.0
  %1615 = vmatprep.subr.mxu0 0.0
  %1616 = vmatpush2.msra.mxu0 0.0
  %1617 = vmatprep.subr.mxu0 0.0
  %1618 = vmatpush2.msra.mxu0 0.0
  %1619 = vmatprep.subr.mxu0 0.0
  %1620 = vmatpush2.msra.mxu0 0.0
  %1621 = vmatprep.subr.mxu0 0.0
  %1622 = vmatpush2.msra.mxu0 0.0
  %1623 = vmatprep.subr.mxu0 0.0
  %1624 = vmatpush2.msra.mxu0 0.0
  %1625 = vmatprep.subr.mxu0 0.0
  %1626 = vmatpush2.msra.mxu0 0.0
  %1627 = vmatprep.subr.mxu0 0.0
  %1628 = vmatpush2.msra.mxu0 0.0
  %1629 = vmatprep.subr.mxu0 0.0
  %1630 = vmatpush2.msra.mxu0 0.0
  %1631 = vmatprep.subr.mxu0 0.0
  %1632 = vmatpush2.msra.mxu0 0.0
  %1633 = vmatprep.subr.mxu0 0.0
  %1634 = vmatpush2.msra.mxu0 0.0
  %1635 = vmatprep.subr.mxu0 0.0
  %1636 = vmatpush2.msra.mxu0 0.0
  %1637 = vmatprep.subr.mxu0 0.0
  %1638 = vmatpush2.msra.mxu0 0.0
  %1639 = vmatprep.mubr.f32.mxu0 0.0
  %1640 = vmatmul.mubr.f32.gmra.mxu0 %v1566
  %v1641 = vpop.f32.mrf.mxu0
  %v1642 = vadd.f32 %v1562, %v1641
  %v1643 = vpop.f32.mrf.mxu0
  %1644 = vmatprep.mubr.f32.mxu0 0.0
  %1645 = vmatmul.mubr.f32.gmra.mxu0 %v1569
  %v1646 = vpop.f32.mrf.mxu0
  %v1647 = vadd.f32 %v1563, %v1646
  %v1648 = vpop.f32.mrf.mxu0
  %1649 = vdwg.mxu0
  %v1650 = vmax.f32 %v1642, 0.0
  %v1651 = vmax.f32 %v1647, 0.0
  %v1652 = vld [vmem:[%s5] sm:$0xf]
  %v1653 = vld [vmem:[%s6] sm:$0xf]
  %v1655 = vsel %vm1564, %v1652, 0
  %v1658 = vsel %vm1571, %v1651, 0
  %1660 = vmatprep.subr.mxu0 0.0
  %1661 = vmatpush1.msra.mxu0 0.0
  %1662 = vmatprep.subr.mxu0 0.0
  %1663 = vmatpush1.msra.mxu0 0.0
  %1664 = vmatprep.subr.mxu0 0.0
  %1665 = vmatpush1.msra.mxu0 0.0
  %1666 = vmatprep.subr.mxu0 0.0
  %1667 = vmatpush1.msra.mxu0 0.0
  %1668 = vmatprep.subr.mxu0 0.0
  %1669 = vmatpush1.msra.mxu0 0.0
  %1670 = vmatprep.subr.mxu0 0.0
  %1671 = vmatpush1.msra.mxu0 0.0
  %1672 = vmatprep.subr.mxu0 0.0
  %1673 = vmatpush1.msra.mxu0 0.0
  %1674 = vmatprep.subr.mxu0 0.0
  %1675 = vmatpush1.msra.mxu0 0.0
  %1676 = vmatprep.subr.mxu0 0.0
  %1677 = vmatpush1.msra.mxu0 0.0
  %1678 = vmatprep.subr.mxu0 0.0
  %1679 = vmatpush1.msra.mxu0 0.0
  %1680 = vmatprep.subr.mxu0 0.0
  %1681 = vmatpush1.msra.mxu0 0.0
  %1682 = vmatprep.subr.mxu0 0.0
  %1683 = vmatpush1.msra.mxu0 0.0
  %1684 = vmatprep.subr.mxu0 0.0
  %1685 = vmatpush1.msra.mxu0 0.0
  %1686 = vmatprep.subr.mxu0 0.0
  %1687 = vmatpush1.msra.mxu0 0.0
  %1688 = vmatprep.subr.mxu0 0.0
  %1689 = vmatpush1.msra.mxu0 %v1658
  %1690 = vmatprep.subr.mxu0 0.0
  %1691 = vmatpush1.msra.mxu0 %v1650
  %1692 = vmatprep.subr.mxu0 0.0
  %1693 = vmatpush2.msra.mxu0 0.0
  %1694 = vmatprep.subr.mxu0 0.0
  %1695 = vmatpush2.msra.mxu0 0.0
  %1696 = vmatprep.subr.mxu0 0.0
  %1697 = vmatpush2.msra.mxu0 0.0
  %1698 = vmatprep.subr.mxu0 0.0
  %1699 = vmatpush2.msra.mxu0 0.0
  %1700 = vmatprep.subr.mxu0 0.0
  %1701 = vmatpush2.msra.mxu0 0.0
  %1702 = vmatprep.subr.mxu0 0.0
  %1703 = vmatpush2.msra.mxu0 0.0
  %1704 = vmatprep.subr.mxu0 0.0
  %1705 = vmatpush2.msra.mxu0 0.0
  %1706 = vmatprep.subr.mxu0 0.0
  %1707 = vmatpush2.msra.mxu0 0.0
  %1708 = vmatprep.subr.mxu0 0.0
  %1709 = vmatpush2.msra.mxu0 0.0
  %1710 = vmatprep.subr.mxu0 0.0
  %1711 = vmatpush2.msra.mxu0 0.0
  %1712 = vmatprep.subr.mxu0 0.0
  %1713 = vmatpush2.msra.mxu0 0.0
  %1714 = vmatprep.subr.mxu0 0.0
  %1715 = vmatpush2.msra.mxu0 0.0
  %1716 = vmatprep.subr.mxu0 0.0
  %1717 = vmatpush2.msra.mxu0 0.0
  %1718 = vmatprep.subr.mxu0 0.0
  %1719 = vmatpush2.msra.mxu0 0.0
  %1720 = vmatprep.subr.mxu0 0.0
  %1721 = vmatpush2.msra.mxu0 0.0
  %1722 = vmatprep.subr.mxu0 0.0
  %1723 = vmatpush2.msra.mxu0 0.0
  %1724 = vmatprep.mubr.f32.mxu0 0.0
  %1725 = vmatmul.mubr.f32.gmra.mxu0 %v1655
  %v1726 = vpop.f32.mrf.mxu0
  %v1727 = vadd.f32 %v1653, %v1726
  %v1728 = vpop.f32.mrf.mxu0
  %1729 = vdwg.mxu0
  %v1730 = vsub.f32 0.0, %v1727
  %v1731 = vmul.f32 %v1730, 1.442695
  %v1732 = vpow.pop %v1731
  %v1733 = vadd.f32 %v1732, 1.0
  %v1734 = vrcp.pop %v1733
  %v1735 = vmul.f32 1.0, %v1734
  %vm1736 = vcmask 3072
  %1737 = vst.msk [vmem:[%s7] sm:$0xf] %vm1736, %v1735
  // Predicated region
  $region30: #{tpu_custom_call.1} parent=0 // pred_check
    _
  $region31: #{tpu_custom_call.1} parent=0 // pred_check_branch
    %1739 = sbr.rel (0) target = $region33
  $region32: #{tpu_custom_call.1} parent=0 // pred_region
    _
  $region33: #{tpu_custom_call.1} parent=0 // pred_fallthru
    _
  // Predicated region
  $region34: #{tpu_custom_call.1} parent=0 // pred_check
    _
  $region35: #{tpu_custom_call.1} parent=0 // pred_check_branch
    %1741 = sbr.rel (0) target = $region37
  $region36: #{tpu_custom_call.1} parent=0 // pred_region
    _
  $region37: #{tpu_custom_call.1} parent=0 // pred_fallthru
    _

</llo_original>
